<compile_context>
chip_gen: v6e
topology: v6e:2x2x1
jax: 0.10.0
libtpu: 0.0.40
codegen_flags: <defaults>
</compile_context>

<pallas_src>
import jax
import jax.numpy as jnp
from jax.experimental import pallas as pl
from jax.experimental.pallas import tpu as pltpu

EPS = 1e-5


def _fused_kernel(x_ref, s_ref, w_ref, g_ref, b_ref, o_ref):
    # x_ref: [C_in, S]  bf16   (resident across the C_out grid axis)
    # s_ref: [1, C_in]  bf16   (SE scale row)
    # w_ref: [co_t, C_in] bf16 (this grid step's slab of the 1x1-conv weight)
    # g_ref/b_ref: [co_t, 1] f32
    # o_ref: [co_t, S]  f32
    w_scaled = w_ref[...] * s_ref[...]                 # bf16, sublane broadcast (VPU)
    y = jnp.dot(w_scaled, x_ref[...],
                preferred_element_type=jnp.float32)    # 1x1 conv == matmul (MXU, f32 acc)

    # BatchNorm2d, training mode: per-channel stats over N*H*W, biased variance.
    # Single-pass stats: var = E[y^2] - mean^2 (f32, S=196 -> cancellation is benign).
    inv_s = 1.0 / y.shape[1]
    s1 = jnp.sum(y, axis=1, keepdims=True)             # [co_t, 1]
    s2 = jnp.sum(y * y, axis=1, keepdims=True)         # [co_t, 1]
    mean = s1 * inv_s
    var = jnp.maximum(s2 * inv_s - mean * mean, 0.0)
    a = g_ref[...] * jax.lax.rsqrt(var + EPS)          # fold gamma into scale
    shift = b_ref[...] - mean * a                      # fold mean+beta into shift
    o_ref[...] = y * a + shift                         # single FMA per element


def _num_tensorcores_per_chip():
    # v7x has 2 TensorCores per chip; v5e/v6e have 1.  Default to 1 (always safe).
    try:
        kind = jax.devices()[0].device_kind.lower()
    except Exception:
        return 1
    if "v7" in kind or "7x" in kind:
        return 2
    return 1


def _pick_cout_split(c_out):
    # Split C_out only when there are 2 TensorCores to shard the "parallel"
    # grid axis across; on a single TC the grid is a serial loop and the extra
    # step is pure overhead.  Blocks must stay sublane-aligned.
    if _num_tensorcores_per_chip() >= 2 and c_out % 2 == 0 and (c_out // 2) % 8 == 0:
        return 2
    return 1


@jax.jit
def fused_mul_conv1x1_bn(x_nchw, scale_nc11, weight_oi11, gamma, beta):
    """x_nchw: [N, C_in, H, W] (N == 1); scale_nc11: [N, C_in, 1, 1];
    weight_oi11: [C_out, C_in, 1, 1]; gamma/beta: [C_out]."""
    n, c_in, h, w = x_nchw.shape
    assert n == 1, "kernel assumes N == 1 (as in the reference module)"
    c_out = weight_oi11.shape[0]
    s = n * h * w

    # Free relabelings (no data movement): N == 1 and the 1x1 kernel dims are
    # trailing singletons.  bf16 casts happen here so the kernel's HBM reads
    # of the big operands are half-width; BN params stay f32.
    x2d = x_nchw.reshape(c_in, s).astype(jnp.bfloat16)           # [C_in, S]
    s_row = scale_nc11.reshape(1, c_in).astype(jnp.bfloat16)     # [1, C_in]
    w2d = weight_oi11.reshape(c_out, c_in).astype(jnp.bfloat16)  # [C_out, C_in]
    g2d = gamma.reshape(c_out, 1).astype(jnp.float32)
    b2d = beta.reshape(c_out, 1).astype(jnp.float32)

    n_co = _pick_cout_split(c_out)
    co_t = c_out // n_co

    flops = 2 * c_out * c_in * s
    bytes_accessed = (c_in * s + c_out * c_in + c_in) * 2 \
        + (c_out * s + 2 * c_out) * 4

    out2d = pl.pallas_call(
        _fused_kernel,
        out_shape=jax.ShapeDtypeStruct((c_out, s), jnp.float32),
        grid=(n_co,),
        in_specs=[
            pl.BlockSpec((c_in, s), lambda i: (0, 0)),      # x: resident, fetched once
            pl.BlockSpec((1, c_in), lambda i: (0, 0)),      # scale row: resident
            pl.BlockSpec((co_t, c_in), lambda i: (i, 0)),   # W slab: over C_out
            pl.BlockSpec((co_t, 1), lambda i: (i, 0)),      # gamma
            pl.BlockSpec((co_t, 1), lambda i: (i, 0)),      # beta
        ],
        out_specs=pl.BlockSpec((co_t, s), lambda i: (i, 0)),
        compiler_params=pltpu.CompilerParams(
            dimension_semantics=("parallel",)),
        cost_estimate=pl.CostEstimate(
            flops=flops, bytes_accessed=bytes_accessed, transcendentals=c_out),
    )(x2d, s_row, w2d, g2d, b2d)

    return out2d.reshape(n, c_out, h, w)          # free: no transpose (N == 1)


def _reference(x_nchw, scale_nc11, weight_oi11, gamma, beta):
    # Plain-JAX f32 reference of the same math (training-mode BN).
    x = x_nchw * scale_nc11
    y = jnp.einsum("oi,nihw->nohw", weight_oi11[:, :, 0, 0], x)
    mean = jnp.mean(y, axis=(0, 2, 3), keepdims=True)
    var = jnp.mean((y - mean) ** 2, axis=(0, 2, 3), keepdims=True)
    y_hat = (y - mean) / jnp.sqrt(var + EPS)
    return y_hat * gamma.reshape(1, -1, 1, 1) + beta.reshape(1, -1, 1, 1)


if __name__ == "__main__":
    key = jax.random.PRNGKey(0)
    k_x, k_s, k_w, k_g, k_b = jax.random.split(key, 5)

    # Shapes are fixed by the module (Conv2d 1344 -> 224, 14x14 spatial).
    N, C_IN, H, W = 1, 1344, 14, 14
    C_OUT = 224

    x536 = jax.random.normal(k_x, (N, C_IN, H, W), dtype=jnp.float32)
    x541 = jax.random.normal(k_s, (N, C_IN, 1, 1), dtype=jnp.float32)

    # Deterministic synthetic parameters (not a checkpoint load).
    conv_w = jax.random.normal(k_w, (C_OUT, C_IN, 1, 1), dtype=jnp.float32) * 0.02
    bn_gamma = 1.0 + 0.1 * jax.random.normal(k_g, (C_OUT,), dtype=jnp.float32)
    bn_beta = 0.1 * jax.random.normal(k_b, (C_OUT,), dtype=jnp.float32)

    out = fused_mul_conv1x1_bn(x536, x541, conv_w, bn_gamma, bn_beta)
    out = jax.block_until_ready(out)

    ref = _reference(x536, x541, conv_w, bn_gamma, bn_beta)
    assert out.shape == (N, C_OUT, H, W)
    # Tolerance loosened vs the all-f32 version: the big operands are carried
    # as bf16 (accumulation and BN stay f32).
    assert jnp.allclose(out, ref, atol=3e-2, rtol=3e-2)

    print("KERNEL_OK")
</pallas_src>

<mosaic_0001>
module attributes {stable_mosaic.version = 11 : i64} {
  func.func @_fused_kernel(%arg0: i32, %arg1: memref<1344x196xbf16, #tpu.memory_space<vmem>>, %arg2: memref<1x1344xbf16, #tpu.memory_space<vmem>>, %arg3: memref<224x1344xbf16, #tpu.memory_space<vmem>>, %arg4: memref<224x1xf32, #tpu.memory_space<vmem>>, %arg5: memref<224x1xf32, #tpu.memory_space<vmem>>, %arg6: memref<224x196xf32, #tpu.memory_space<vmem>>) attributes {dimension_semantics = [#tpu.dimension_semantics<parallel>], iteration_bounds = array<i64: 1>, scalar_prefetch = 0 : i64, scratch_operands = 0 : i64, tpu.core_type = #tpu.core_type<tc>, window_params = [{pipeline_mode = #tpu.pipeline_mode<synchronous>, transform_indices = @transform_0, window_bounds = array<i64: 1344, 196>}, {pipeline_mode = #tpu.pipeline_mode<synchronous>, transform_indices = @transform_1, window_bounds = array<i64: 1, 1344>}, {transform_indices = @transform_2, window_bounds = array<i64: 224, 1344>}, {transform_indices = @transform_3, window_bounds = array<i64: 224, 1>}, {transform_indices = @transform_4, window_bounds = array<i64: 224, 1>}, {transform_indices = @transform_5, window_bounds = array<i64: 224, 196>}]} {
    %c0 = arith.constant 0 : index
    %c0_0 = arith.constant 0 : index
    %0 = vector.load %arg3[%c0, %c0_0] : memref<224x1344xbf16, #tpu.memory_space<vmem>>, vector<224x1344xbf16>
    %c0_1 = arith.constant 0 : index
    %c0_2 = arith.constant 0 : index
    %1 = vector.load %arg2[%c0_1, %c0_2] : memref<1x1344xbf16, #tpu.memory_space<vmem>>, vector<1x1344xbf16>
    %2 = vector.broadcast %1 : vector<1x1344xbf16> to vector<224x1344xbf16>
    %3 = arith.mulf %0, %2 : vector<224x1344xbf16>
    %c0_3 = arith.constant 0 : index
    %c0_4 = arith.constant 0 : index
    %4 = vector.load %arg1[%c0_3, %c0_4] : memref<1344x196xbf16, #tpu.memory_space<vmem>>, vector<1344x196xbf16>
    %cst = arith.constant dense<0.000000e+00> : vector<224x196xf32>
    %5 = tpu.matmul %3, %4, %cst {dimension_numbers = #tpu.dot_dimension_numbers<[1], [0], [0], [1], [0, 0, 1, 1], [], []>} : vector<224x1344xbf16>, vector<1344x196xbf16>, vector<224x196xf32> -> vector<224x196xf32>
    %cst_5 = arith.constant dense<0.000000e+00> : vector<224xf32>
    %6 = vector.multi_reduction <add>, %5, %cst_5 [1] : vector<224x196xf32> to vector<224xf32>
    %7 = vector.shape_cast %6 : vector<224xf32> to vector<224x1xf32>
    %8 = arith.mulf %5, %5 : vector<224x196xf32>
    %cst_6 = arith.constant dense<0.000000e+00> : vector<224xf32>
    %9 = vector.multi_reduction <add>, %8, %cst_6 [1] : vector<224x196xf32> to vector<224xf32>
    %10 = vector.shape_cast %9 : vector<224xf32> to vector<224x1xf32>
    %cst_7 = arith.constant 0.00510204071 : f32
    %11 = vector.broadcast %cst_7 : f32 to vector<224x1xf32>
    %12 = arith.mulf %7, %11 : vector<224x1xf32>
    %cst_8 = arith.constant 0.00510204071 : f32
    %13 = vector.broadcast %cst_8 : f32 to vector<224x1xf32>
    %14 = arith.mulf %10, %13 : vector<224x1xf32>
    %15 = arith.mulf %12, %12 : vector<224x1xf32>
    %16 = arith.subf %14, %15 : vector<224x1xf32>
    %cst_9 = arith.constant 0.000000e+00 : f32
    %17 = vector.broadcast %cst_9 : f32 to vector<224x1xf32>
    %18 = arith.maximumf %16, %17 : vector<224x1xf32>
    %c0_10 = arith.constant 0 : index
    %c0_11 = arith.constant 0 : index
    %19 = vector.load %arg4[%c0_10, %c0_11] : memref<224x1xf32, #tpu.memory_space<vmem>>, vector<224x1xf32>
    %cst_12 = arith.constant 9.99999974E-6 : f32
    %20 = vector.broadcast %cst_12 : f32 to vector<224x1xf32>
    %21 = arith.addf %18, %20 : vector<224x1xf32>
    %22 = math.rsqrt %21 : vector<224x1xf32>
    %23 = arith.mulf %19, %22 : vector<224x1xf32>
    %c0_13 = arith.constant 0 : index
    %c0_14 = arith.constant 0 : index
    %24 = vector.load %arg5[%c0_13, %c0_14] : memref<224x1xf32, #tpu.memory_space<vmem>>, vector<224x1xf32>
    %25 = arith.mulf %12, %23 : vector<224x1xf32>
    %26 = arith.subf %24, %25 : vector<224x1xf32>
    %27 = vector.broadcast %23 : vector<224x1xf32> to vector<224x196xf32>
    %28 = arith.mulf %5, %27 : vector<224x196xf32>
    %29 = vector.broadcast %26 : vector<224x1xf32> to vector<224x196xf32>
    %30 = arith.addf %28, %29 : vector<224x196xf32>
    %c0_15 = arith.constant 0 : index
    %c0_16 = arith.constant 0 : index
    %31 = vector.load %arg6[%c0_15, %c0_16] : memref<224x196xf32, #tpu.memory_space<vmem>>, vector<224x196xf32>
    tpu.vector_store %arg6[%c0_15, %c0_16], %30 {strides = array<i32>} : memref<224x196xf32, #tpu.memory_space<vmem>>, vector<224x196xf32>,
    return
  }
  func.func @transform_0(%arg0: i32) -> (i32, i32) {
    %c0_i32 = arith.constant 0 : i32
    %c0_i32_0 = arith.constant 0 : i32
    %c0_i32_1 = arith.constant 0 : i32
    return %c0_i32, %c0_i32_0 : i32, i32
  }
  func.func @transform_1(%arg0: i32) -> (i32, i32) {
    %c0_i32 = arith.constant 0 : i32
    %c0_i32_0 = arith.constant 0 : i32
    %c0_i32_1 = arith.constant 0 : i32
    return %c0_i32, %c0_i32_0 : i32, i32
  }
  func.func @transform_2(%arg0: i32) -> (i32, i32) {
    %c0_i32 = arith.constant 0 : i32
    %c0_i32_0 = arith.constant 0 : i32
    return %arg0, %c0_i32 : i32, i32
  }
  func.func @transform_3(%arg0: i32) -> (i32, i32) {
    %c0_i32 = arith.constant 0 : i32
    %c0_i32_0 = arith.constant 0 : i32
    return %arg0, %c0_i32 : i32, i32
  }
  func.func @transform_4(%arg0: i32) -> (i32, i32) {
    %c0_i32 = arith.constant 0 : i32
    %c0_i32_0 = arith.constant 0 : i32
    return %arg0, %c0_i32 : i32, i32
  }
  func.func @transform_5(%arg0: i32) -> (i32, i32) {
    %c0_i32 = arith.constant 0 : i32
    %c0_i32_0 = arith.constant 0 : i32
    return %arg0, %c0_i32 : i32, i32
  }
}

</mosaic_0001>

<llo_original>
// kernel: fused_mul_conv1x1_bn.1
$region0: #{fused_mul_conv1x1_bn.1}
  #allocation0 [shape = 'u32[]', space=smem, size = 0x4, offset = 0x4, fixed_abs, tag = 'smem constant byte address 0x4 - core index']
  #allocation1 [shape = 'u32[144,128]{1,0:T(1,128)}', space=vmem, size = 0x12000, scoped, tag = 'internal scratch']
  %s0 = inlined_call_operand.vmem [shape: bf16[1344,196], index: 0, kind: input, shape index: {}]
  %s1 = inlined_call_operand.vmem [shape: bf16[1,1344], index: 1, kind: input, shape index: {}]
  %s2 = inlined_call_operand.vmem [shape: bf16[224,1344], index: 2, kind: input, shape index: {}]
  %s3 = inlined_call_operand.vmem [shape: f32[224,1], index: 3, kind: input, shape index: {}]
  %s4 = inlined_call_operand.vmem [shape: f32[224,1], index: 4, kind: input, shape index: {}]
  %s5 = inlined_call_operand.vmem [shape: f32[224,196], index: 5, kind: output, shape index: {}]
  %s6 = sld [smem:[#allocation0]]
  $region30: #{fused_mul_conv1x1_bn.1} parent=0
    _
  %s8 = ssub.s32 1, %s6
  %s9 = scalar_select 0, %s8, %s6
  // Predicated region
  $region2: #{fused_mul_conv1x1_bn.1} parent=0 // pred_check
    _
  $region3: #{fused_mul_conv1x1_bn.1} parent=0 // pred_check_branch
    %11 = sbr.rel (0) target = $region5
  $region4: #{fused_mul_conv1x1_bn.1} parent=0 // pred_region
    _
  $region5: #{fused_mul_conv1x1_bn.1} parent=0 // pred_fallthru
    _
  // Predicated region
  $region6: #{fused_mul_conv1x1_bn.1} parent=0 // pred_check
    _
  $region7: #{fused_mul_conv1x1_bn.1} parent=0 // pred_check_branch
    %13 = sbr.rel (0) target = $region9
  $region8: #{fused_mul_conv1x1_bn.1} parent=0 // pred_region
    _
  $region9: #{fused_mul_conv1x1_bn.1} parent=0 // pred_fallthru
    _
  // Predicated region
  $region10: #{fused_mul_conv1x1_bn.1} parent=0 // pred_check
    _
  $region11: #{fused_mul_conv1x1_bn.1} parent=0 // pred_check_branch
    %15 = sbr.rel (0) target = $region13
  $region12: #{fused_mul_conv1x1_bn.1} parent=0 // pred_region
    _
  $region13: #{fused_mul_conv1x1_bn.1} parent=0 // pred_fallthru
    _
  // Predicated region
  $region14: #{fused_mul_conv1x1_bn.1} parent=0 // pred_check
    _
  $region15: #{fused_mul_conv1x1_bn.1} parent=0 // pred_check_branch
    %17 = sbr.rel (0) target = $region17
  $region16: #{fused_mul_conv1x1_bn.1} parent=0 // pred_region
    _
  $region17: #{fused_mul_conv1x1_bn.1} parent=0 // pred_fallthru
    _
  // Predicated region
  $region18: #{fused_mul_conv1x1_bn.1} parent=0 // pred_check
    _
  $region19: #{fused_mul_conv1x1_bn.1} parent=0 // pred_check_branch
    %19 = sbr.rel (0) target = $region21
  $region20: #{fused_mul_conv1x1_bn.1} parent=0 // pred_region
    _
  $region21: #{fused_mul_conv1x1_bn.1} parent=0 // pred_fallthru
    _
  %v21 = vld [vmem:[%s2] sm:$0xff]
  %v22 = vld [vmem:[%s2 + $0x8] sm:$0xff]
  %v23 = vld [vmem:[%s2 + $0x10] sm:$0xff]
  %v24 = vld [vmem:[%s2 + $0x18] sm:$0xff]
  %v25 = vld [vmem:[%s2 + $0x20] sm:$0xff]
  %v26 = vld [vmem:[%s2 + $0x28] sm:$0xf]
  %v27 = vld [vmem:[%s2 + $0x2c] sm:$0xff]
  %v28 = vld [vmem:[%s2 + $0x34] sm:$0xff]
  %v29 = vld [vmem:[%s2 + $0x3c] sm:$0xff]
  %v30 = vld [vmem:[%s2 + $0x44] sm:$0xff]
  %v31 = vld [vmem:[%s2 + $0x4c] sm:$0xff]
  %v32 = vld [vmem:[%s2 + $0x54] sm:$0xf]
  %v33 = vld [vmem:[%s2 + $0x58] sm:$0xff]
  %v34 = vld [vmem:[%s2 + $0x60] sm:$0xff]
  %v35 = vld [vmem:[%s2 + $0x68] sm:$0xff]
  %v36 = vld [vmem:[%s2 + $0x70] sm:$0xff]
  %v37 = vld [vmem:[%s2 + $0x78] sm:$0xff]
  %v38 = vld [vmem:[%s2 + $0x80] sm:$0xf]
  %v39 = vld [vmem:[%s2 + $0x84] sm:$0xff]
  %v40 = vld [vmem:[%s2 + $0x8c] sm:$0xff]
  %v41 = vld [vmem:[%s2 + $0x94] sm:$0xff]
  %v42 = vld [vmem:[%s2 + $0x9c] sm:$0xff]
  %v43 = vld [vmem:[%s2 + $0xa4] sm:$0xff]
  %v44 = vld [vmem:[%s2 + $0xac] sm:$0xf]
  %v45 = vld [vmem:[%s2 + $0xb0] sm:$0xff]
  %v46 = vld [vmem:[%s2 + $0xb8] sm:$0xff]
  %v47 = vld [vmem:[%s2 + $0xc0] sm:$0xff]
  %v48 = vld [vmem:[%s2 + $0xc8] sm:$0xff]
  %v49 = vld [vmem:[%s2 + $0xd0] sm:$0xff]
  %v50 = vld [vmem:[%s2 + $0xd8] sm:$0xf]
  %v51 = vld [vmem:[%s2 + $0xdc] sm:$0xff]
  %v52 = vld [vmem:[%s2 + $0xe4] sm:$0xff]
  %v53 = vld [vmem:[%s2 + $0xec] sm:$0xff]
  %v54 = vld [vmem:[%s2 + $0xf4] sm:$0xff]
  %v55 = vld [vmem:[%s2 + $0xfc] sm:$0xff]
  %v56 = vld [vmem:[%s2 + $0x104] sm:$0xf]
  %v57 = vld [vmem:[%s2 + $0x108] sm:$0xff]
  %v58 = vld [vmem:[%s2 + $0x110] sm:$0xff]
  %v59 = vld [vmem:[%s2 + $0x118] sm:$0xff]
  %v60 = vld [vmem:[%s2 + $0x120] sm:$0xff]
  %v61 = vld [vmem:[%s2 + $0x128] sm:$0xff]
  %v62 = vld [vmem:[%s2 + $0x130] sm:$0xf]
  %v63 = vld [vmem:[%s2 + $0x134] sm:$0xff]
  %v64 = vld [vmem:[%s2 + $0x13c] sm:$0xff]
  %v65 = vld [vmem:[%s2 + $0x144] sm:$0xff]
  %v66 = vld [vmem:[%s2 + $0x14c] sm:$0xff]
  %v67 = vld [vmem:[%s2 + $0x154] sm:$0xff]
  %v68 = vld [vmem:[%s2 + $0x15c] sm:$0xf]
  %v69 = vld [vmem:[%s2 + $0x160] sm:$0xff]
  %v70 = vld [vmem:[%s2 + $0x168] sm:$0xff]
  %v71 = vld [vmem:[%s2 + $0x170] sm:$0xff]
  %v72 = vld [vmem:[%s2 + $0x178] sm:$0xff]
  %v73 = vld [vmem:[%s2 + $0x180] sm:$0xff]
  %v74 = vld [vmem:[%s2 + $0x188] sm:$0xf]
  %v75 = vld [vmem:[%s2 + $0x18c] sm:$0xff]
  %v76 = vld [vmem:[%s2 + $0x194] sm:$0xff]
  %v77 = vld [vmem:[%s2 + $0x19c] sm:$0xff]
  %v78 = vld [vmem:[%s2 + $0x1a4] sm:$0xff]
  %v79 = vld [vmem:[%s2 + $0x1ac] sm:$0xff]
  %v80 = vld [vmem:[%s2 + $0x1b4] sm:$0xf]
  %v81 = vld [vmem:[%s2 + $0x1b8] sm:$0xff]
  %v82 = vld [vmem:[%s2 + $0x1c0] sm:$0xff]
  %v83 = vld [vmem:[%s2 + $0x1c8] sm:$0xff]
  %v84 = vld [vmem:[%s2 + $0x1d0] sm:$0xff]
  %v85 = vld [vmem:[%s2 + $0x1d8] sm:$0xff]
  %v86 = vld [vmem:[%s2 + $0x1e0] sm:$0xf]
  %v87 = vld [vmem:[%s2 + $0x1e4] sm:$0xff]
  %v88 = vld [vmem:[%s2 + $0x1ec] sm:$0xff]
  %v89 = vld [vmem:[%s2 + $0x1f4] sm:$0xff]
  %v90 = vld [vmem:[%s2 + $0x1fc] sm:$0xff]
  %v91 = vld [vmem:[%s2 + $0x204] sm:$0xff]
  %v92 = vld [vmem:[%s2 + $0x20c] sm:$0xf]
  %v93 = vld [vmem:[%s2 + $0x210] sm:$0xff]
  %v94 = vld [vmem:[%s2 + $0x218] sm:$0xff]
  %v95 = vld [vmem:[%s2 + $0x220] sm:$0xff]
  %v96 = vld [vmem:[%s2 + $0x228] sm:$0xff]
  %v97 = vld [vmem:[%s2 + $0x230] sm:$0xff]
  %v98 = vld [vmem:[%s2 + $0x238] sm:$0xf]
  %v99 = vld [vmem:[%s2 + $0x23c] sm:$0xff]
  %v100 = vld [vmem:[%s2 + $0x244] sm:$0xff]
  %v101 = vld [vmem:[%s2 + $0x24c] sm:$0xff]
  %v102 = vld [vmem:[%s2 + $0x254] sm:$0xff]
  %v103 = vld [vmem:[%s2 + $0x25c] sm:$0xff]
  %v104 = vld [vmem:[%s2 + $0x264] sm:$0xf]
  %v105 = vld [vmem:[%s2 + $0x268] sm:$0xff]
  %v106 = vld [vmem:[%s2 + $0x270] sm:$0xff]
  %v107 = vld [vmem:[%s2 + $0x278] sm:$0xff]
  %v108 = vld [vmem:[%s2 + $0x280] sm:$0xff]
  %v109 = vld [vmem:[%s2 + $0x288] sm:$0xff]
  %v110 = vld [vmem:[%s2 + $0x290] sm:$0xf]
  %v111 = vld [vmem:[%s2 + $0x294] sm:$0xff]
  %v112 = vld [vmem:[%s2 + $0x29c] sm:$0xff]
  %v113 = vld [vmem:[%s2 + $0x2a4] sm:$0xff]
  %v114 = vld [vmem:[%s2 + $0x2ac] sm:$0xff]
  %v115 = vld [vmem:[%s2 + $0x2b4] sm:$0xff]
  %v116 = vld [vmem:[%s2 + $0x2bc] sm:$0xf]
  %v117 = vld [vmem:[%s2 + $0x2c0] sm:$0xff]
  %v118 = vld [vmem:[%s2 + $0x2c8] sm:$0xff]
  %v119 = vld [vmem:[%s2 + $0x2d0] sm:$0xff]
  %v120 = vld [vmem:[%s2 + $0x2d8] sm:$0xff]
  %v121 = vld [vmem:[%s2 + $0x2e0] sm:$0xff]
  %v122 = vld [vmem:[%s2 + $0x2e8] sm:$0xf]
  %v123 = vld [vmem:[%s2 + $0x2ec] sm:$0xff]
  %v124 = vld [vmem:[%s2 + $0x2f4] sm:$0xff]
  %v125 = vld [vmem:[%s2 + $0x2fc] sm:$0xff]
  %v126 = vld [vmem:[%s2 + $0x304] sm:$0xff]
  %v127 = vld [vmem:[%s2 + $0x30c] sm:$0xff]
  %v128 = vld [vmem:[%s2 + $0x314] sm:$0xf]
  %v129 = vld [vmem:[%s2 + $0x318] sm:$0xff]
  %v130 = vld [vmem:[%s2 + $0x320] sm:$0xff]
  %v131 = vld [vmem:[%s2 + $0x328] sm:$0xff]
  %v132 = vld [vmem:[%s2 + $0x330] sm:$0xff]
  %v133 = vld [vmem:[%s2 + $0x338] sm:$0xff]
  %v134 = vld [vmem:[%s2 + $0x340] sm:$0xf]
  %v135 = vld [vmem:[%s2 + $0x344] sm:$0xff]
  %v136 = vld [vmem:[%s2 + $0x34c] sm:$0xff]
  %v137 = vld [vmem:[%s2 + $0x354] sm:$0xff]
  %v138 = vld [vmem:[%s2 + $0x35c] sm:$0xff]
  %v139 = vld [vmem:[%s2 + $0x364] sm:$0xff]
  %v140 = vld [vmem:[%s2 + $0x36c] sm:$0xf]
  %v141 = vld [vmem:[%s2 + $0x370] sm:$0xff]
  %v142 = vld [vmem:[%s2 + $0x378] sm:$0xff]
  %v143 = vld [vmem:[%s2 + $0x380] sm:$0xff]
  %v144 = vld [vmem:[%s2 + $0x388] sm:$0xff]
  %v145 = vld [vmem:[%s2 + $0x390] sm:$0xff]
  %v146 = vld [vmem:[%s2 + $0x398] sm:$0xf]
  %v147 = vld [vmem:[%s2 + $0x39c] sm:$0xff]
  %v148 = vld [vmem:[%s2 + $0x3a4] sm:$0xff]
  %v149 = vld [vmem:[%s2 + $0x3ac] sm:$0xff]
  %v150 = vld [vmem:[%s2 + $0x3b4] sm:$0xff]
  %v151 = vld [vmem:[%s2 + $0x3bc] sm:$0xff]
  %v152 = vld [vmem:[%s2 + $0x3c4] sm:$0xf]
  %v153 = vld [vmem:[%s2 + $0x3c8] sm:$0xff]
  %v154 = vld [vmem:[%s2 + $0x3d0] sm:$0xff]
  %v155 = vld [vmem:[%s2 + $0x3d8] sm:$0xff]
  %v156 = vld [vmem:[%s2 + $0x3e0] sm:$0xff]
  %v157 = vld [vmem:[%s2 + $0x3e8] sm:$0xff]
  %v158 = vld [vmem:[%s2 + $0x3f0] sm:$0xf]
  %v159 = vld [vmem:[%s2 + $0x3f4] sm:$0xff]
  %v160 = vld [vmem:[%s2 + $0x3fc] sm:$0xff]
  %v161 = vld [vmem:[%s2 + $0x404] sm:$0xff]
  %v162 = vld [vmem:[%s2 + $0x40c] sm:$0xff]
  %v163 = vld [vmem:[%s2 + $0x414] sm:$0xff]
  %v164 = vld [vmem:[%s2 + $0x41c] sm:$0xf]
  %v165 = vld [vmem:[%s2 + $0x420] sm:$0xff]
  %v166 = vld [vmem:[%s2 + $0x428] sm:$0xff]
  %v167 = vld [vmem:[%s2 + $0x430] sm:$0xff]
  %v168 = vld [vmem:[%s2 + $0x438] sm:$0xff]
  %v169 = vld [vmem:[%s2 + $0x440] sm:$0xff]
  %v170 = vld [vmem:[%s2 + $0x448] sm:$0xf]
  %v171 = vld [vmem:[%s2 + $0x44c] sm:$0xff]
  %v172 = vld [vmem:[%s2 + $0x454] sm:$0xff]
  %v173 = vld [vmem:[%s2 + $0x45c] sm:$0xff]
  %v174 = vld [vmem:[%s2 + $0x464] sm:$0xff]
  %v175 = vld [vmem:[%s2 + $0x46c] sm:$0xff]
  %v176 = vld [vmem:[%s2 + $0x474] sm:$0xf]
  %v177 = vld [vmem:[%s2 + $0x478] sm:$0xff]
  %v178 = vld [vmem:[%s2 + $0x480] sm:$0xff]
  %v179 = vld [vmem:[%s2 + $0x488] sm:$0xff]
  %v180 = vld [vmem:[%s2 + $0x490] sm:$0xff]
  %v181 = vld [vmem:[%s2 + $0x498] sm:$0xff]
  %v182 = vld [vmem:[%s2 + $0x4a0] sm:$0xf]
  %v183 = vld [vmem:[%s2 + $0x4a4] sm:$0xff]
  %v184 = vld [vmem:[%s2 + $0x4ac] sm:$0xff]
  %v185 = vld [vmem:[%s2 + $0x4b4] sm:$0xff]
  %v186 = vld [vmem:[%s2 + $0x4bc] sm:$0xff]
  %v187 = vld [vmem:[%s2 + $0x4c4] sm:$0xff]
  %v188 = vld [vmem:[%s2 + $0x4cc] sm:$0xf]
  %v189 = vld [vmem:[%s1] sm:$0xff]
  %v190 = vld [vmem:[%s1 + $0x8] sm:$0x7]
  %v193 = vcombine.high %v189, %v189
  %v195 = vunpack.c.l.s4 1966171168
  %v196 = vunpack.c.0.s8 %v195
  %v197 = vlaneseq
  %v198 = vshrl.u32 %v197, 7
  %v199 = vsub.s32 %v196, %v198
  %v200 = vrot.slane %v189, %v199
  %v202 = vunpack.c.l.s4 1966171168
  %v203 = vunpack.c.0.s8 %v202
  %v204 = vlaneseq
  %v205 = vshrl.u32 %v204, 7
  %v206 = vsub.s32 %v203, %v205
  %v207 = vrot.slane %v193, %v206
  %v208 = vcombine.high %v200, %v200
  %v209 = vcombine.high %v207, %v207
  %v211 = vunpack.c.l.s4 1966171168
  %v212 = vunpack.c.0.s8 %v211
  %v213 = vlaneseq
  %v214 = vshrl.u32 %v213, 7
  %v215 = vsub.s32 %v212, %v214
  %v216 = vrot.slane %v200, %v215
  %v218 = vunpack.c.l.s4 1966171168
  %v219 = vunpack.c.0.s8 %v218
  %v220 = vlaneseq
  %v221 = vshrl.u32 %v220, 7
  %v222 = vsub.s32 %v219, %v221
  %v223 = vrot.slane %v207, %v222
  %v225 = vunpack.c.l.s4 1966171168
  %v226 = vunpack.c.0.s8 %v225
  %v227 = vlaneseq
  %v228 = vshrl.u32 %v227, 7
  %v229 = vsub.s32 %v226, %v228
  %v230 = vrot.slane %v208, %v229
  %v232 = vunpack.c.l.s4 1966171168
  %v233 = vunpack.c.0.s8 %v232
  %v234 = vlaneseq
  %v235 = vshrl.u32 %v234, 7
  %v236 = vsub.s32 %v233, %v235
  %v237 = vrot.slane %v209, %v236
  %v238 = vcombine.high %v216, %v216
  %v239 = vcombine.high %v223, %v223
  %v240 = vcombine.high %v230, %v230
  %v241 = vcombine.high %v237, %v237
  %v243 = vunpack.c.l.s4 1966171168
  %v244 = vunpack.c.0.s8 %v243
  %v245 = vlaneseq
  %v246 = vshrl.u32 %v245, 7
  %v247 = vsub.s32 %v244, %v246
  %v248 = vrot.slane %v190, %v247
  %v249 = vcombine.high %v248, %v248
  %v251 = vunpack.c.l.s4 1966171168
  %v252 = vunpack.c.0.s8 %v251
  %v253 = vlaneseq
  %v254 = vshrl.u32 %v253, 7
  %v255 = vsub.s32 %v252, %v254
  %v256 = vrot.slane %v248, %v255
  %v258 = vunpack.c.l.s4 1966171168
  %v259 = vunpack.c.0.s8 %v258
  %v260 = vlaneseq
  %v261 = vshrl.u32 %v260, 7
  %v262 = vsub.s32 %v259, %v261
  %v263 = vrot.slane %v249, %v262
  %v264 = vcombine.high %v256, %v256
  %v266 = vpack.i.b16 %v216, %v216
  %v268 = vlaneseq
  %v269 = vshrl.u32 %v268, 7
  %v270 = vsub.s32 0, %v269
  %v271 = vrot.slane %v266, %v270
  %v273 = vpack.i.b16 %v230, %v230
  %v275 = vlaneseq
  %v276 = vshrl.u32 %v275, 7
  %v277 = vsub.s32 0, %v276
  %v278 = vrot.slane %v273, %v277
  %v280 = vpack.i.b16 %v238, %v238
  %v282 = vlaneseq
  %v283 = vshrl.u32 %v282, 7
  %v284 = vsub.s32 0, %v283
  %v285 = vrot.slane %v280, %v284
  %v287 = vpack.i.b16 %v240, %v240
  %v289 = vlaneseq
  %v290 = vshrl.u32 %v289, 7
  %v291 = vsub.s32 0, %v290
  %v292 = vrot.slane %v287, %v291
  %v294 = vpack.i.b16 %v223, %v223
  %v296 = vlaneseq
  %v297 = vshrl.u32 %v296, 7
  %v298 = vsub.s32 0, %v297
  %v299 = vrot.slane %v294, %v298
  %v301 = vpack.i.b16 %v237, %v237
  %v303 = vlaneseq
  %v304 = vshrl.u32 %v303, 7
  %v305 = vsub.s32 0, %v304
  %v306 = vrot.slane %v301, %v305
  %v308 = vpack.i.b16 %v239, %v239
  %v310 = vlaneseq
  %v311 = vshrl.u32 %v310, 7
  %v312 = vsub.s32 0, %v311
  %v313 = vrot.slane %v308, %v312
  %v315 = vpack.i.b16 %v241, %v241
  %v317 = vlaneseq
  %v318 = vshrl.u32 %v317, 7
  %v319 = vsub.s32 0, %v318
  %v320 = vrot.slane %v315, %v319
  %v322 = vpack.i.b16 %v256, %v256
  %v324 = vlaneseq
  %v325 = vshrl.u32 %v324, 7
  %v326 = vsub.s32 0, %v325
  %v327 = vrot.slane %v322, %v326
  %v329 = vpack.i.b16 %v263, %v263
  %v331 = vlaneseq
  %v332 = vshrl.u32 %v331, 7
  %v333 = vsub.s32 0, %v332
  %v334 = vrot.slane %v329, %v333
  %v336 = vpack.i.b16 %v264, %v264
  %v338 = vlaneseq
  %v339 = vshrl.u32 %v338, 7
  %v340 = vsub.s32 0, %v339
  %v341 = vrot.slane %v336, %v340
  %v353 = vunpack.c.l.b16 %v271
  %v354 = vunpack.c.l.b16 %v278
  %v355 = vunpack.c.l.b16 %v285
  %v356 = vunpack.c.l.b16 %v292
  %v357 = vunpack.c.l.b16 %v299
  %v358 = vunpack.c.l.b16 %v306
  %v359 = vunpack.c.l.b16 %v313
  %v360 = vunpack.c.l.b16 %v320
  %v361 = vunpack.c.l.b16 %v327
  %v362 = vunpack.c.l.b16 %v334
  %v363 = vunpack.c.l.b16 %v341
  %v364 = vpack.c.b16 %v354, %v353
  %v365 = vpack.c.b16 %v356, %v355
  %v366 = vpack.c.b16 %v358, %v357
  %v367 = vpack.c.b16 %v360, %v359
  %v368 = vpack.c.b16 %v362, %v361
  %v369 = vpack.c.b16 %v363, %v363
  %v376 = vmul.bf16 %v21, %v364
  %v377 = vmul.bf16 %v22, %v365
  %v378 = vmul.bf16 %v23, %v366
  %v379 = vmul.bf16 %v24, %v367
  %v380 = vmul.bf16 %v25, %v368
  %v381 = vmul.bf16 %v26, %v369
  %v382 = vmul.bf16 %v27, %v364
  %v383 = vmul.bf16 %v28, %v365
  %v384 = vmul.bf16 %v29, %v366
  %v385 = vmul.bf16 %v30, %v367
  %v386 = vmul.bf16 %v31, %v368
  %v387 = vmul.bf16 %v32, %v369
  %v388 = vmul.bf16 %v33, %v364
  %v389 = vmul.bf16 %v34, %v365
  %v390 = vmul.bf16 %v35, %v366
  %v391 = vmul.bf16 %v36, %v367
  %v392 = vmul.bf16 %v37, %v368
  %v393 = vmul.bf16 %v38, %v369
  %v394 = vmul.bf16 %v39, %v364
  %v395 = vmul.bf16 %v40, %v365
  %v396 = vmul.bf16 %v41, %v366
  %v397 = vmul.bf16 %v42, %v367
  %v398 = vmul.bf16 %v43, %v368
  %v399 = vmul.bf16 %v44, %v369
  %v400 = vmul.bf16 %v45, %v364
  %v401 = vmul.bf16 %v46, %v365
  %v402 = vmul.bf16 %v47, %v366
  %v403 = vmul.bf16 %v48, %v367
  %v404 = vmul.bf16 %v49, %v368
  %v405 = vmul.bf16 %v50, %v369
  %v406 = vmul.bf16 %v51, %v364
  %v407 = vmul.bf16 %v52, %v365
  %v408 = vmul.bf16 %v53, %v366
  %v409 = vmul.bf16 %v54, %v367
  %v410 = vmul.bf16 %v55, %v368
  %v411 = vmul.bf16 %v56, %v369
  %v412 = vmul.bf16 %v57, %v364
  %v413 = vmul.bf16 %v58, %v365
  %v414 = vmul.bf16 %v59, %v366
  %v415 = vmul.bf16 %v60, %v367
  %v416 = vmul.bf16 %v61, %v368
  %v417 = vmul.bf16 %v62, %v369
  %v418 = vmul.bf16 %v63, %v364
  %v419 = vmul.bf16 %v64, %v365
  %v420 = vmul.bf16 %v65, %v366
  %v421 = vmul.bf16 %v66, %v367
  %v422 = vmul.bf16 %v67, %v368
  %v423 = vmul.bf16 %v68, %v369
  %v424 = vmul.bf16 %v69, %v364
  %v425 = vmul.bf16 %v70, %v365
  %v426 = vmul.bf16 %v71, %v366
  %v427 = vmul.bf16 %v72, %v367
  %v428 = vmul.bf16 %v73, %v368
  %v429 = vmul.bf16 %v74, %v369
  %v430 = vmul.bf16 %v75, %v364
  %v431 = vmul.bf16 %v76, %v365
  %v432 = vmul.bf16 %v77, %v366
  %v433 = vmul.bf16 %v78, %v367
  %v434 = vmul.bf16 %v79, %v368
  %v435 = vmul.bf16 %v80, %v369
  %v436 = vmul.bf16 %v81, %v364
  %v437 = vmul.bf16 %v82, %v365
  %v438 = vmul.bf16 %v83, %v366
  %v439 = vmul.bf16 %v84, %v367
  %v440 = vmul.bf16 %v85, %v368
  %v441 = vmul.bf16 %v86, %v369
  %v442 = vmul.bf16 %v87, %v364
  %v443 = vmul.bf16 %v88, %v365
  %v444 = vmul.bf16 %v89, %v366
  %v445 = vmul.bf16 %v90, %v367
  %v446 = vmul.bf16 %v91, %v368
  %v447 = vmul.bf16 %v92, %v369
  %v448 = vmul.bf16 %v93, %v364
  %v449 = vmul.bf16 %v94, %v365
  %v450 = vmul.bf16 %v95, %v366
  %v451 = vmul.bf16 %v96, %v367
  %v452 = vmul.bf16 %v97, %v368
  %v453 = vmul.bf16 %v98, %v369
  %v454 = vmul.bf16 %v99, %v364
  %v455 = vmul.bf16 %v100, %v365
  %v456 = vmul.bf16 %v101, %v366
  %v457 = vmul.bf16 %v102, %v367
  %v458 = vmul.bf16 %v103, %v368
  %v459 = vmul.bf16 %v104, %v369
  %v460 = vmul.bf16 %v105, %v364
  %v461 = vmul.bf16 %v106, %v365
  %v462 = vmul.bf16 %v107, %v366
  %v463 = vmul.bf16 %v108, %v367
  %v464 = vmul.bf16 %v109, %v368
  %v465 = vmul.bf16 %v110, %v369
  %v466 = vmul.bf16 %v111, %v364
  %v467 = vmul.bf16 %v112, %v365
  %v468 = vmul.bf16 %v113, %v366
  %v469 = vmul.bf16 %v114, %v367
  %v470 = vmul.bf16 %v115, %v368
  %v471 = vmul.bf16 %v116, %v369
  %v472 = vmul.bf16 %v117, %v364
  %v473 = vmul.bf16 %v118, %v365
  %v474 = vmul.bf16 %v119, %v366
  %v475 = vmul.bf16 %v120, %v367
  %v476 = vmul.bf16 %v121, %v368
  %v477 = vmul.bf16 %v122, %v369
  %v478 = vmul.bf16 %v123, %v364
  %v479 = vmul.bf16 %v124, %v365
  %v480 = vmul.bf16 %v125, %v366
  %v481 = vmul.bf16 %v126, %v367
  %v482 = vmul.bf16 %v127, %v368
  %v483 = vmul.bf16 %v128, %v369
  %v484 = vmul.bf16 %v129, %v364
  %v485 = vmul.bf16 %v130, %v365
  %v486 = vmul.bf16 %v131, %v366
  %v487 = vmul.bf16 %v132, %v367
  %v488 = vmul.bf16 %v133, %v368
  %v489 = vmul.bf16 %v134, %v369
  %v490 = vmul.bf16 %v135, %v364
  %v491 = vmul.bf16 %v136, %v365
  %v492 = vmul.bf16 %v137, %v366
  %v493 = vmul.bf16 %v138, %v367
  %v494 = vmul.bf16 %v139, %v368
  %v495 = vmul.bf16 %v140, %v369
  %v496 = vmul.bf16 %v141, %v364
  %v497 = vmul.bf16 %v142, %v365
  %v498 = vmul.bf16 %v143, %v366
  %v499 = vmul.bf16 %v144, %v367
  %v500 = vmul.bf16 %v145, %v368
  %v501 = vmul.bf16 %v146, %v369
  %v502 = vmul.bf16 %v147, %v364
  %v503 = vmul.bf16 %v148, %v365
  %v504 = vmul.bf16 %v149, %v366
  %v505 = vmul.bf16 %v150, %v367
  %v506 = vmul.bf16 %v151, %v368
  %v507 = vmul.bf16 %v152, %v369
  %v508 = vmul.bf16 %v153, %v364
  %v509 = vmul.bf16 %v154, %v365
  %v510 = vmul.bf16 %v155, %v366
  %v511 = vmul.bf16 %v156, %v367
  %v512 = vmul.bf16 %v157, %v368
  %v513 = vmul.bf16 %v158, %v369
  %v514 = vmul.bf16 %v159, %v364
  %v515 = vmul.bf16 %v160, %v365
  %v516 = vmul.bf16 %v161, %v366
  %v517 = vmul.bf16 %v162, %v367
  %v518 = vmul.bf16 %v163, %v368
  %v519 = vmul.bf16 %v164, %v369
  %v520 = vmul.bf16 %v165, %v364
  %v521 = vmul.bf16 %v166, %v365
  %v522 = vmul.bf16 %v167, %v366
  %v523 = vmul.bf16 %v168, %v367
  %v524 = vmul.bf16 %v169, %v368
  %v525 = vmul.bf16 %v170, %v369
  %v526 = vmul.bf16 %v171, %v364
  %v527 = vmul.bf16 %v172, %v365
  %v528 = vmul.bf16 %v173, %v366
  %v529 = vmul.bf16 %v174, %v367
  %v530 = vmul.bf16 %v175, %v368
  %v531 = vmul.bf16 %v176, %v369
  %v532 = vmul.bf16 %v177, %v364
  %v533 = vmul.bf16 %v178, %v365
  %v534 = vmul.bf16 %v179, %v366
  %v535 = vmul.bf16 %v180, %v367
  %v536 = vmul.bf16 %v181, %v368
  %v537 = vmul.bf16 %v182, %v369
  %v538 = vmul.bf16 %v183, %v364
  %v539 = vmul.bf16 %v184, %v365
  %v540 = vmul.bf16 %v185, %v366
  %v541 = vmul.bf16 %v186, %v367
  %v542 = vmul.bf16 %v187, %v368
  %v543 = vmul.bf16 %v188, %v369
  %v544 = vld [vmem:[%s0] sm:$0xff]
  %v545 = vld [vmem:[%s0 + $0x8] sm:$0xff]
  %v546 = vld [vmem:[%s0 + $0x10] sm:$0xff]
  %v547 = vld [vmem:[%s0 + $0x18] sm:$0xff]
  %v548 = vld [vmem:[%s0 + $0x20] sm:$0xff]
  %v549 = vld [vmem:[%s0 + $0x28] sm:$0xff]
  %v550 = vld [vmem:[%s0 + $0x30] sm:$0xff]
  %v551 = vld [vmem:[%s0 + $0x38] sm:$0xff]
  %v552 = vld [vmem:[%s0 + $0x40] sm:$0xff]
  %v553 = vld [vmem:[%s0 + $0x48] sm:$0xff]
  %v554 = vld [vmem:[%s0 + $0x50] sm:$0xff]
  %v555 = vld [vmem:[%s0 + $0x58] sm:$0xff]
  %v556 = vld [vmem:[%s0 + $0x60] sm:$0xff]
  %v557 = vld [vmem:[%s0 + $0x68] sm:$0xff]
  %v558 = vld [vmem:[%s0 + $0x70] sm:$0xff]
  %v559 = vld [vmem:[%s0 + $0x78] sm:$0xff]
  %v560 = vld [vmem:[%s0 + $0x80] sm:$0xff]
  %v561 = vld [vmem:[%s0 + $0x88] sm:$0xff]
  %v562 = vld [vmem:[%s0 + $0x90] sm:$0xff]
  %v563 = vld [vmem:[%s0 + $0x98] sm:$0xff]
  %v564 = vld [vmem:[%s0 + $0xa0] sm:$0xff]
  %v565 = vld [vmem:[%s0 + $0xa8] sm:$0xff]
  %v566 = vld [vmem:[%s0 + $0xb0] sm:$0xff]
  %v567 = vld [vmem:[%s0 + $0xb8] sm:$0xff]
  %v568 = vld [vmem:[%s0 + $0xc0] sm:$0xff]
  %v569 = vld [vmem:[%s0 + $0xc8] sm:$0xff]
  %v570 = vld [vmem:[%s0 + $0xd0] sm:$0xff]
  %v571 = vld [vmem:[%s0 + $0xd8] sm:$0xff]
  %v572 = vld [vmem:[%s0 + $0xe0] sm:$0xff]
  %v573 = vld [vmem:[%s0 + $0xe8] sm:$0xff]
  %v574 = vld [vmem:[%s0 + $0xf0] sm:$0xff]
  %v575 = vld [vmem:[%s0 + $0xf8] sm:$0xff]
  %v576 = vld [vmem:[%s0 + $0x100] sm:$0xff]
  %v577 = vld [vmem:[%s0 + $0x108] sm:$0xff]
  %v578 = vld [vmem:[%s0 + $0x110] sm:$0xff]
  %v579 = vld [vmem:[%s0 + $0x118] sm:$0xff]
  %v580 = vld [vmem:[%s0 + $0x120] sm:$0xff]
  %v581 = vld [vmem:[%s0 + $0x128] sm:$0xff]
  %v582 = vld [vmem:[%s0 + $0x130] sm:$0xff]
  %v583 = vld [vmem:[%s0 + $0x138] sm:$0xff]
  %v584 = vld [vmem:[%s0 + $0x140] sm:$0xff]
  %v585 = vld [vmem:[%s0 + $0x148] sm:$0xff]
  %v586 = vld [vmem:[%s0 + $0x150] sm:$0xff]
  %v587 = vld [vmem:[%s0 + $0x158] sm:$0xff]
  %v588 = vld [vmem:[%s0 + $0x160] sm:$0xff]
  %v589 = vld [vmem:[%s0 + $0x168] sm:$0xff]
  %v590 = vld [vmem:[%s0 + $0x170] sm:$0xff]
  %v591 = vld [vmem:[%s0 + $0x178] sm:$0xff]
  %v592 = vld [vmem:[%s0 + $0x180] sm:$0xff]
  %v593 = vld [vmem:[%s0 + $0x188] sm:$0xff]
  %v594 = vld [vmem:[%s0 + $0x190] sm:$0xff]
  %v595 = vld [vmem:[%s0 + $0x198] sm:$0xff]
  %v596 = vld [vmem:[%s0 + $0x1a0] sm:$0xff]
  %v597 = vld [vmem:[%s0 + $0x1a8] sm:$0xff]
  %v598 = vld [vmem:[%s0 + $0x1b0] sm:$0xff]
  %v599 = vld [vmem:[%s0 + $0x1b8] sm:$0xff]
  %v600 = vld [vmem:[%s0 + $0x1c0] sm:$0xff]
  %v601 = vld [vmem:[%s0 + $0x1c8] sm:$0xff]
  %v602 = vld [vmem:[%s0 + $0x1d0] sm:$0xff]
  %v603 = vld [vmem:[%s0 + $0x1d8] sm:$0xff]
  %v604 = vld [vmem:[%s0 + $0x1e0] sm:$0xff]
  %v605 = vld [vmem:[%s0 + $0x1e8] sm:$0xff]
  %v606 = vld [vmem:[%s0 + $0x1f0] sm:$0xff]
  %v607 = vld [vmem:[%s0 + $0x1f8] sm:$0xff]
  %v608 = vld [vmem:[%s0 + $0x200] sm:$0xff]
  %v609 = vld [vmem:[%s0 + $0x208] sm:$0xff]
  %v610 = vld [vmem:[%s0 + $0x210] sm:$0xff]
  %v611 = vld [vmem:[%s0 + $0x218] sm:$0xff]
  %v612 = vld [vmem:[%s0 + $0x220] sm:$0xff]
  %v613 = vld [vmem:[%s0 + $0x228] sm:$0xff]
  %v614 = vld [vmem:[%s0 + $0x230] sm:$0xff]
  %v615 = vld [vmem:[%s0 + $0x238] sm:$0xff]
  %v616 = vld [vmem:[%s0 + $0x240] sm:$0xff]
  %v617 = vld [vmem:[%s0 + $0x248] sm:$0xff]
  %v618 = vld [vmem:[%s0 + $0x250] sm:$0xff]
  %v619 = vld [vmem:[%s0 + $0x258] sm:$0xff]
  %v620 = vld [vmem:[%s0 + $0x260] sm:$0xff]
  %v621 = vld [vmem:[%s0 + $0x268] sm:$0xff]
  %v622 = vld [vmem:[%s0 + $0x270] sm:$0xff]
  %v623 = vld [vmem:[%s0 + $0x278] sm:$0xff]
  %v624 = vld [vmem:[%s0 + $0x280] sm:$0xff]
  %v625 = vld [vmem:[%s0 + $0x288] sm:$0xff]
  %v626 = vld [vmem:[%s0 + $0x290] sm:$0xff]
  %v627 = vld [vmem:[%s0 + $0x298] sm:$0xff]
  %v628 = vld [vmem:[%s0 + $0x2a0] sm:$0xff]
  %v629 = vld [vmem:[%s0 + $0x2a8] sm:$0xff]
  %v630 = vld [vmem:[%s0 + $0x2b0] sm:$0xff]
  %v631 = vld [vmem:[%s0 + $0x2b8] sm:$0xff]
  %v632 = vld [vmem:[%s0 + $0x2c0] sm:$0xff]
  %v633 = vld [vmem:[%s0 + $0x2c8] sm:$0xff]
  %v634 = vld [vmem:[%s0 + $0x2d0] sm:$0xff]
  %v635 = vld [vmem:[%s0 + $0x2d8] sm:$0xff]
  %v636 = vld [vmem:[%s0 + $0x2e0] sm:$0xff]
  %v637 = vld [vmem:[%s0 + $0x2e8] sm:$0xff]
  %v638 = vld [vmem:[%s0 + $0x2f0] sm:$0xff]
  %v639 = vld [vmem:[%s0 + $0x2f8] sm:$0xff]
  %v640 = vld [vmem:[%s0 + $0x300] sm:$0xff]
  %v641 = vld [vmem:[%s0 + $0x308] sm:$0xff]
  %v642 = vld [vmem:[%s0 + $0x310] sm:$0xff]
  %v643 = vld [vmem:[%s0 + $0x318] sm:$0xff]
  %v644 = vld [vmem:[%s0 + $0x320] sm:$0xff]
  %v645 = vld [vmem:[%s0 + $0x328] sm:$0xff]
  %v646 = vld [vmem:[%s0 + $0x330] sm:$0xff]
  %v647 = vld [vmem:[%s0 + $0x338] sm:$0xff]
  %v648 = vld [vmem:[%s0 + $0x340] sm:$0xff]
  %v649 = vld [vmem:[%s0 + $0x348] sm:$0xff]
  %v650 = vld [vmem:[%s0 + $0x350] sm:$0xff]
  %v651 = vld [vmem:[%s0 + $0x358] sm:$0xff]
  %v652 = vld [vmem:[%s0 + $0x360] sm:$0xff]
  %v653 = vld [vmem:[%s0 + $0x368] sm:$0xff]
  %v654 = vld [vmem:[%s0 + $0x370] sm:$0xff]
  %v655 = vld [vmem:[%s0 + $0x378] sm:$0xff]
  %v656 = vld [vmem:[%s0 + $0x380] sm:$0xff]
  %v657 = vld [vmem:[%s0 + $0x388] sm:$0xff]
  %v658 = vld [vmem:[%s0 + $0x390] sm:$0xff]
  %v659 = vld [vmem:[%s0 + $0x398] sm:$0xff]
  %v660 = vld [vmem:[%s0 + $0x3a0] sm:$0xff]
  %v661 = vld [vmem:[%s0 + $0x3a8] sm:$0xff]
  %v662 = vld [vmem:[%s0 + $0x3b0] sm:$0xff]
  %v663 = vld [vmem:[%s0 + $0x3b8] sm:$0xff]
  %v664 = vld [vmem:[%s0 + $0x3c0] sm:$0xff]
  %v665 = vld [vmem:[%s0 + $0x3c8] sm:$0xff]
  %v666 = vld [vmem:[%s0 + $0x3d0] sm:$0xff]
  %v667 = vld [vmem:[%s0 + $0x3d8] sm:$0xff]
  %v668 = vld [vmem:[%s0 + $0x3e0] sm:$0xff]
  %v669 = vld [vmem:[%s0 + $0x3e8] sm:$0xff]
  %v670 = vld [vmem:[%s0 + $0x3f0] sm:$0xff]
  %v671 = vld [vmem:[%s0 + $0x3f8] sm:$0xff]
  %v672 = vld [vmem:[%s0 + $0x400] sm:$0xff]
  %v673 = vld [vmem:[%s0 + $0x408] sm:$0xff]
  %v674 = vld [vmem:[%s0 + $0x410] sm:$0xff]
  %v675 = vld [vmem:[%s0 + $0x418] sm:$0xff]
  %v676 = vld [vmem:[%s0 + $0x420] sm:$0xff]
  %v677 = vld [vmem:[%s0 + $0x428] sm:$0xff]
  %v678 = vld [vmem:[%s0 + $0x430] sm:$0xff]
  %v679 = vld [vmem:[%s0 + $0x438] sm:$0xff]
  %v680 = vld [vmem:[%s0 + $0x440] sm:$0xff]
  %v681 = vld [vmem:[%s0 + $0x448] sm:$0xff]
  %v682 = vld [vmem:[%s0 + $0x450] sm:$0xff]
  %v683 = vld [vmem:[%s0 + $0x458] sm:$0xff]
  %v684 = vld [vmem:[%s0 + $0x460] sm:$0xff]
  %v685 = vld [vmem:[%s0 + $0x468] sm:$0xff]
  %v686 = vld [vmem:[%s0 + $0x470] sm:$0xff]
  %v687 = vld [vmem:[%s0 + $0x478] sm:$0xff]
  %v688 = vld [vmem:[%s0 + $0x480] sm:$0xff]
  %v689 = vld [vmem:[%s0 + $0x488] sm:$0xff]
  %v690 = vld [vmem:[%s0 + $0x490] sm:$0xff]
  %v691 = vld [vmem:[%s0 + $0x498] sm:$0xff]
  %v692 = vld [vmem:[%s0 + $0x4a0] sm:$0xff]
  %v693 = vld [vmem:[%s0 + $0x4a8] sm:$0xff]
  %v694 = vld [vmem:[%s0 + $0x4b0] sm:$0xff]
  %v695 = vld [vmem:[%s0 + $0x4b8] sm:$0xff]
  %v696 = vld [vmem:[%s0 + $0x4c0] sm:$0xff]
  %v697 = vld [vmem:[%s0 + $0x4c8] sm:$0xff]
  %v698 = vld [vmem:[%s0 + $0x4d0] sm:$0xff]
  %v699 = vld [vmem:[%s0 + $0x4d8] sm:$0xff]
  %v700 = vld [vmem:[%s0 + $0x4e0] sm:$0xff]
  %v701 = vld [vmem:[%s0 + $0x4e8] sm:$0xff]
  %v702 = vld [vmem:[%s0 + $0x4f0] sm:$0xff]
  %v703 = vld [vmem:[%s0 + $0x4f8] sm:$0xff]
  %v704 = vld [vmem:[%s0 + $0x500] sm:$0xff]
  %v705 = vld [vmem:[%s0 + $0x508] sm:$0xff]
  %v706 = vld [vmem:[%s0 + $0x510] sm:$0xff]
  %v707 = vld [vmem:[%s0 + $0x518] sm:$0xff]
  %v708 = vld [vmem:[%s0 + $0x520] sm:$0xff]
  %v709 = vld [vmem:[%s0 + $0x528] sm:$0xff]
  %v710 = vld [vmem:[%s0 + $0x530] sm:$0xff]
  %v711 = vld [vmem:[%s0 + $0x538] sm:$0xff]
  %v880 = vunpack.c.l.b16 %v376
  %v881 = vunpack.c.h.b16 %v376
  %v882 = vunpack.c.l.b16 %v377
  %v883 = vunpack.c.h.b16 %v377
  %v884 = vunpack.c.l.b16 %v378
  %v885 = vunpack.c.h.b16 %v378
  %v886 = vunpack.c.l.b16 %v379
  %v887 = vunpack.c.h.b16 %v379
  %v888 = vunpack.c.l.b16 %v380
  %v889 = vunpack.c.h.b16 %v380
  %v890 = vunpack.c.l.b16 %v381
  %v891 = vunpack.c.l.b16 %v382
  %v892 = vunpack.c.h.b16 %v382
  %v893 = vunpack.c.l.b16 %v383
  %v894 = vunpack.c.h.b16 %v383
  %v895 = vunpack.c.l.b16 %v384
  %v896 = vunpack.c.h.b16 %v384
  %v897 = vunpack.c.l.b16 %v385
  %v898 = vunpack.c.h.b16 %v385
  %v899 = vunpack.c.l.b16 %v386
  %v900 = vunpack.c.h.b16 %v386
  %v901 = vunpack.c.l.b16 %v387
  %v902 = vunpack.c.l.b16 %v388
  %v903 = vunpack.c.h.b16 %v388
  %v904 = vunpack.c.l.b16 %v389
  %v905 = vunpack.c.h.b16 %v389
  %v906 = vunpack.c.l.b16 %v390
  %v907 = vunpack.c.h.b16 %v390
  %v908 = vunpack.c.l.b16 %v391
  %v909 = vunpack.c.h.b16 %v391
  %v910 = vunpack.c.l.b16 %v392
  %v911 = vunpack.c.h.b16 %v392
  %v912 = vunpack.c.l.b16 %v393
  %v913 = vunpack.c.l.b16 %v394
  %v914 = vunpack.c.h.b16 %v394
  %v915 = vunpack.c.l.b16 %v395
  %v916 = vunpack.c.h.b16 %v395
  %v917 = vunpack.c.l.b16 %v396
  %v918 = vunpack.c.h.b16 %v396
  %v919 = vunpack.c.l.b16 %v397
  %v920 = vunpack.c.h.b16 %v397
  %v921 = vunpack.c.l.b16 %v398
  %v922 = vunpack.c.h.b16 %v398
  %v923 = vunpack.c.l.b16 %v399
  %v924 = vunpack.c.l.b16 %v400
  %v925 = vunpack.c.h.b16 %v400
  %v926 = vunpack.c.l.b16 %v401
  %v927 = vunpack.c.h.b16 %v401
  %v928 = vunpack.c.l.b16 %v402
  %v929 = vunpack.c.h.b16 %v402
  %v930 = vunpack.c.l.b16 %v403
  %v931 = vunpack.c.h.b16 %v403
  %v932 = vunpack.c.l.b16 %v404
  %v933 = vunpack.c.h.b16 %v404
  %v934 = vunpack.c.l.b16 %v405
  %v935 = vunpack.c.l.b16 %v406
  %v936 = vunpack.c.h.b16 %v406
  %v937 = vunpack.c.l.b16 %v407
  %v938 = vunpack.c.h.b16 %v407
  %v939 = vunpack.c.l.b16 %v408
  %v940 = vunpack.c.h.b16 %v408
  %v941 = vunpack.c.l.b16 %v409
  %v942 = vunpack.c.h.b16 %v409
  %v943 = vunpack.c.l.b16 %v410
  %v944 = vunpack.c.h.b16 %v410
  %v945 = vunpack.c.l.b16 %v411
  %v946 = vunpack.c.l.b16 %v412
  %v947 = vunpack.c.h.b16 %v412
  %v948 = vunpack.c.l.b16 %v413
  %v949 = vunpack.c.h.b16 %v413
  %v950 = vunpack.c.l.b16 %v414
  %v951 = vunpack.c.h.b16 %v414
  %v952 = vunpack.c.l.b16 %v415
  %v953 = vunpack.c.h.b16 %v415
  %v954 = vunpack.c.l.b16 %v416
  %v955 = vunpack.c.h.b16 %v416
  %v956 = vunpack.c.l.b16 %v417
  %v957 = vunpack.c.l.b16 %v418
  %v958 = vunpack.c.h.b16 %v418
  %v959 = vunpack.c.l.b16 %v419
  %v960 = vunpack.c.h.b16 %v419
  %v961 = vunpack.c.l.b16 %v420
  %v962 = vunpack.c.h.b16 %v420
  %v963 = vunpack.c.l.b16 %v421
  %v964 = vunpack.c.h.b16 %v421
  %v965 = vunpack.c.l.b16 %v422
  %v966 = vunpack.c.h.b16 %v422
  %v967 = vunpack.c.l.b16 %v423
  %v968 = vunpack.c.l.b16 %v424
  %v969 = vunpack.c.h.b16 %v424
  %v970 = vunpack.c.l.b16 %v425
  %v971 = vunpack.c.h.b16 %v425
  %v972 = vunpack.c.l.b16 %v426
  %v973 = vunpack.c.h.b16 %v426
  %v974 = vunpack.c.l.b16 %v427
  %v975 = vunpack.c.h.b16 %v427
  %v976 = vunpack.c.l.b16 %v428
  %v977 = vunpack.c.h.b16 %v428
  %v978 = vunpack.c.l.b16 %v429
  %v979 = vunpack.c.l.b16 %v430
  %v980 = vunpack.c.h.b16 %v430
  %v981 = vunpack.c.l.b16 %v431
  %v982 = vunpack.c.h.b16 %v431
  %v983 = vunpack.c.l.b16 %v432
  %v984 = vunpack.c.h.b16 %v432
  %v985 = vunpack.c.l.b16 %v433
  %v986 = vunpack.c.h.b16 %v433
  %v987 = vunpack.c.l.b16 %v434
  %v988 = vunpack.c.h.b16 %v434
  %v989 = vunpack.c.l.b16 %v435
  %v990 = vunpack.c.l.b16 %v436
  %v991 = vunpack.c.h.b16 %v436
  %v992 = vunpack.c.l.b16 %v437
  %v993 = vunpack.c.h.b16 %v437
  %v994 = vunpack.c.l.b16 %v438
  %v995 = vunpack.c.h.b16 %v438
  %v996 = vunpack.c.l.b16 %v439
  %v997 = vunpack.c.h.b16 %v439
  %v998 = vunpack.c.l.b16 %v440
  %v999 = vunpack.c.h.b16 %v440
  %v1000 = vunpack.c.l.b16 %v441
  %v1001 = vunpack.c.l.b16 %v442
  %v1002 = vunpack.c.h.b16 %v442
  %v1003 = vunpack.c.l.b16 %v443
  %v1004 = vunpack.c.h.b16 %v443
  %v1005 = vunpack.c.l.b16 %v444
  %v1006 = vunpack.c.h.b16 %v444
  %v1007 = vunpack.c.l.b16 %v445
  %v1008 = vunpack.c.h.b16 %v445
  %v1009 = vunpack.c.l.b16 %v446
  %v1010 = vunpack.c.h.b16 %v446
  %v1011 = vunpack.c.l.b16 %v447
  %v1012 = vunpack.c.l.b16 %v448
  %v1013 = vunpack.c.h.b16 %v448
  %v1014 = vunpack.c.l.b16 %v449
  %v1015 = vunpack.c.h.b16 %v449
  %v1016 = vunpack.c.l.b16 %v450
  %v1017 = vunpack.c.h.b16 %v450
  %v1018 = vunpack.c.l.b16 %v451
  %v1019 = vunpack.c.h.b16 %v451
  %v1020 = vunpack.c.l.b16 %v452
  %v1021 = vunpack.c.h.b16 %v452
  %v1022 = vunpack.c.l.b16 %v453
  %v1023 = vunpack.c.l.b16 %v454
  %v1024 = vunpack.c.h.b16 %v454
  %v1025 = vunpack.c.l.b16 %v455
  %v1026 = vunpack.c.h.b16 %v455
  %v1027 = vunpack.c.l.b16 %v456
  %v1028 = vunpack.c.h.b16 %v456
  %v1029 = vunpack.c.l.b16 %v457
  %v1030 = vunpack.c.h.b16 %v457
  %v1031 = vunpack.c.l.b16 %v458
  %v1032 = vunpack.c.h.b16 %v458
  %v1033 = vunpack.c.l.b16 %v459
  %v1034 = vunpack.c.l.b16 %v460
  %v1035 = vunpack.c.h.b16 %v460
  %v1036 = vunpack.c.l.b16 %v461
  %v1037 = vunpack.c.h.b16 %v461
  %v1038 = vunpack.c.l.b16 %v462
  %v1039 = vunpack.c.h.b16 %v462
  %v1040 = vunpack.c.l.b16 %v463
  %v1041 = vunpack.c.h.b16 %v463
  %v1042 = vunpack.c.l.b16 %v464
  %v1043 = vunpack.c.h.b16 %v464
  %v1044 = vunpack.c.l.b16 %v465
  %v1045 = vunpack.c.l.b16 %v466
  %v1046 = vunpack.c.h.b16 %v466
  %v1047 = vunpack.c.l.b16 %v467
  %v1048 = vunpack.c.h.b16 %v467
  %v1049 = vunpack.c.l.b16 %v468
  %v1050 = vunpack.c.h.b16 %v468
  %v1051 = vunpack.c.l.b16 %v469
  %v1052 = vunpack.c.h.b16 %v469
  %v1053 = vunpack.c.l.b16 %v470
  %v1054 = vunpack.c.h.b16 %v470
  %v1055 = vunpack.c.l.b16 %v471
  %v1056 = vunpack.c.l.b16 %v472
  %v1057 = vunpack.c.h.b16 %v472
  %v1058 = vunpack.c.l.b16 %v473
  %v1059 = vunpack.c.h.b16 %v473
  %v1060 = vunpack.c.l.b16 %v474
  %v1061 = vunpack.c.h.b16 %v474
  %v1062 = vunpack.c.l.b16 %v475
  %v1063 = vunpack.c.h.b16 %v475
  %v1064 = vunpack.c.l.b16 %v476
  %v1065 = vunpack.c.h.b16 %v476
  %v1066 = vunpack.c.l.b16 %v477
  %v1067 = vunpack.c.l.b16 %v478
  %v1068 = vunpack.c.h.b16 %v478
  %v1069 = vunpack.c.l.b16 %v479
  %v1070 = vunpack.c.h.b16 %v479
  %v1071 = vunpack.c.l.b16 %v480
  %v1072 = vunpack.c.h.b16 %v480
  %v1073 = vunpack.c.l.b16 %v481
  %v1074 = vunpack.c.h.b16 %v481
  %v1075 = vunpack.c.l.b16 %v482
  %v1076 = vunpack.c.h.b16 %v482
  %v1077 = vunpack.c.l.b16 %v483
  %v1078 = vunpack.c.l.b16 %v484
  %v1079 = vunpack.c.h.b16 %v484
  %v1080 = vunpack.c.l.b16 %v485
  %v1081 = vunpack.c.h.b16 %v485
  %v1082 = vunpack.c.l.b16 %v486
  %v1083 = vunpack.c.h.b16 %v486
  %v1084 = vunpack.c.l.b16 %v487
  %v1085 = vunpack.c.h.b16 %v487
  %v1086 = vunpack.c.l.b16 %v488
  %v1087 = vunpack.c.h.b16 %v488
  %v1088 = vunpack.c.l.b16 %v489
  %v1089 = vunpack.c.l.b16 %v490
  %v1090 = vunpack.c.h.b16 %v490
  %v1091 = vunpack.c.l.b16 %v491
  %v1092 = vunpack.c.h.b16 %v491
  %v1093 = vunpack.c.l.b16 %v492
  %v1094 = vunpack.c.h.b16 %v492
  %v1095 = vunpack.c.l.b16 %v493
  %v1096 = vunpack.c.h.b16 %v493
  %v1097 = vunpack.c.l.b16 %v494
  %v1098 = vunpack.c.h.b16 %v494
  %v1099 = vunpack.c.l.b16 %v495
  %v1100 = vunpack.c.l.b16 %v496
  %v1101 = vunpack.c.h.b16 %v496
  %v1102 = vunpack.c.l.b16 %v497
  %v1103 = vunpack.c.h.b16 %v497
  %v1104 = vunpack.c.l.b16 %v498
  %v1105 = vunpack.c.h.b16 %v498
  %v1106 = vunpack.c.l.b16 %v499
  %v1107 = vunpack.c.h.b16 %v499
  %v1108 = vunpack.c.l.b16 %v500
  %v1109 = vunpack.c.h.b16 %v500
  %v1110 = vunpack.c.l.b16 %v501
  %v1111 = vunpack.c.l.b16 %v502
  %v1112 = vunpack.c.h.b16 %v502
  %v1113 = vunpack.c.l.b16 %v503
  %v1114 = vunpack.c.h.b16 %v503
  %v1115 = vunpack.c.l.b16 %v504
  %v1116 = vunpack.c.h.b16 %v504
  %v1117 = vunpack.c.l.b16 %v505
  %v1118 = vunpack.c.h.b16 %v505
  %v1119 = vunpack.c.l.b16 %v506
  %v1120 = vunpack.c.h.b16 %v506
  %v1121 = vunpack.c.l.b16 %v507
  %v1122 = vunpack.c.l.b16 %v508
  %v1123 = vunpack.c.h.b16 %v508
  %v1124 = vunpack.c.l.b16 %v509
  %v1125 = vunpack.c.h.b16 %v509
  %v1126 = vunpack.c.l.b16 %v510
  %v1127 = vunpack.c.h.b16 %v510
  %v1128 = vunpack.c.l.b16 %v511
  %v1129 = vunpack.c.h.b16 %v511
  %v1130 = vunpack.c.l.b16 %v512
  %v1131 = vunpack.c.h.b16 %v512
  %v1132 = vunpack.c.l.b16 %v513
  %v1133 = vunpack.c.l.b16 %v514
  %v1134 = vunpack.c.h.b16 %v514
  %v1135 = vunpack.c.l.b16 %v515
  %v1136 = vunpack.c.h.b16 %v515
  %v1137 = vunpack.c.l.b16 %v516
  %v1138 = vunpack.c.h.b16 %v516
  %v1139 = vunpack.c.l.b16 %v517
  %v1140 = vunpack.c.h.b16 %v517
  %v1141 = vunpack.c.l.b16 %v518
  %v1142 = vunpack.c.h.b16 %v518
  %v1143 = vunpack.c.l.b16 %v519
  %v1144 = vunpack.c.l.b16 %v520
  %v1145 = vunpack.c.h.b16 %v520
  %v1146 = vunpack.c.l.b16 %v521
  %v1147 = vunpack.c.h.b16 %v521
  %v1148 = vunpack.c.l.b16 %v522
  %v1149 = vunpack.c.h.b16 %v522
  %v1150 = vunpack.c.l.b16 %v523
  %v1151 = vunpack.c.h.b16 %v523
  %v1152 = vunpack.c.l.b16 %v524
  %v1153 = vunpack.c.h.b16 %v524
  %v1154 = vunpack.c.l.b16 %v525
  %v1155 = vunpack.c.l.b16 %v526
  %v1156 = vunpack.c.h.b16 %v526
  %v1157 = vunpack.c.l.b16 %v527
  %v1158 = vunpack.c.h.b16 %v527
  %v1159 = vunpack.c.l.b16 %v528
  %v1160 = vunpack.c.h.b16 %v528
  %v1161 = vunpack.c.l.b16 %v529
  %v1162 = vunpack.c.h.b16 %v529
  %v1163 = vunpack.c.l.b16 %v530
  %v1164 = vunpack.c.h.b16 %v530
  %v1165 = vunpack.c.l.b16 %v531
  %v1166 = vunpack.c.l.b16 %v532
  %v1167 = vunpack.c.h.b16 %v532
  %v1168 = vunpack.c.l.b16 %v533
  %v1169 = vunpack.c.h.b16 %v533
  %v1170 = vunpack.c.l.b16 %v534
  %v1171 = vunpack.c.h.b16 %v534
  %v1172 = vunpack.c.l.b16 %v535
  %v1173 = vunpack.c.h.b16 %v535
  %v1174 = vunpack.c.l.b16 %v536
  %v1175 = vunpack.c.h.b16 %v536
  %v1176 = vunpack.c.l.b16 %v537
  %v1177 = vunpack.c.l.b16 %v538
  %v1178 = vunpack.c.h.b16 %v538
  %v1179 = vunpack.c.l.b16 %v539
  %v1180 = vunpack.c.h.b16 %v539
  %v1181 = vunpack.c.l.b16 %v540
  %v1182 = vunpack.c.h.b16 %v540
  %v1183 = vunpack.c.l.b16 %v541
  %v1184 = vunpack.c.h.b16 %v541
  %v1185 = vunpack.c.l.b16 %v542
  %v1186 = vunpack.c.h.b16 %v542
  %v1187 = vunpack.c.l.b16 %v543
  %v1188 = vpack.c.b16 %v891, %v880
  %v1189 = vpack.c.b16 %v892, %v881
  %v1190 = vpack.c.b16 %v893, %v882
  %v1191 = vpack.c.b16 %v894, %v883
  %v1192 = vpack.c.b16 %v895, %v884
  %v1193 = vpack.c.b16 %v896, %v885
  %v1194 = vpack.c.b16 %v897, %v886
  %v1195 = vpack.c.b16 %v898, %v887
  %v1196 = vpack.c.b16 %v899, %v888
  %v1197 = vpack.c.b16 %v900, %v889
  %v1198 = vpack.c.b16 %v901, %v890
  %v1199 = vpack.c.b16 %v913, %v902
  %v1200 = vpack.c.b16 %v914, %v903
  %v1201 = vpack.c.b16 %v915, %v904
  %v1202 = vpack.c.b16 %v916, %v905
  %v1203 = vpack.c.b16 %v917, %v906
  %v1204 = vpack.c.b16 %v918, %v907
  %v1205 = vpack.c.b16 %v919, %v908
  %v1206 = vpack.c.b16 %v920, %v909
  %v1207 = vpack.c.b16 %v921, %v910
  %v1208 = vpack.c.b16 %v922, %v911
  %v1209 = vpack.c.b16 %v923, %v912
  %v1210 = vpack.c.b16 %v935, %v924
  %v1211 = vpack.c.b16 %v936, %v925
  %v1212 = vpack.c.b16 %v937, %v926
  %v1213 = vpack.c.b16 %v938, %v927
  %v1214 = vpack.c.b16 %v939, %v928
  %v1215 = vpack.c.b16 %v940, %v929
  %v1216 = vpack.c.b16 %v941, %v930
  %v1217 = vpack.c.b16 %v942, %v931
  %v1218 = vpack.c.b16 %v943, %v932
  %v1219 = vpack.c.b16 %v944, %v933
  %v1220 = vpack.c.b16 %v945, %v934
  %v1221 = vpack.c.b16 %v957, %v946
  %v1222 = vpack.c.b16 %v958, %v947
  %v1223 = vpack.c.b16 %v959, %v948
  %v1224 = vpack.c.b16 %v960, %v949
  %v1225 = vpack.c.b16 %v961, %v950
  %v1226 = vpack.c.b16 %v962, %v951
  %v1227 = vpack.c.b16 %v963, %v952
  %v1228 = vpack.c.b16 %v964, %v953
  %v1229 = vpack.c.b16 %v965, %v954
  %v1230 = vpack.c.b16 %v966, %v955
  %v1231 = vpack.c.b16 %v967, %v956
  %v1232 = vpack.c.b16 %v979, %v968
  %v1233 = vpack.c.b16 %v980, %v969
  %v1234 = vpack.c.b16 %v981, %v970
  %v1235 = vpack.c.b16 %v982, %v971
  %v1236 = vpack.c.b16 %v983, %v972
  %v1237 = vpack.c.b16 %v984, %v973
  %v1238 = vpack.c.b16 %v985, %v974
  %v1239 = vpack.c.b16 %v986, %v975
  %v1240 = vpack.c.b16 %v987, %v976
  %v1241 = vpack.c.b16 %v988, %v977
  %v1242 = vpack.c.b16 %v989, %v978
  %v1243 = vpack.c.b16 %v1001, %v990
  %v1244 = vpack.c.b16 %v1002, %v991
  %v1245 = vpack.c.b16 %v1003, %v992
  %v1246 = vpack.c.b16 %v1004, %v993
  %v1247 = vpack.c.b16 %v1005, %v994
  %v1248 = vpack.c.b16 %v1006, %v995
  %v1249 = vpack.c.b16 %v1007, %v996
  %v1250 = vpack.c.b16 %v1008, %v997
  %v1251 = vpack.c.b16 %v1009, %v998
  %v1252 = vpack.c.b16 %v1010, %v999
  %v1253 = vpack.c.b16 %v1011, %v1000
  %v1254 = vpack.c.b16 %v1023, %v1012
  %v1255 = vpack.c.b16 %v1024, %v1013
  %v1256 = vpack.c.b16 %v1025, %v1014
  %v1257 = vpack.c.b16 %v1026, %v1015
  %v1258 = vpack.c.b16 %v1027, %v1016
  %v1259 = vpack.c.b16 %v1028, %v1017
  %v1260 = vpack.c.b16 %v1029, %v1018
  %v1261 = vpack.c.b16 %v1030, %v1019
  %v1262 = vpack.c.b16 %v1031, %v1020
  %v1263 = vpack.c.b16 %v1032, %v1021
  %v1264 = vpack.c.b16 %v1033, %v1022
  %v1265 = vpack.c.b16 %v1045, %v1034
  %v1266 = vpack.c.b16 %v1046, %v1035
  %v1267 = vpack.c.b16 %v1047, %v1036
  %v1268 = vpack.c.b16 %v1048, %v1037
  %v1269 = vpack.c.b16 %v1049, %v1038
  %v1270 = vpack.c.b16 %v1050, %v1039
  %v1271 = vpack.c.b16 %v1051, %v1040
  %v1272 = vpack.c.b16 %v1052, %v1041
  %v1273 = vpack.c.b16 %v1053, %v1042
  %v1274 = vpack.c.b16 %v1054, %v1043
  %v1275 = vpack.c.b16 %v1055, %v1044
  %v1276 = vpack.c.b16 %v1067, %v1056
  %v1277 = vpack.c.b16 %v1068, %v1057
  %v1278 = vpack.c.b16 %v1069, %v1058
  %v1279 = vpack.c.b16 %v1070, %v1059
  %v1280 = vpack.c.b16 %v1071, %v1060
  %v1281 = vpack.c.b16 %v1072, %v1061
  %v1282 = vpack.c.b16 %v1073, %v1062
  %v1283 = vpack.c.b16 %v1074, %v1063
  %v1284 = vpack.c.b16 %v1075, %v1064
  %v1285 = vpack.c.b16 %v1076, %v1065
  %v1286 = vpack.c.b16 %v1077, %v1066
  %v1287 = vpack.c.b16 %v1089, %v1078
  %v1288 = vpack.c.b16 %v1090, %v1079
  %v1289 = vpack.c.b16 %v1091, %v1080
  %v1290 = vpack.c.b16 %v1092, %v1081
  %v1291 = vpack.c.b16 %v1093, %v1082
  %v1292 = vpack.c.b16 %v1094, %v1083
  %v1293 = vpack.c.b16 %v1095, %v1084
  %v1294 = vpack.c.b16 %v1096, %v1085
  %v1295 = vpack.c.b16 %v1097, %v1086
  %v1296 = vpack.c.b16 %v1098, %v1087
  %v1297 = vpack.c.b16 %v1099, %v1088
  %v1298 = vpack.c.b16 %v1111, %v1100
  %v1299 = vpack.c.b16 %v1112, %v1101
  %v1300 = vpack.c.b16 %v1113, %v1102
  %v1301 = vpack.c.b16 %v1114, %v1103
  %v1302 = vpack.c.b16 %v1115, %v1104
  %v1303 = vpack.c.b16 %v1116, %v1105
  %v1304 = vpack.c.b16 %v1117, %v1106
  %v1305 = vpack.c.b16 %v1118, %v1107
  %v1306 = vpack.c.b16 %v1119, %v1108
  %v1307 = vpack.c.b16 %v1120, %v1109
  %v1308 = vpack.c.b16 %v1121, %v1110
  %v1309 = vpack.c.b16 %v1133, %v1122
  %v1310 = vpack.c.b16 %v1134, %v1123
  %v1311 = vpack.c.b16 %v1135, %v1124
  %v1312 = vpack.c.b16 %v1136, %v1125
  %v1313 = vpack.c.b16 %v1137, %v1126
  %v1314 = vpack.c.b16 %v1138, %v1127
  %v1315 = vpack.c.b16 %v1139, %v1128
  %v1316 = vpack.c.b16 %v1140, %v1129
  %v1317 = vpack.c.b16 %v1141, %v1130
  %v1318 = vpack.c.b16 %v1142, %v1131
  %v1319 = vpack.c.b16 %v1143, %v1132
  %v1320 = vpack.c.b16 %v1155, %v1144
  %v1321 = vpack.c.b16 %v1156, %v1145
  %v1322 = vpack.c.b16 %v1157, %v1146
  %v1323 = vpack.c.b16 %v1158, %v1147
  %v1324 = vpack.c.b16 %v1159, %v1148
  %v1325 = vpack.c.b16 %v1160, %v1149
  %v1326 = vpack.c.b16 %v1161, %v1150
  %v1327 = vpack.c.b16 %v1162, %v1151
  %v1328 = vpack.c.b16 %v1163, %v1152
  %v1329 = vpack.c.b16 %v1164, %v1153
  %v1330 = vpack.c.b16 %v1165, %v1154
  %v1331 = vpack.c.b16 %v1177, %v1166
  %v1332 = vpack.c.b16 %v1178, %v1167
  %v1333 = vpack.c.b16 %v1179, %v1168
  %v1334 = vpack.c.b16 %v1180, %v1169
  %v1335 = vpack.c.b16 %v1181, %v1170
  %v1336 = vpack.c.b16 %v1182, %v1171
  %v1337 = vpack.c.b16 %v1183, %v1172
  %v1338 = vpack.c.b16 %v1184, %v1173
  %v1339 = vpack.c.b16 %v1185, %v1174
  %v1340 = vpack.c.b16 %v1186, %v1175
  %v1341 = vpack.c.b16 %v1187, %v1176
  %v1650 = vunpack.c.l.b16 %v544
  %v1651 = vunpack.c.h.b16 %v544
  %v1652 = vunpack.c.l.b16 %v545
  %v1653 = vunpack.c.h.b16 %v545
  %v1654 = vunpack.c.l.b16 %v546
  %v1655 = vunpack.c.h.b16 %v546
  %v1656 = vunpack.c.l.b16 %v547
  %v1657 = vunpack.c.h.b16 %v547
  %v1658 = vunpack.c.l.b16 %v548
  %v1659 = vunpack.c.h.b16 %v548
  %v1660 = vunpack.c.l.b16 %v549
  %v1661 = vunpack.c.h.b16 %v549
  %v1662 = vunpack.c.l.b16 %v550
  %v1663 = vunpack.c.h.b16 %v550
  %v1664 = vunpack.c.l.b16 %v551
  %v1665 = vunpack.c.h.b16 %v551
  %v1666 = vunpack.c.l.b16 %v552
  %v1667 = vunpack.c.h.b16 %v552
  %v1668 = vunpack.c.l.b16 %v553
  %v1669 = vunpack.c.h.b16 %v553
  %v1670 = vunpack.c.l.b16 %v554
  %v1671 = vunpack.c.h.b16 %v554
  %v1672 = vunpack.c.l.b16 %v555
  %v1673 = vunpack.c.h.b16 %v555
  %v1674 = vunpack.c.l.b16 %v556
  %v1675 = vunpack.c.h.b16 %v556
  %v1676 = vunpack.c.l.b16 %v557
  %v1677 = vunpack.c.h.b16 %v557
  %v1678 = vunpack.c.l.b16 %v558
  %v1679 = vunpack.c.h.b16 %v558
  %v1680 = vunpack.c.l.b16 %v559
  %v1681 = vunpack.c.h.b16 %v559
  %v1682 = vunpack.c.l.b16 %v560
  %v1683 = vunpack.c.h.b16 %v560
  %v1684 = vunpack.c.l.b16 %v561
  %v1685 = vunpack.c.h.b16 %v561
  %v1686 = vunpack.c.l.b16 %v562
  %v1687 = vunpack.c.h.b16 %v562
  %v1688 = vunpack.c.l.b16 %v563
  %v1689 = vunpack.c.h.b16 %v563
  %v1690 = vunpack.c.l.b16 %v564
  %v1691 = vunpack.c.h.b16 %v564
  %v1692 = vunpack.c.l.b16 %v565
  %v1693 = vunpack.c.h.b16 %v565
  %v1694 = vunpack.c.l.b16 %v566
  %v1695 = vunpack.c.h.b16 %v566
  %v1696 = vunpack.c.l.b16 %v567
  %v1697 = vunpack.c.h.b16 %v567
  %v1698 = vunpack.c.l.b16 %v568
  %v1699 = vunpack.c.h.b16 %v568
  %v1700 = vunpack.c.l.b16 %v569
  %v1701 = vunpack.c.h.b16 %v569
  %v1702 = vunpack.c.l.b16 %v570
  %v1703 = vunpack.c.h.b16 %v570
  %v1704 = vunpack.c.l.b16 %v571
  %v1705 = vunpack.c.h.b16 %v571
  %v1706 = vunpack.c.l.b16 %v572
  %v1707 = vunpack.c.h.b16 %v572
  %v1708 = vunpack.c.l.b16 %v573
  %v1709 = vunpack.c.h.b16 %v573
  %v1710 = vunpack.c.l.b16 %v574
  %v1711 = vunpack.c.h.b16 %v574
  %v1712 = vunpack.c.l.b16 %v575
  %v1713 = vunpack.c.h.b16 %v575
  %v1714 = vunpack.c.l.b16 %v576
  %v1715 = vunpack.c.h.b16 %v576
  %v1716 = vunpack.c.l.b16 %v577
  %v1717 = vunpack.c.h.b16 %v577
  %v1718 = vunpack.c.l.b16 %v578
  %v1719 = vunpack.c.h.b16 %v578
  %v1720 = vunpack.c.l.b16 %v579
  %v1721 = vunpack.c.h.b16 %v579
  %v1722 = vunpack.c.l.b16 %v580
  %v1723 = vunpack.c.h.b16 %v580
  %v1724 = vunpack.c.l.b16 %v581
  %v1725 = vunpack.c.h.b16 %v581
  %v1726 = vunpack.c.l.b16 %v582
  %v1727 = vunpack.c.h.b16 %v582
  %v1728 = vunpack.c.l.b16 %v583
  %v1729 = vunpack.c.h.b16 %v583
  %v1730 = vunpack.c.l.b16 %v584
  %v1731 = vunpack.c.h.b16 %v584
  %v1732 = vunpack.c.l.b16 %v585
  %v1733 = vunpack.c.h.b16 %v585
  %v1734 = vunpack.c.l.b16 %v586
  %v1735 = vunpack.c.h.b16 %v586
  %v1736 = vunpack.c.l.b16 %v587
  %v1737 = vunpack.c.h.b16 %v587
  %v1738 = vunpack.c.l.b16 %v588
  %v1739 = vunpack.c.h.b16 %v588
  %v1740 = vunpack.c.l.b16 %v589
  %v1741 = vunpack.c.h.b16 %v589
  %v1742 = vunpack.c.l.b16 %v590
  %v1743 = vunpack.c.h.b16 %v590
  %v1744 = vunpack.c.l.b16 %v591
  %v1745 = vunpack.c.h.b16 %v591
  %v1746 = vunpack.c.l.b16 %v592
  %v1747 = vunpack.c.h.b16 %v592
  %v1748 = vunpack.c.l.b16 %v593
  %v1749 = vunpack.c.h.b16 %v593
  %v1750 = vunpack.c.l.b16 %v594
  %v1751 = vunpack.c.h.b16 %v594
  %v1752 = vunpack.c.l.b16 %v595
  %v1753 = vunpack.c.h.b16 %v595
  %v1754 = vunpack.c.l.b16 %v596
  %v1755 = vunpack.c.h.b16 %v596
  %v1756 = vunpack.c.l.b16 %v597
  %v1757 = vunpack.c.h.b16 %v597
  %v1758 = vunpack.c.l.b16 %v598
  %v1759 = vunpack.c.h.b16 %v598
  %v1760 = vunpack.c.l.b16 %v599
  %v1761 = vunpack.c.h.b16 %v599
  %v1762 = vunpack.c.l.b16 %v600
  %v1763 = vunpack.c.h.b16 %v600
  %v1764 = vunpack.c.l.b16 %v601
  %v1765 = vunpack.c.h.b16 %v601
  %v1766 = vunpack.c.l.b16 %v602
  %v1767 = vunpack.c.h.b16 %v602
  %v1768 = vunpack.c.l.b16 %v603
  %v1769 = vunpack.c.h.b16 %v603
  %v1770 = vunpack.c.l.b16 %v604
  %v1771 = vunpack.c.h.b16 %v604
  %v1772 = vunpack.c.l.b16 %v605
  %v1773 = vunpack.c.h.b16 %v605
  %v1774 = vunpack.c.l.b16 %v606
  %v1775 = vunpack.c.h.b16 %v606
  %v1776 = vunpack.c.l.b16 %v607
  %v1777 = vunpack.c.h.b16 %v607
  %v1778 = vunpack.c.l.b16 %v608
  %v1779 = vunpack.c.h.b16 %v608
  %v1780 = vunpack.c.l.b16 %v609
  %v1781 = vunpack.c.h.b16 %v609
  %v1782 = vunpack.c.l.b16 %v610
  %v1783 = vunpack.c.h.b16 %v610
  %v1784 = vunpack.c.l.b16 %v611
  %v1785 = vunpack.c.h.b16 %v611
  %v1786 = vunpack.c.l.b16 %v612
  %v1787 = vunpack.c.h.b16 %v612
  %v1788 = vunpack.c.l.b16 %v613
  %v1789 = vunpack.c.h.b16 %v613
  %v1790 = vunpack.c.l.b16 %v614
  %v1791 = vunpack.c.h.b16 %v614
  %v1792 = vunpack.c.l.b16 %v615
  %v1793 = vunpack.c.h.b16 %v615
  %v1794 = vunpack.c.l.b16 %v616
  %v1795 = vunpack.c.h.b16 %v616
  %v1796 = vunpack.c.l.b16 %v617
  %v1797 = vunpack.c.h.b16 %v617
  %v1798 = vunpack.c.l.b16 %v618
  %v1799 = vunpack.c.h.b16 %v618
  %v1800 = vunpack.c.l.b16 %v619
  %v1801 = vunpack.c.h.b16 %v619
  %v1802 = vunpack.c.l.b16 %v620
  %v1803 = vunpack.c.h.b16 %v620
  %v1804 = vunpack.c.l.b16 %v621
  %v1805 = vunpack.c.h.b16 %v621
  %v1806 = vunpack.c.l.b16 %v622
  %v1807 = vunpack.c.h.b16 %v622
  %v1808 = vunpack.c.l.b16 %v623
  %v1809 = vunpack.c.h.b16 %v623
  %v1810 = vunpack.c.l.b16 %v624
  %v1811 = vunpack.c.h.b16 %v624
  %v1812 = vunpack.c.l.b16 %v625
  %v1813 = vunpack.c.h.b16 %v625
  %v1814 = vunpack.c.l.b16 %v626
  %v1815 = vunpack.c.h.b16 %v626
  %v1816 = vunpack.c.l.b16 %v627
  %v1817 = vunpack.c.h.b16 %v627
  %v1818 = vunpack.c.l.b16 %v628
  %v1819 = vunpack.c.h.b16 %v628
  %v1820 = vunpack.c.l.b16 %v629
  %v1821 = vunpack.c.h.b16 %v629
  %v1822 = vunpack.c.l.b16 %v630
  %v1823 = vunpack.c.h.b16 %v630
  %v1824 = vunpack.c.l.b16 %v631
  %v1825 = vunpack.c.h.b16 %v631
  %v1826 = vunpack.c.l.b16 %v632
  %v1827 = vunpack.c.h.b16 %v632
  %v1828 = vunpack.c.l.b16 %v633
  %v1829 = vunpack.c.h.b16 %v633
  %v1830 = vunpack.c.l.b16 %v634
  %v1831 = vunpack.c.h.b16 %v634
  %v1832 = vunpack.c.l.b16 %v635
  %v1833 = vunpack.c.h.b16 %v635
  %v1834 = vunpack.c.l.b16 %v636
  %v1835 = vunpack.c.h.b16 %v636
  %v1836 = vunpack.c.l.b16 %v637
  %v1837 = vunpack.c.h.b16 %v637
  %v1838 = vunpack.c.l.b16 %v638
  %v1839 = vunpack.c.h.b16 %v638
  %v1840 = vunpack.c.l.b16 %v639
  %v1841 = vunpack.c.h.b16 %v639
  %v1842 = vunpack.c.l.b16 %v640
  %v1843 = vunpack.c.h.b16 %v640
  %v1844 = vunpack.c.l.b16 %v641
  %v1845 = vunpack.c.h.b16 %v641
  %v1846 = vunpack.c.l.b16 %v642
  %v1847 = vunpack.c.h.b16 %v642
  %v1848 = vunpack.c.l.b16 %v643
  %v1849 = vunpack.c.h.b16 %v643
  %v1850 = vunpack.c.l.b16 %v644
  %v1851 = vunpack.c.h.b16 %v644
  %v1852 = vunpack.c.l.b16 %v645
  %v1853 = vunpack.c.h.b16 %v645
  %v1854 = vunpack.c.l.b16 %v646
  %v1855 = vunpack.c.h.b16 %v646
  %v1856 = vunpack.c.l.b16 %v647
  %v1857 = vunpack.c.h.b16 %v647
  %v1858 = vunpack.c.l.b16 %v648
  %v1859 = vunpack.c.h.b16 %v648
  %v1860 = vunpack.c.l.b16 %v649
  %v1861 = vunpack.c.h.b16 %v649
  %v1862 = vunpack.c.l.b16 %v650
  %v1863 = vunpack.c.h.b16 %v650
  %v1864 = vunpack.c.l.b16 %v651
  %v1865 = vunpack.c.h.b16 %v651
  %v1866 = vunpack.c.l.b16 %v652
  %v1867 = vunpack.c.h.b16 %v652
  %v1868 = vunpack.c.l.b16 %v653
  %v1869 = vunpack.c.h.b16 %v653
  %v1870 = vunpack.c.l.b16 %v654
  %v1871 = vunpack.c.h.b16 %v654
  %v1872 = vunpack.c.l.b16 %v655
  %v1873 = vunpack.c.h.b16 %v655
  %v1874 = vunpack.c.l.b16 %v656
  %v1875 = vunpack.c.h.b16 %v656
  %v1876 = vunpack.c.l.b16 %v657
  %v1877 = vunpack.c.h.b16 %v657
  %v1878 = vunpack.c.l.b16 %v658
  %v1879 = vunpack.c.h.b16 %v658
  %v1880 = vunpack.c.l.b16 %v659
  %v1881 = vunpack.c.h.b16 %v659
  %v1882 = vunpack.c.l.b16 %v660
  %v1883 = vunpack.c.h.b16 %v660
  %v1884 = vunpack.c.l.b16 %v661
  %v1885 = vunpack.c.h.b16 %v661
  %v1886 = vunpack.c.l.b16 %v662
  %v1887 = vunpack.c.h.b16 %v662
  %v1888 = vunpack.c.l.b16 %v663
  %v1889 = vunpack.c.h.b16 %v663
  %v1890 = vunpack.c.l.b16 %v664
  %v1891 = vunpack.c.h.b16 %v664
  %v1892 = vunpack.c.l.b16 %v665
  %v1893 = vunpack.c.h.b16 %v665
  %v1894 = vunpack.c.l.b16 %v666
  %v1895 = vunpack.c.h.b16 %v666
  %v1896 = vunpack.c.l.b16 %v667
  %v1897 = vunpack.c.h.b16 %v667
  %v1898 = vunpack.c.l.b16 %v668
  %v1899 = vunpack.c.h.b16 %v668
  %v1900 = vunpack.c.l.b16 %v669
  %v1901 = vunpack.c.h.b16 %v669
  %v1902 = vunpack.c.l.b16 %v670
  %v1903 = vunpack.c.h.b16 %v670
  %v1904 = vunpack.c.l.b16 %v671
  %v1905 = vunpack.c.h.b16 %v671
  %v1906 = vunpack.c.l.b16 %v672
  %v1907 = vunpack.c.h.b16 %v672
  %v1908 = vunpack.c.l.b16 %v673
  %v1909 = vunpack.c.h.b16 %v673
  %v1910 = vunpack.c.l.b16 %v674
  %v1911 = vunpack.c.h.b16 %v674
  %v1912 = vunpack.c.l.b16 %v675
  %v1913 = vunpack.c.h.b16 %v675
  %v1914 = vunpack.c.l.b16 %v676
  %v1915 = vunpack.c.h.b16 %v676
  %v1916 = vunpack.c.l.b16 %v677
  %v1917 = vunpack.c.h.b16 %v677
  %v1918 = vunpack.c.l.b16 %v678
  %v1919 = vunpack.c.h.b16 %v678
  %v1920 = vunpack.c.l.b16 %v679
  %v1921 = vunpack.c.h.b16 %v679
  %v1922 = vunpack.c.l.b16 %v680
  %v1923 = vunpack.c.h.b16 %v680
  %v1924 = vunpack.c.l.b16 %v681
  %v1925 = vunpack.c.h.b16 %v681
  %v1926 = vunpack.c.l.b16 %v682
  %v1927 = vunpack.c.h.b16 %v682
  %v1928 = vunpack.c.l.b16 %v683
  %v1929 = vunpack.c.h.b16 %v683
  %v1930 = vunpack.c.l.b16 %v684
  %v1931 = vunpack.c.h.b16 %v684
  %v1932 = vunpack.c.l.b16 %v685
  %v1933 = vunpack.c.h.b16 %v685
  %v1934 = vunpack.c.l.b16 %v686
  %v1935 = vunpack.c.h.b16 %v686
  %v1936 = vunpack.c.l.b16 %v687
  %v1937 = vunpack.c.h.b16 %v687
  %v1938 = vunpack.c.l.b16 %v688
  %v1939 = vunpack.c.h.b16 %v688
  %v1940 = vunpack.c.l.b16 %v689
  %v1941 = vunpack.c.h.b16 %v689
  %v1942 = vunpack.c.l.b16 %v690
  %v1943 = vunpack.c.h.b16 %v690
  %v1944 = vunpack.c.l.b16 %v691
  %v1945 = vunpack.c.h.b16 %v691
  %v1946 = vunpack.c.l.b16 %v692
  %v1947 = vunpack.c.h.b16 %v692
  %v1948 = vunpack.c.l.b16 %v693
  %v1949 = vunpack.c.h.b16 %v693
  %v1950 = vunpack.c.l.b16 %v694
  %v1951 = vunpack.c.h.b16 %v694
  %v1952 = vunpack.c.l.b16 %v695
  %v1953 = vunpack.c.h.b16 %v695
  %v1954 = vunpack.c.l.b16 %v696
  %v1955 = vunpack.c.h.b16 %v696
  %v1956 = vunpack.c.l.b16 %v697
  %v1957 = vunpack.c.h.b16 %v697
  %v1958 = vunpack.c.l.b16 %v698
  %v1959 = vunpack.c.h.b16 %v698
  %v1960 = vunpack.c.l.b16 %v699
  %v1961 = vunpack.c.h.b16 %v699
  %v1962 = vunpack.c.l.b16 %v700
  %v1963 = vunpack.c.h.b16 %v700
  %v1964 = vunpack.c.l.b16 %v701
  %v1965 = vunpack.c.h.b16 %v701
  %v1966 = vunpack.c.l.b16 %v702
  %v1967 = vunpack.c.h.b16 %v702
  %v1968 = vunpack.c.l.b16 %v703
  %v1969 = vunpack.c.h.b16 %v703
  %v1970 = vunpack.c.l.b16 %v704
  %v1971 = vunpack.c.h.b16 %v704
  %v1972 = vunpack.c.l.b16 %v705
  %v1973 = vunpack.c.h.b16 %v705
  %v1974 = vunpack.c.l.b16 %v706
  %v1975 = vunpack.c.h.b16 %v706
  %v1976 = vunpack.c.l.b16 %v707
  %v1977 = vunpack.c.h.b16 %v707
  %v1978 = vunpack.c.l.b16 %v708
  %v1979 = vunpack.c.h.b16 %v708
  %v1980 = vunpack.c.l.b16 %v709
  %v1981 = vunpack.c.h.b16 %v709
  %v1982 = vunpack.c.l.b16 %v710
  %v1983 = vunpack.c.h.b16 %v710
  %v1984 = vunpack.c.l.b16 %v711
  %v1985 = vunpack.c.h.b16 %v711
  %v1986 = vpack.c.b16 %v1652, %v1650
  %v1987 = vpack.c.b16 %v1653, %v1651
  %v1988 = vpack.c.b16 %v1656, %v1654
  %v1989 = vpack.c.b16 %v1657, %v1655
  %v1990 = vpack.c.b16 %v1660, %v1658
  %v1991 = vpack.c.b16 %v1661, %v1659
  %v1992 = vpack.c.b16 %v1664, %v1662
  %v1993 = vpack.c.b16 %v1665, %v1663
  %v1994 = vpack.c.b16 %v1668, %v1666
  %v1995 = vpack.c.b16 %v1669, %v1667
  %v1996 = vpack.c.b16 %v1672, %v1670
  %v1997 = vpack.c.b16 %v1673, %v1671
  %v1998 = vpack.c.b16 %v1676, %v1674
  %v1999 = vpack.c.b16 %v1677, %v1675
  %v2000 = vpack.c.b16 %v1680, %v1678
  %v2001 = vpack.c.b16 %v1681, %v1679
  %v2002 = vpack.c.b16 %v1684, %v1682
  %v2003 = vpack.c.b16 %v1685, %v1683
  %v2004 = vpack.c.b16 %v1688, %v1686
  %v2005 = vpack.c.b16 %v1689, %v1687
  %v2006 = vpack.c.b16 %v1692, %v1690
  %v2007 = vpack.c.b16 %v1693, %v1691
  %v2008 = vpack.c.b16 %v1696, %v1694
  %v2009 = vpack.c.b16 %v1697, %v1695
  %v2010 = vpack.c.b16 %v1700, %v1698
  %v2011 = vpack.c.b16 %v1701, %v1699
  %v2012 = vpack.c.b16 %v1704, %v1702
  %v2013 = vpack.c.b16 %v1705, %v1703
  %v2014 = vpack.c.b16 %v1708, %v1706
  %v2015 = vpack.c.b16 %v1709, %v1707
  %v2016 = vpack.c.b16 %v1712, %v1710
  %v2017 = vpack.c.b16 %v1713, %v1711
  %v2018 = vpack.c.b16 %v1716, %v1714
  %v2019 = vpack.c.b16 %v1717, %v1715
  %v2020 = vpack.c.b16 %v1720, %v1718
  %v2021 = vpack.c.b16 %v1721, %v1719
  %v2022 = vpack.c.b16 %v1724, %v1722
  %v2023 = vpack.c.b16 %v1725, %v1723
  %v2024 = vpack.c.b16 %v1728, %v1726
  %v2025 = vpack.c.b16 %v1729, %v1727
  %v2026 = vpack.c.b16 %v1732, %v1730
  %v2027 = vpack.c.b16 %v1733, %v1731
  %v2028 = vpack.c.b16 %v1736, %v1734
  %v2029 = vpack.c.b16 %v1737, %v1735
  %v2030 = vpack.c.b16 %v1740, %v1738
  %v2031 = vpack.c.b16 %v1741, %v1739
  %v2032 = vpack.c.b16 %v1744, %v1742
  %v2033 = vpack.c.b16 %v1745, %v1743
  %v2034 = vpack.c.b16 %v1748, %v1746
  %v2035 = vpack.c.b16 %v1749, %v1747
  %v2036 = vpack.c.b16 %v1752, %v1750
  %v2037 = vpack.c.b16 %v1753, %v1751
  %v2038 = vpack.c.b16 %v1756, %v1754
  %v2039 = vpack.c.b16 %v1757, %v1755
  %v2040 = vpack.c.b16 %v1760, %v1758
  %v2041 = vpack.c.b16 %v1761, %v1759
  %v2042 = vpack.c.b16 %v1764, %v1762
  %v2043 = vpack.c.b16 %v1765, %v1763
  %v2044 = vpack.c.b16 %v1768, %v1766
  %v2045 = vpack.c.b16 %v1769, %v1767
  %v2046 = vpack.c.b16 %v1772, %v1770
  %v2047 = vpack.c.b16 %v1773, %v1771
  %v2048 = vpack.c.b16 %v1776, %v1774
  %v2049 = vpack.c.b16 %v1777, %v1775
  %v2050 = vpack.c.b16 %v1780, %v1778
  %v2051 = vpack.c.b16 %v1781, %v1779
  %v2052 = vpack.c.b16 %v1784, %v1782
  %v2053 = vpack.c.b16 %v1785, %v1783
  %v2054 = vpack.c.b16 %v1788, %v1786
  %v2055 = vpack.c.b16 %v1789, %v1787
  %v2056 = vpack.c.b16 %v1792, %v1790
  %v2057 = vpack.c.b16 %v1793, %v1791
  %v2058 = vpack.c.b16 %v1796, %v1794
  %v2059 = vpack.c.b16 %v1797, %v1795
  %v2060 = vpack.c.b16 %v1800, %v1798
  %v2061 = vpack.c.b16 %v1801, %v1799
  %v2062 = vpack.c.b16 %v1804, %v1802
  %v2063 = vpack.c.b16 %v1805, %v1803
  %v2064 = vpack.c.b16 %v1808, %v1806
  %v2065 = vpack.c.b16 %v1809, %v1807
  %v2066 = vpack.c.b16 %v1812, %v1810
  %v2067 = vpack.c.b16 %v1813, %v1811
  %v2068 = vpack.c.b16 %v1816, %v1814
  %v2069 = vpack.c.b16 %v1817, %v1815
  %v2070 = vpack.c.b16 %v1820, %v1818
  %v2071 = vpack.c.b16 %v1821, %v1819
  %v2072 = vpack.c.b16 %v1824, %v1822
  %v2073 = vpack.c.b16 %v1825, %v1823
  %v2074 = vpack.c.b16 %v1828, %v1826
  %v2075 = vpack.c.b16 %v1829, %v1827
  %v2076 = vpack.c.b16 %v1832, %v1830
  %v2077 = vpack.c.b16 %v1833, %v1831
  %v2078 = vpack.c.b16 %v1836, %v1834
  %v2079 = vpack.c.b16 %v1837, %v1835
  %v2080 = vpack.c.b16 %v1840, %v1838
  %v2081 = vpack.c.b16 %v1841, %v1839
  %v2082 = vpack.c.b16 %v1844, %v1842
  %v2083 = vpack.c.b16 %v1845, %v1843
  %v2084 = vpack.c.b16 %v1848, %v1846
  %v2085 = vpack.c.b16 %v1849, %v1847
  %v2086 = vpack.c.b16 %v1852, %v1850
  %v2087 = vpack.c.b16 %v1853, %v1851
  %v2088 = vpack.c.b16 %v1856, %v1854
  %v2089 = vpack.c.b16 %v1857, %v1855
  %v2090 = vpack.c.b16 %v1860, %v1858
  %v2091 = vpack.c.b16 %v1861, %v1859
  %v2092 = vpack.c.b16 %v1864, %v1862
  %v2093 = vpack.c.b16 %v1865, %v1863
  %v2094 = vpack.c.b16 %v1868, %v1866
  %v2095 = vpack.c.b16 %v1869, %v1867
  %v2096 = vpack.c.b16 %v1872, %v1870
  %v2097 = vpack.c.b16 %v1873, %v1871
  %v2098 = vpack.c.b16 %v1876, %v1874
  %v2099 = vpack.c.b16 %v1877, %v1875
  %v2100 = vpack.c.b16 %v1880, %v1878
  %v2101 = vpack.c.b16 %v1881, %v1879
  %v2102 = vpack.c.b16 %v1884, %v1882
  %v2103 = vpack.c.b16 %v1885, %v1883
  %v2104 = vpack.c.b16 %v1888, %v1886
  %v2105 = vpack.c.b16 %v1889, %v1887
  %v2106 = vpack.c.b16 %v1892, %v1890
  %v2107 = vpack.c.b16 %v1893, %v1891
  %v2108 = vpack.c.b16 %v1896, %v1894
  %v2109 = vpack.c.b16 %v1897, %v1895
  %v2110 = vpack.c.b16 %v1900, %v1898
  %v2111 = vpack.c.b16 %v1901, %v1899
  %v2112 = vpack.c.b16 %v1904, %v1902
  %v2113 = vpack.c.b16 %v1905, %v1903
  %v2114 = vpack.c.b16 %v1908, %v1906
  %v2115 = vpack.c.b16 %v1909, %v1907
  %v2116 = vpack.c.b16 %v1912, %v1910
  %v2117 = vpack.c.b16 %v1913, %v1911
  %v2118 = vpack.c.b16 %v1916, %v1914
  %v2119 = vpack.c.b16 %v1917, %v1915
  %v2120 = vpack.c.b16 %v1920, %v1918
  %v2121 = vpack.c.b16 %v1921, %v1919
  %v2122 = vpack.c.b16 %v1924, %v1922
  %v2123 = vpack.c.b16 %v1925, %v1923
  %v2124 = vpack.c.b16 %v1928, %v1926
  %v2125 = vpack.c.b16 %v1929, %v1927
  %v2126 = vpack.c.b16 %v1932, %v1930
  %v2127 = vpack.c.b16 %v1933, %v1931
  %v2128 = vpack.c.b16 %v1936, %v1934
  %v2129 = vpack.c.b16 %v1937, %v1935
  %v2130 = vpack.c.b16 %v1940, %v1938
  %v2131 = vpack.c.b16 %v1941, %v1939
  %v2132 = vpack.c.b16 %v1944, %v1942
  %v2133 = vpack.c.b16 %v1945, %v1943
  %v2134 = vpack.c.b16 %v1948, %v1946
  %v2135 = vpack.c.b16 %v1949, %v1947
  %v2136 = vpack.c.b16 %v1952, %v1950
  %v2137 = vpack.c.b16 %v1953, %v1951
  %v2138 = vpack.c.b16 %v1956, %v1954
  %v2139 = vpack.c.b16 %v1957, %v1955
  %v2140 = vpack.c.b16 %v1960, %v1958
  %v2141 = vpack.c.b16 %v1961, %v1959
  %v2142 = vpack.c.b16 %v1964, %v1962
  %v2143 = vpack.c.b16 %v1965, %v1963
  %v2144 = vpack.c.b16 %v1968, %v1966
  %v2145 = vpack.c.b16 %v1969, %v1967
  %v2146 = vpack.c.b16 %v1972, %v1970
  %v2147 = vpack.c.b16 %v1973, %v1971
  %v2148 = vpack.c.b16 %v1976, %v1974
  %v2149 = vpack.c.b16 %v1977, %v1975
  %v2150 = vpack.c.b16 %v1980, %v1978
  %v2151 = vpack.c.b16 %v1981, %v1979
  %v2152 = vpack.c.b16 %v1984, %v1982
  %v2153 = vpack.c.b16 %v1985, %v1983
  %vm2322 = vcmask 523264
  %v2324 = vsel %vm2322, %v1198, 0
  %v2327 = vsel %vm2322, %v1209, 0
  %v2330 = vsel %vm2322, %v1220, 0
  %v2333 = vsel %vm2322, %v1231, 0
  %v2336 = vsel %vm2322, %v1242, 0
  %v2339 = vsel %vm2322, %v1253, 0
  %v2342 = vsel %vm2322, %v1264, 0
  %v2345 = vsel %vm2322, %v1275, 0
  %v2348 = vsel %vm2322, %v1286, 0
  %v2351 = vsel %vm2322, %v1297, 0
  %v2354 = vsel %vm2322, %v1308, 0
  %v2357 = vsel %vm2322, %v1319, 0
  %v2360 = vsel %vm2322, %v1330, 0
  %v2363 = vsel %vm2322, %v1341, 0
  %2365 = vmatprep.subr.bf16.mxu0 %v2001
  %2366 = vmatpush1.bf16.msra.mxu0 %v2000
  %2367 = vmatprep.subr.bf16.mxu0 %v1999
  %2368 = vmatpush1.bf16.msra.mxu0 %v1998
  %2369 = vmatprep.subr.bf16.mxu0 %v1997
  %2370 = vmatpush1.bf16.msra.mxu0 %v1996
  %2371 = vmatprep.subr.bf16.mxu0 %v1995
  %2372 = vmatpush1.bf16.msra.mxu0 %v1994
  %2373 = vmatprep.subr.bf16.mxu0 %v1993
  %2374 = vmatpush1.bf16.msra.mxu0 %v1992
  %2375 = vmatprep.subr.bf16.mxu0 %v1991
  %2376 = vmatpush1.bf16.msra.mxu0 %v1990
  %2377 = vmatprep.subr.bf16.mxu0 %v1989
  %2378 = vmatpush1.bf16.msra.mxu0 %v1988
  %2379 = vmatprep.subr.bf16.mxu0 %v1987
  %2380 = vmatpush1.bf16.msra.mxu0 %v1986
  %2381 = vmatprep.subr.bf16.mxu0 %v2017
  %2382 = vmatpush2.bf16.msra.mxu0 %v2016
  %2383 = vmatprep.subr.bf16.mxu0 %v2015
  %2384 = vmatpush2.bf16.msra.mxu0 %v2014
  %2385 = vmatprep.subr.bf16.mxu0 %v2013
  %2386 = vmatpush2.bf16.msra.mxu0 %v2012
  %2387 = vmatprep.subr.bf16.mxu0 %v2011
  %2388 = vmatpush2.bf16.msra.mxu0 %v2010
  %2389 = vmatprep.subr.bf16.mxu0 %v2009
  %2390 = vmatpush2.bf16.msra.mxu0 %v2008
  %2391 = vmatprep.subr.bf16.mxu0 %v2007
  %2392 = vmatpush2.bf16.msra.mxu0 %v2006
  %2393 = vmatprep.subr.bf16.mxu0 %v2005
  %2394 = vmatpush2.bf16.msra.mxu0 %v2004
  %2395 = vmatprep.subr.bf16.mxu0 %v2003
  %2396 = vmatpush2.bf16.msra.mxu0 %v2002
  %2397 = vmatprep.mubr.bf16.mxu0 %v1189
  %2398 = vmatmul.mubr.bf16.gmra.mxu0 %v1188
  %v2399 = vpop.f32.mrf.mxu0
  %v2400 = vadd.f32 0.0, %v2399
  %v2401 = vpop.f32.mrf.mxu0
  %v2402 = vadd.f32 0.0, %v2401
  %v2403 = vpop.f32.mrf.mxu0
  %v2404 = vadd.f32 0.0, %v2403
  %v2405 = vpop.f32.mrf.mxu0
  %v2406 = vadd.f32 0.0, %v2405
  %2407 = vmatprep.mubr.bf16.mxu0 %v1200
  %2408 = vmatmul.mubr.bf16.gmra.mxu0 %v1199
  %v2409 = vpop.f32.mrf.mxu0
  %v2410 = vadd.f32 0.0, %v2409
  %v2411 = vpop.f32.mrf.mxu0
  %v2412 = vadd.f32 0.0, %v2411
  %v2413 = vpop.f32.mrf.mxu0
  %v2414 = vadd.f32 0.0, %v2413
  %v2415 = vpop.f32.mrf.mxu0
  %v2416 = vadd.f32 0.0, %v2415
  %2417 = vmatprep.mubr.bf16.mxu0 %v1211
  %2418 = vmatmul.mubr.bf16.gmra.mxu0 %v1210
  %v2419 = vpop.f32.mrf.mxu0
  %v2420 = vadd.f32 0.0, %v2419
  %v2421 = vpop.f32.mrf.mxu0
  %v2422 = vadd.f32 0.0, %v2421
  %v2423 = vpop.f32.mrf.mxu0
  %v2424 = vadd.f32 0.0, %v2423
  %v2425 = vpop.f32.mrf.mxu0
  %v2426 = vadd.f32 0.0, %v2425
  %2427 = vmatprep.mubr.bf16.mxu0 %v1222
  %2428 = vmatmul.mubr.bf16.gmra.mxu0 %v1221
  %v2429 = vpop.f32.mrf.mxu0
  %v2430 = vadd.f32 0.0, %v2429
  %v2431 = vpop.f32.mrf.mxu0
  %v2432 = vadd.f32 0.0, %v2431
  %v2433 = vpop.f32.mrf.mxu0
  %v2434 = vadd.f32 0.0, %v2433
  %v2435 = vpop.f32.mrf.mxu0
  %v2436 = vadd.f32 0.0, %v2435
  %2437 = vmatprep.mubr.bf16.mxu0 %v1233
  %2438 = vmatmul.mubr.bf16.gmra.mxu0 %v1232
  %v2439 = vpop.f32.mrf.mxu0
  %v2440 = vadd.f32 0.0, %v2439
  %v2441 = vpop.f32.mrf.mxu0
  %v2442 = vadd.f32 0.0, %v2441
  %v2443 = vpop.f32.mrf.mxu0
  %v2444 = vadd.f32 0.0, %v2443
  %v2445 = vpop.f32.mrf.mxu0
  %v2446 = vadd.f32 0.0, %v2445
  %2447 = vmatprep.mubr.bf16.mxu0 %v1244
  %2448 = vmatmul.mubr.bf16.gmra.mxu0 %v1243
  %v2449 = vpop.f32.mrf.mxu0
  %v2450 = vadd.f32 0.0, %v2449
  %v2451 = vpop.f32.mrf.mxu0
  %v2452 = vadd.f32 0.0, %v2451
  %v2453 = vpop.f32.mrf.mxu0
  %v2454 = vadd.f32 0.0, %v2453
  %v2455 = vpop.f32.mrf.mxu0
  %v2456 = vadd.f32 0.0, %v2455
  %2457 = vmatprep.mubr.bf16.mxu0 %v1255
  %2458 = vmatmul.mubr.bf16.gmra.mxu0 %v1254
  %v2459 = vpop.f32.mrf.mxu0
  %v2460 = vadd.f32 0.0, %v2459
  %v2461 = vpop.f32.mrf.mxu0
  %v2462 = vadd.f32 0.0, %v2461
  %v2463 = vpop.f32.mrf.mxu0
  %v2464 = vadd.f32 0.0, %v2463
  %v2465 = vpop.f32.mrf.mxu0
  %v2466 = vadd.f32 0.0, %v2465
  %2467 = vmatprep.mubr.bf16.mxu0 %v1266
  %2468 = vmatmul.mubr.bf16.gmra.mxu0 %v1265
  %v2469 = vpop.f32.mrf.mxu0
  %v2470 = vadd.f32 0.0, %v2469
  %v2471 = vpop.f32.mrf.mxu0
  %v2472 = vadd.f32 0.0, %v2471
  %v2473 = vpop.f32.mrf.mxu0
  %v2474 = vadd.f32 0.0, %v2473
  %v2475 = vpop.f32.mrf.mxu0
  %v2476 = vadd.f32 0.0, %v2475
  %2477 = vmatprep.mubr.bf16.mxu0 %v1277
  %2478 = vmatmul.mubr.bf16.gmra.mxu0 %v1276
  %v2479 = vpop.f32.mrf.mxu0
  %v2480 = vadd.f32 0.0, %v2479
  %v2481 = vpop.f32.mrf.mxu0
  %v2482 = vadd.f32 0.0, %v2481
  %v2483 = vpop.f32.mrf.mxu0
  %v2484 = vadd.f32 0.0, %v2483
  %v2485 = vpop.f32.mrf.mxu0
  %v2486 = vadd.f32 0.0, %v2485
  %2487 = vmatprep.mubr.bf16.mxu0 %v1288
  %2488 = vmatmul.mubr.bf16.gmra.mxu0 %v1287
  %v2489 = vpop.f32.mrf.mxu0
  %v2490 = vadd.f32 0.0, %v2489
  %v2491 = vpop.f32.mrf.mxu0
  %v2492 = vadd.f32 0.0, %v2491
  %v2493 = vpop.f32.mrf.mxu0
  %v2494 = vadd.f32 0.0, %v2493
  %v2495 = vpop.f32.mrf.mxu0
  %v2496 = vadd.f32 0.0, %v2495
  %2497 = vmatprep.mubr.bf16.mxu0 %v1299
  %2498 = vmatmul.mubr.bf16.gmra.mxu0 %v1298
  %v2499 = vpop.f32.mrf.mxu0
  %v2500 = vadd.f32 0.0, %v2499
  %v2501 = vpop.f32.mrf.mxu0
  %v2502 = vadd.f32 0.0, %v2501
  %v2503 = vpop.f32.mrf.mxu0
  %v2504 = vadd.f32 0.0, %v2503
  %v2505 = vpop.f32.mrf.mxu0
  %v2506 = vadd.f32 0.0, %v2505
  %2507 = vmatprep.mubr.bf16.mxu0 %v1310
  %2508 = vmatmul.mubr.bf16.gmra.mxu0 %v1309
  %v2509 = vpop.f32.mrf.mxu0
  %v2510 = vadd.f32 0.0, %v2509
  %v2511 = vpop.f32.mrf.mxu0
  %v2512 = vadd.f32 0.0, %v2511
  %v2513 = vpop.f32.mrf.mxu0
  %v2514 = vadd.f32 0.0, %v2513
  %v2515 = vpop.f32.mrf.mxu0
  %v2516 = vadd.f32 0.0, %v2515
  %2517 = vmatprep.mubr.bf16.mxu0 %v1321
  %2518 = vmatmul.mubr.bf16.gmra.mxu0 %v1320
  %v2519 = vpop.f32.mrf.mxu0
  %v2520 = vadd.f32 0.0, %v2519
  %v2521 = vpop.f32.mrf.mxu0
  %v2522 = vadd.f32 0.0, %v2521
  %v2523 = vpop.f32.mrf.mxu0
  %v2524 = vadd.f32 0.0, %v2523
  %v2525 = vpop.f32.mrf.mxu0
  %v2526 = vadd.f32 0.0, %v2525
  %2527 = vmatprep.mubr.bf16.mxu0 %v1332
  %2528 = vmatmul.mubr.bf16.gmra.mxu0 %v1331
  %v2529 = vpop.f32.mrf.mxu0
  %v2530 = vadd.f32 0.0, %v2529
  %v2531 = vpop.f32.mrf.mxu0
  %v2532 = vadd.f32 0.0, %v2531
  %v2533 = vpop.f32.mrf.mxu0
  %v2534 = vadd.f32 0.0, %v2533
  %v2535 = vpop.f32.mrf.mxu0
  %v2536 = vadd.f32 0.0, %v2535
  %2537 = vdwg.mxu0
  %2538 = vmatprep.subr.bf16.mxu0 %v2033
  %2539 = vmatpush1.bf16.msra.mxu0 %v2032
  %2540 = vmatprep.subr.bf16.mxu0 %v2031
  %2541 = vmatpush1.bf16.msra.mxu0 %v2030
  %2542 = vmatprep.subr.bf16.mxu0 %v2029
  %2543 = vmatpush1.bf16.msra.mxu0 %v2028
  %2544 = vmatprep.subr.bf16.mxu0 %v2027
  %2545 = vmatpush1.bf16.msra.mxu0 %v2026
  %2546 = vmatprep.subr.bf16.mxu0 %v2025
  %2547 = vmatpush1.bf16.msra.mxu0 %v2024
  %2548 = vmatprep.subr.bf16.mxu0 %v2023
  %2549 = vmatpush1.bf16.msra.mxu0 %v2022
  %2550 = vmatprep.subr.bf16.mxu0 %v2021
  %2551 = vmatpush1.bf16.msra.mxu0 %v2020
  %2552 = vmatprep.subr.bf16.mxu0 %v2019
  %2553 = vmatpush1.bf16.msra.mxu0 %v2018
  %2554 = vmatprep.subr.bf16.mxu0 %v2049
  %2555 = vmatpush2.bf16.msra.mxu0 %v2048
  %2556 = vmatprep.subr.bf16.mxu0 %v2047
  %2557 = vmatpush2.bf16.msra.mxu0 %v2046
  %2558 = vmatprep.subr.bf16.mxu0 %v2045
  %2559 = vmatpush2.bf16.msra.mxu0 %v2044
  %2560 = vmatprep.subr.bf16.mxu0 %v2043
  %2561 = vmatpush2.bf16.msra.mxu0 %v2042
  %2562 = vmatprep.subr.bf16.mxu0 %v2041
  %2563 = vmatpush2.bf16.msra.mxu0 %v2040
  %2564 = vmatprep.subr.bf16.mxu0 %v2039
  %2565 = vmatpush2.bf16.msra.mxu0 %v2038
  %2566 = vmatprep.subr.bf16.mxu0 %v2037
  %2567 = vmatpush2.bf16.msra.mxu0 %v2036
  %2568 = vmatprep.subr.bf16.mxu0 %v2035
  %2569 = vmatpush2.bf16.msra.mxu0 %v2034
  %2570 = vmatprep.mubr.bf16.mxu0 %v1191
  %2571 = vmatmul.mubr.bf16.gmra.mxu0 %v1190
  %v2572 = vpop.f32.mrf.mxu0
  %v2573 = vadd.f32 %v2400, %v2572
  %v2574 = vpop.f32.mrf.mxu0
  %v2575 = vadd.f32 %v2402, %v2574
  %v2576 = vpop.f32.mrf.mxu0
  %v2577 = vadd.f32 %v2404, %v2576
  %v2578 = vpop.f32.mrf.mxu0
  %v2579 = vadd.f32 %v2406, %v2578
  %2580 = vmatprep.mubr.bf16.mxu0 %v1202
  %2581 = vmatmul.mubr.bf16.gmra.mxu0 %v1201
  %v2582 = vpop.f32.mrf.mxu0
  %v2583 = vadd.f32 %v2410, %v2582
  %v2584 = vpop.f32.mrf.mxu0
  %v2585 = vadd.f32 %v2412, %v2584
  %v2586 = vpop.f32.mrf.mxu0
  %v2587 = vadd.f32 %v2414, %v2586
  %v2588 = vpop.f32.mrf.mxu0
  %v2589 = vadd.f32 %v2416, %v2588
  %2590 = vmatprep.mubr.bf16.mxu0 %v1213
  %2591 = vmatmul.mubr.bf16.gmra.mxu0 %v1212
  %v2592 = vpop.f32.mrf.mxu0
  %v2593 = vadd.f32 %v2420, %v2592
  %v2594 = vpop.f32.mrf.mxu0
  %v2595 = vadd.f32 %v2422, %v2594
  %v2596 = vpop.f32.mrf.mxu0
  %v2597 = vadd.f32 %v2424, %v2596
  %v2598 = vpop.f32.mrf.mxu0
  %v2599 = vadd.f32 %v2426, %v2598
  %2600 = vmatprep.mubr.bf16.mxu0 %v1224
  %2601 = vmatmul.mubr.bf16.gmra.mxu0 %v1223
  %v2602 = vpop.f32.mrf.mxu0
  %v2603 = vadd.f32 %v2430, %v2602
  %v2604 = vpop.f32.mrf.mxu0
  %v2605 = vadd.f32 %v2432, %v2604
  %v2606 = vpop.f32.mrf.mxu0
  %v2607 = vadd.f32 %v2434, %v2606
  %v2608 = vpop.f32.mrf.mxu0
  %v2609 = vadd.f32 %v2436, %v2608
  %2610 = vmatprep.mubr.bf16.mxu0 %v1235
  %2611 = vmatmul.mubr.bf16.gmra.mxu0 %v1234
  %v2612 = vpop.f32.mrf.mxu0
  %v2613 = vadd.f32 %v2440, %v2612
  %v2614 = vpop.f32.mrf.mxu0
  %v2615 = vadd.f32 %v2442, %v2614
  %v2616 = vpop.f32.mrf.mxu0
  %v2617 = vadd.f32 %v2444, %v2616
  %v2618 = vpop.f32.mrf.mxu0
  %v2619 = vadd.f32 %v2446, %v2618
  %2620 = vmatprep.mubr.bf16.mxu0 %v1246
  %2621 = vmatmul.mubr.bf16.gmra.mxu0 %v1245
  %v2622 = vpop.f32.mrf.mxu0
  %v2623 = vadd.f32 %v2450, %v2622
  %v2624 = vpop.f32.mrf.mxu0
  %v2625 = vadd.f32 %v2452, %v2624
  %v2626 = vpop.f32.mrf.mxu0
  %v2627 = vadd.f32 %v2454, %v2626
  %v2628 = vpop.f32.mrf.mxu0
  %v2629 = vadd.f32 %v2456, %v2628
  %2630 = vmatprep.mubr.bf16.mxu0 %v1257
  %2631 = vmatmul.mubr.bf16.gmra.mxu0 %v1256
  %v2632 = vpop.f32.mrf.mxu0
  %v2633 = vadd.f32 %v2460, %v2632
  %v2634 = vpop.f32.mrf.mxu0
  %v2635 = vadd.f32 %v2462, %v2634
  %v2636 = vpop.f32.mrf.mxu0
  %v2637 = vadd.f32 %v2464, %v2636
  %v2638 = vpop.f32.mrf.mxu0
  %v2639 = vadd.f32 %v2466, %v2638
  %2640 = vmatprep.mubr.bf16.mxu0 %v1268
  %2641 = vmatmul.mubr.bf16.gmra.mxu0 %v1267
  %v2642 = vpop.f32.mrf.mxu0
  %v2643 = vadd.f32 %v2470, %v2642
  %v2644 = vpop.f32.mrf.mxu0
  %v2645 = vadd.f32 %v2472, %v2644
  %v2646 = vpop.f32.mrf.mxu0
  %v2647 = vadd.f32 %v2474, %v2646
  %v2648 = vpop.f32.mrf.mxu0
  %v2649 = vadd.f32 %v2476, %v2648
  %2650 = vmatprep.mubr.bf16.mxu0 %v1279
  %2651 = vmatmul.mubr.bf16.gmra.mxu0 %v1278
  %v2652 = vpop.f32.mrf.mxu0
  %v2653 = vadd.f32 %v2480, %v2652
  %v2654 = vpop.f32.mrf.mxu0
  %v2655 = vadd.f32 %v2482, %v2654
  %v2656 = vpop.f32.mrf.mxu0
  %v2657 = vadd.f32 %v2484, %v2656
  %v2658 = vpop.f32.mrf.mxu0
  %v2659 = vadd.f32 %v2486, %v2658
  %2660 = vmatprep.mubr.bf16.mxu0 %v1290
  %2661 = vmatmul.mubr.bf16.gmra.mxu0 %v1289
  %v2662 = vpop.f32.mrf.mxu0
  %v2663 = vadd.f32 %v2490, %v2662
  %v2664 = vpop.f32.mrf.mxu0
  %v2665 = vadd.f32 %v2492, %v2664
  %v2666 = vpop.f32.mrf.mxu0
  %v2667 = vadd.f32 %v2494, %v2666
  %v2668 = vpop.f32.mrf.mxu0
  %v2669 = vadd.f32 %v2496, %v2668
  %2670 = vmatprep.mubr.bf16.mxu0 %v1301
  %2671 = vmatmul.mubr.bf16.gmra.mxu0 %v1300
  %v2672 = vpop.f32.mrf.mxu0
  %v2673 = vadd.f32 %v2500, %v2672
  %v2674 = vpop.f32.mrf.mxu0
  %v2675 = vadd.f32 %v2502, %v2674
  %v2676 = vpop.f32.mrf.mxu0
  %v2677 = vadd.f32 %v2504, %v2676
  %v2678 = vpop.f32.mrf.mxu0
  %v2679 = vadd.f32 %v2506, %v2678
  %2680 = vmatprep.mubr.bf16.mxu0 %v1312
  %2681 = vmatmul.mubr.bf16.gmra.mxu0 %v1311
  %v2682 = vpop.f32.mrf.mxu0
  %v2683 = vadd.f32 %v2510, %v2682
  %v2684 = vpop.f32.mrf.mxu0
  %v2685 = vadd.f32 %v2512, %v2684
  %v2686 = vpop.f32.mrf.mxu0
  %v2687 = vadd.f32 %v2514, %v2686
  %v2688 = vpop.f32.mrf.mxu0
  %v2689 = vadd.f32 %v2516, %v2688
  %2690 = vmatprep.mubr.bf16.mxu0 %v1323
  %2691 = vmatmul.mubr.bf16.gmra.mxu0 %v1322
  %v2692 = vpop.f32.mrf.mxu0
  %v2693 = vadd.f32 %v2520, %v2692
  %v2694 = vpop.f32.mrf.mxu0
  %v2695 = vadd.f32 %v2522, %v2694
  %v2696 = vpop.f32.mrf.mxu0
  %v2697 = vadd.f32 %v2524, %v2696
  %v2698 = vpop.f32.mrf.mxu0
  %v2699 = vadd.f32 %v2526, %v2698
  %2700 = vmatprep.mubr.bf16.mxu0 %v1334
  %2701 = vmatmul.mubr.bf16.gmra.mxu0 %v1333
  %v2702 = vpop.f32.mrf.mxu0
  %v2703 = vadd.f32 %v2530, %v2702
  %v2704 = vpop.f32.mrf.mxu0
  %v2705 = vadd.f32 %v2532, %v2704
  %v2706 = vpop.f32.mrf.mxu0
  %v2707 = vadd.f32 %v2534, %v2706
  %v2708 = vpop.f32.mrf.mxu0
  %v2709 = vadd.f32 %v2536, %v2708
  %2710 = vdwg.mxu0
  %2711 = vmatprep.subr.bf16.mxu0 %v2065
  %2712 = vmatpush1.bf16.msra.mxu0 %v2064
  %2713 = vmatprep.subr.bf16.mxu0 %v2063
  %2714 = vmatpush1.bf16.msra.mxu0 %v2062
  %2715 = vmatprep.subr.bf16.mxu0 %v2061
  %2716 = vmatpush1.bf16.msra.mxu0 %v2060
  %2717 = vmatprep.subr.bf16.mxu0 %v2059
  %2718 = vmatpush1.bf16.msra.mxu0 %v2058
  %2719 = vmatprep.subr.bf16.mxu0 %v2057
  %2720 = vmatpush1.bf16.msra.mxu0 %v2056
  %2721 = vmatprep.subr.bf16.mxu0 %v2055
  %2722 = vmatpush1.bf16.msra.mxu0 %v2054
  %2723 = vmatprep.subr.bf16.mxu0 %v2053
  %2724 = vmatpush1.bf16.msra.mxu0 %v2052
  %2725 = vmatprep.subr.bf16.mxu0 %v2051
  %2726 = vmatpush1.bf16.msra.mxu0 %v2050
  %2727 = vmatprep.subr.bf16.mxu0 %v2081
  %2728 = vmatpush2.bf16.msra.mxu0 %v2080
  %2729 = vmatprep.subr.bf16.mxu0 %v2079
  %2730 = vmatpush2.bf16.msra.mxu0 %v2078
  %2731 = vmatprep.subr.bf16.mxu0 %v2077
  %2732 = vmatpush2.bf16.msra.mxu0 %v2076
  %2733 = vmatprep.subr.bf16.mxu0 %v2075
  %2734 = vmatpush2.bf16.msra.mxu0 %v2074
  %2735 = vmatprep.subr.bf16.mxu0 %v2073
  %2736 = vmatpush2.bf16.msra.mxu0 %v2072
  %2737 = vmatprep.subr.bf16.mxu0 %v2071
  %2738 = vmatpush2.bf16.msra.mxu0 %v2070
  %2739 = vmatprep.subr.bf16.mxu0 %v2069
  %2740 = vmatpush2.bf16.msra.mxu0 %v2068
  %2741 = vmatprep.subr.bf16.mxu0 %v2067
  %2742 = vmatpush2.bf16.msra.mxu0 %v2066
  %2743 = vmatprep.mubr.bf16.mxu0 %v1193
  %2744 = vmatmul.mubr.bf16.gmra.mxu0 %v1192
  %v2745 = vpop.f32.mrf.mxu0
  %v2746 = vadd.f32 %v2573, %v2745
  %v2747 = vpop.f32.mrf.mxu0
  %v2748 = vadd.f32 %v2575, %v2747
  %v2749 = vpop.f32.mrf.mxu0
  %v2750 = vadd.f32 %v2577, %v2749
  %v2751 = vpop.f32.mrf.mxu0
  %v2752 = vadd.f32 %v2579, %v2751
  %2753 = vmatprep.mubr.bf16.mxu0 %v1204
  %2754 = vmatmul.mubr.bf16.gmra.mxu0 %v1203
  %v2755 = vpop.f32.mrf.mxu0
  %v2756 = vadd.f32 %v2583, %v2755
  %v2757 = vpop.f32.mrf.mxu0
  %v2758 = vadd.f32 %v2585, %v2757
  %v2759 = vpop.f32.mrf.mxu0
  %v2760 = vadd.f32 %v2587, %v2759
  %v2761 = vpop.f32.mrf.mxu0
  %v2762 = vadd.f32 %v2589, %v2761
  %2763 = vmatprep.mubr.bf16.mxu0 %v1215
  %2764 = vmatmul.mubr.bf16.gmra.mxu0 %v1214
  %v2765 = vpop.f32.mrf.mxu0
  %v2766 = vadd.f32 %v2593, %v2765
  %v2767 = vpop.f32.mrf.mxu0
  %v2768 = vadd.f32 %v2595, %v2767
  %v2769 = vpop.f32.mrf.mxu0
  %v2770 = vadd.f32 %v2597, %v2769
  %v2771 = vpop.f32.mrf.mxu0
  %v2772 = vadd.f32 %v2599, %v2771
  %2773 = vmatprep.mubr.bf16.mxu0 %v1226
  %2774 = vmatmul.mubr.bf16.gmra.mxu0 %v1225
  %v2775 = vpop.f32.mrf.mxu0
  %v2776 = vadd.f32 %v2603, %v2775
  %v2777 = vpop.f32.mrf.mxu0
  %v2778 = vadd.f32 %v2605, %v2777
  %v2779 = vpop.f32.mrf.mxu0
  %v2780 = vadd.f32 %v2607, %v2779
  %v2781 = vpop.f32.mrf.mxu0
  %v2782 = vadd.f32 %v2609, %v2781
  %2783 = vmatprep.mubr.bf16.mxu0 %v1237
  %2784 = vmatmul.mubr.bf16.gmra.mxu0 %v1236
  %v2785 = vpop.f32.mrf.mxu0
  %v2786 = vadd.f32 %v2613, %v2785
  %v2787 = vpop.f32.mrf.mxu0
  %v2788 = vadd.f32 %v2615, %v2787
  %v2789 = vpop.f32.mrf.mxu0
  %v2790 = vadd.f32 %v2617, %v2789
  %v2791 = vpop.f32.mrf.mxu0
  %v2792 = vadd.f32 %v2619, %v2791
  %2793 = vmatprep.mubr.bf16.mxu0 %v1248
  %2794 = vmatmul.mubr.bf16.gmra.mxu0 %v1247
  %v2795 = vpop.f32.mrf.mxu0
  %v2796 = vadd.f32 %v2623, %v2795
  %v2797 = vpop.f32.mrf.mxu0
  %v2798 = vadd.f32 %v2625, %v2797
  %v2799 = vpop.f32.mrf.mxu0
  %v2800 = vadd.f32 %v2627, %v2799
  %v2801 = vpop.f32.mrf.mxu0
  %v2802 = vadd.f32 %v2629, %v2801
  %2803 = vmatprep.mubr.bf16.mxu0 %v1259
  %2804 = vmatmul.mubr.bf16.gmra.mxu0 %v1258
  %v2805 = vpop.f32.mrf.mxu0
  %v2806 = vadd.f32 %v2633, %v2805
  %v2807 = vpop.f32.mrf.mxu0
  %v2808 = vadd.f32 %v2635, %v2807
  %v2809 = vpop.f32.mrf.mxu0
  %v2810 = vadd.f32 %v2637, %v2809
  %v2811 = vpop.f32.mrf.mxu0
  %v2812 = vadd.f32 %v2639, %v2811
  %2813 = vmatprep.mubr.bf16.mxu0 %v1270
  %2814 = vmatmul.mubr.bf16.gmra.mxu0 %v1269
  %v2815 = vpop.f32.mrf.mxu0
  %v2816 = vadd.f32 %v2643, %v2815
  %v2817 = vpop.f32.mrf.mxu0
  %v2818 = vadd.f32 %v2645, %v2817
  %v2819 = vpop.f32.mrf.mxu0
  %v2820 = vadd.f32 %v2647, %v2819
  %v2821 = vpop.f32.mrf.mxu0
  %v2822 = vadd.f32 %v2649, %v2821
  %2823 = vmatprep.mubr.bf16.mxu0 %v1281
  %2824 = vmatmul.mubr.bf16.gmra.mxu0 %v1280
  %v2825 = vpop.f32.mrf.mxu0
  %v2826 = vadd.f32 %v2653, %v2825
  %v2827 = vpop.f32.mrf.mxu0
  %v2828 = vadd.f32 %v2655, %v2827
  %v2829 = vpop.f32.mrf.mxu0
  %v2830 = vadd.f32 %v2657, %v2829
  %v2831 = vpop.f32.mrf.mxu0
  %v2832 = vadd.f32 %v2659, %v2831
  %2833 = vmatprep.mubr.bf16.mxu0 %v1292
  %2834 = vmatmul.mubr.bf16.gmra.mxu0 %v1291
  %v2835 = vpop.f32.mrf.mxu0
  %v2836 = vadd.f32 %v2663, %v2835
  %v2837 = vpop.f32.mrf.mxu0
  %v2838 = vadd.f32 %v2665, %v2837
  %v2839 = vpop.f32.mrf.mxu0
  %v2840 = vadd.f32 %v2667, %v2839
  %v2841 = vpop.f32.mrf.mxu0
  %v2842 = vadd.f32 %v2669, %v2841
  %2843 = vmatprep.mubr.bf16.mxu0 %v1303
  %2844 = vmatmul.mubr.bf16.gmra.mxu0 %v1302
  %v2845 = vpop.f32.mrf.mxu0
  %v2846 = vadd.f32 %v2673, %v2845
  %v2847 = vpop.f32.mrf.mxu0
  %v2848 = vadd.f32 %v2675, %v2847
  %v2849 = vpop.f32.mrf.mxu0
  %v2850 = vadd.f32 %v2677, %v2849
  %v2851 = vpop.f32.mrf.mxu0
  %v2852 = vadd.f32 %v2679, %v2851
  %2853 = vmatprep.mubr.bf16.mxu0 %v1314
  %2854 = vmatmul.mubr.bf16.gmra.mxu0 %v1313
  %v2855 = vpop.f32.mrf.mxu0
  %v2856 = vadd.f32 %v2683, %v2855
  %v2857 = vpop.f32.mrf.mxu0
  %v2858 = vadd.f32 %v2685, %v2857
  %v2859 = vpop.f32.mrf.mxu0
  %v2860 = vadd.f32 %v2687, %v2859
  %v2861 = vpop.f32.mrf.mxu0
  %v2862 = vadd.f32 %v2689, %v2861
  %2863 = vmatprep.mubr.bf16.mxu0 %v1325
  %2864 = vmatmul.mubr.bf16.gmra.mxu0 %v1324
  %v2865 = vpop.f32.mrf.mxu0
  %v2866 = vadd.f32 %v2693, %v2865
  %v2867 = vpop.f32.mrf.mxu0
  %v2868 = vadd.f32 %v2695, %v2867
  %v2869 = vpop.f32.mrf.mxu0
  %v2870 = vadd.f32 %v2697, %v2869
  %v2871 = vpop.f32.mrf.mxu0
  %v2872 = vadd.f32 %v2699, %v2871
  %2873 = vmatprep.mubr.bf16.mxu0 %v1336
  %2874 = vmatmul.mubr.bf16.gmra.mxu0 %v1335
  %v2875 = vpop.f32.mrf.mxu0
  %v2876 = vadd.f32 %v2703, %v2875
  %v2877 = vpop.f32.mrf.mxu0
  %v2878 = vadd.f32 %v2705, %v2877
  %v2879 = vpop.f32.mrf.mxu0
  %v2880 = vadd.f32 %v2707, %v2879
  %v2881 = vpop.f32.mrf.mxu0
  %v2882 = vadd.f32 %v2709, %v2881
  %2883 = vdwg.mxu0
  %2884 = vmatprep.subr.bf16.mxu0 %v2097
  %2885 = vmatpush1.bf16.msra.mxu0 %v2096
  %2886 = vmatprep.subr.bf16.mxu0 %v2095
  %2887 = vmatpush1.bf16.msra.mxu0 %v2094
  %2888 = vmatprep.subr.bf16.mxu0 %v2093
  %2889 = vmatpush1.bf16.msra.mxu0 %v2092
  %2890 = vmatprep.subr.bf16.mxu0 %v2091
  %2891 = vmatpush1.bf16.msra.mxu0 %v2090
  %2892 = vmatprep.subr.bf16.mxu0 %v2089
  %2893 = vmatpush1.bf16.msra.mxu0 %v2088
  %2894 = vmatprep.subr.bf16.mxu0 %v2087
  %2895 = vmatpush1.bf16.msra.mxu0 %v2086
  %2896 = vmatprep.subr.bf16.mxu0 %v2085
  %2897 = vmatpush1.bf16.msra.mxu0 %v2084
  %2898 = vmatprep.subr.bf16.mxu0 %v2083
  %2899 = vmatpush1.bf16.msra.mxu0 %v2082
  %2900 = vmatprep.subr.bf16.mxu0 %v2113
  %2901 = vmatpush2.bf16.msra.mxu0 %v2112
  %2902 = vmatprep.subr.bf16.mxu0 %v2111
  %2903 = vmatpush2.bf16.msra.mxu0 %v2110
  %2904 = vmatprep.subr.bf16.mxu0 %v2109
  %2905 = vmatpush2.bf16.msra.mxu0 %v2108
  %2906 = vmatprep.subr.bf16.mxu0 %v2107
  %2907 = vmatpush2.bf16.msra.mxu0 %v2106
  %2908 = vmatprep.subr.bf16.mxu0 %v2105
  %2909 = vmatpush2.bf16.msra.mxu0 %v2104
  %2910 = vmatprep.subr.bf16.mxu0 %v2103
  %2911 = vmatpush2.bf16.msra.mxu0 %v2102
  %2912 = vmatprep.subr.bf16.mxu0 %v2101
  %2913 = vmatpush2.bf16.msra.mxu0 %v2100
  %2914 = vmatprep.subr.bf16.mxu0 %v2099
  %2915 = vmatpush2.bf16.msra.mxu0 %v2098
  %2916 = vmatprep.mubr.bf16.mxu0 %v1195
  %2917 = vmatmul.mubr.bf16.gmra.mxu0 %v1194
  %v2918 = vpop.f32.mrf.mxu0
  %v2919 = vadd.f32 %v2746, %v2918
  %v2920 = vpop.f32.mrf.mxu0
  %v2921 = vadd.f32 %v2748, %v2920
  %v2922 = vpop.f32.mrf.mxu0
  %v2923 = vadd.f32 %v2750, %v2922
  %v2924 = vpop.f32.mrf.mxu0
  %v2925 = vadd.f32 %v2752, %v2924
  %2926 = vmatprep.mubr.bf16.mxu0 %v1206
  %2927 = vmatmul.mubr.bf16.gmra.mxu0 %v1205
  %v2928 = vpop.f32.mrf.mxu0
  %v2929 = vadd.f32 %v2756, %v2928
  %v2930 = vpop.f32.mrf.mxu0
  %v2931 = vadd.f32 %v2758, %v2930
  %v2932 = vpop.f32.mrf.mxu0
  %v2933 = vadd.f32 %v2760, %v2932
  %v2934 = vpop.f32.mrf.mxu0
  %v2935 = vadd.f32 %v2762, %v2934
  %2936 = vmatprep.mubr.bf16.mxu0 %v1217
  %2937 = vmatmul.mubr.bf16.gmra.mxu0 %v1216
  %v2938 = vpop.f32.mrf.mxu0
  %v2939 = vadd.f32 %v2766, %v2938
  %v2940 = vpop.f32.mrf.mxu0
  %v2941 = vadd.f32 %v2768, %v2940
  %v2942 = vpop.f32.mrf.mxu0
  %v2943 = vadd.f32 %v2770, %v2942
  %v2944 = vpop.f32.mrf.mxu0
  %v2945 = vadd.f32 %v2772, %v2944
  %2946 = vmatprep.mubr.bf16.mxu0 %v1228
  %2947 = vmatmul.mubr.bf16.gmra.mxu0 %v1227
  %v2948 = vpop.f32.mrf.mxu0
  %v2949 = vadd.f32 %v2776, %v2948
  %v2950 = vpop.f32.mrf.mxu0
  %v2951 = vadd.f32 %v2778, %v2950
  %v2952 = vpop.f32.mrf.mxu0
  %v2953 = vadd.f32 %v2780, %v2952
  %v2954 = vpop.f32.mrf.mxu0
  %v2955 = vadd.f32 %v2782, %v2954
  %2956 = vmatprep.mubr.bf16.mxu0 %v1239
  %2957 = vmatmul.mubr.bf16.gmra.mxu0 %v1238
  %v2958 = vpop.f32.mrf.mxu0
  %v2959 = vadd.f32 %v2786, %v2958
  %v2960 = vpop.f32.mrf.mxu0
  %v2961 = vadd.f32 %v2788, %v2960
  %v2962 = vpop.f32.mrf.mxu0
  %v2963 = vadd.f32 %v2790, %v2962
  %v2964 = vpop.f32.mrf.mxu0
  %v2965 = vadd.f32 %v2792, %v2964
  %2966 = vmatprep.mubr.bf16.mxu0 %v1250
  %2967 = vmatmul.mubr.bf16.gmra.mxu0 %v1249
  %v2968 = vpop.f32.mrf.mxu0
  %v2969 = vadd.f32 %v2796, %v2968
  %v2970 = vpop.f32.mrf.mxu0
  %v2971 = vadd.f32 %v2798, %v2970
  %v2972 = vpop.f32.mrf.mxu0
  %v2973 = vadd.f32 %v2800, %v2972
  %v2974 = vpop.f32.mrf.mxu0
  %v2975 = vadd.f32 %v2802, %v2974
  %2976 = vmatprep.mubr.bf16.mxu0 %v1261
  %2977 = vmatmul.mubr.bf16.gmra.mxu0 %v1260
  %v2978 = vpop.f32.mrf.mxu0
  %v2979 = vadd.f32 %v2806, %v2978
  %v2980 = vpop.f32.mrf.mxu0
  %v2981 = vadd.f32 %v2808, %v2980
  %v2982 = vpop.f32.mrf.mxu0
  %v2983 = vadd.f32 %v2810, %v2982
  %v2984 = vpop.f32.mrf.mxu0
  %v2985 = vadd.f32 %v2812, %v2984
  %2986 = vmatprep.mubr.bf16.mxu0 %v1272
  %2987 = vmatmul.mubr.bf16.gmra.mxu0 %v1271
  %v2988 = vpop.f32.mrf.mxu0
  %v2989 = vadd.f32 %v2816, %v2988
  %v2990 = vpop.f32.mrf.mxu0
  %v2991 = vadd.f32 %v2818, %v2990
  %v2992 = vpop.f32.mrf.mxu0
  %v2993 = vadd.f32 %v2820, %v2992
  %v2994 = vpop.f32.mrf.mxu0
  %v2995 = vadd.f32 %v2822, %v2994
  %2996 = vmatprep.mubr.bf16.mxu0 %v1283
  %2997 = vmatmul.mubr.bf16.gmra.mxu0 %v1282
  %v2998 = vpop.f32.mrf.mxu0
  %v2999 = vadd.f32 %v2826, %v2998
  %v3000 = vpop.f32.mrf.mxu0
  %v3001 = vadd.f32 %v2828, %v3000
  %v3002 = vpop.f32.mrf.mxu0
  %v3003 = vadd.f32 %v2830, %v3002
  %v3004 = vpop.f32.mrf.mxu0
  %v3005 = vadd.f32 %v2832, %v3004
  %3006 = vmatprep.mubr.bf16.mxu0 %v1294
  %3007 = vmatmul.mubr.bf16.gmra.mxu0 %v1293
  %v3008 = vpop.f32.mrf.mxu0
  %v3009 = vadd.f32 %v2836, %v3008
  %v3010 = vpop.f32.mrf.mxu0
  %v3011 = vadd.f32 %v2838, %v3010
  %v3012 = vpop.f32.mrf.mxu0
  %v3013 = vadd.f32 %v2840, %v3012
  %v3014 = vpop.f32.mrf.mxu0
  %v3015 = vadd.f32 %v2842, %v3014
  %3016 = vmatprep.mubr.bf16.mxu0 %v1305
  %3017 = vmatmul.mubr.bf16.gmra.mxu0 %v1304
  %v3018 = vpop.f32.mrf.mxu0
  %v3019 = vadd.f32 %v2846, %v3018
  %v3020 = vpop.f32.mrf.mxu0
  %v3021 = vadd.f32 %v2848, %v3020
  %v3022 = vpop.f32.mrf.mxu0
  %v3023 = vadd.f32 %v2850, %v3022
  %v3024 = vpop.f32.mrf.mxu0
  %v3025 = vadd.f32 %v2852, %v3024
  %3026 = vmatprep.mubr.bf16.mxu0 %v1316
  %3027 = vmatmul.mubr.bf16.gmra.mxu0 %v1315
  %v3028 = vpop.f32.mrf.mxu0
  %v3029 = vadd.f32 %v2856, %v3028
  %v3030 = vpop.f32.mrf.mxu0
  %v3031 = vadd.f32 %v2858, %v3030
  %v3032 = vpop.f32.mrf.mxu0
  %v3033 = vadd.f32 %v2860, %v3032
  %v3034 = vpop.f32.mrf.mxu0
  %v3035 = vadd.f32 %v2862, %v3034
  %3036 = vmatprep.mubr.bf16.mxu0 %v1327
  %3037 = vmatmul.mubr.bf16.gmra.mxu0 %v1326
  %v3038 = vpop.f32.mrf.mxu0
  %v3039 = vadd.f32 %v2866, %v3038
  %v3040 = vpop.f32.mrf.mxu0
  %v3041 = vadd.f32 %v2868, %v3040
  %v3042 = vpop.f32.mrf.mxu0
  %v3043 = vadd.f32 %v2870, %v3042
  %v3044 = vpop.f32.mrf.mxu0
  %v3045 = vadd.f32 %v2872, %v3044
  %3046 = vmatprep.mubr.bf16.mxu0 %v1338
  %3047 = vmatmul.mubr.bf16.gmra.mxu0 %v1337
  %v3048 = vpop.f32.mrf.mxu0
  %v3049 = vadd.f32 %v2876, %v3048
  %v3050 = vpop.f32.mrf.mxu0
  %v3051 = vadd.f32 %v2878, %v3050
  %v3052 = vpop.f32.mrf.mxu0
  %v3053 = vadd.f32 %v2880, %v3052
  %v3054 = vpop.f32.mrf.mxu0
  %v3055 = vadd.f32 %v2882, %v3054
  %3056 = vdwg.mxu0
  %3057 = vmatprep.subr.bf16.mxu0 %v2129
  %3058 = vmatpush1.bf16.msra.mxu0 %v2128
  %3059 = vmatprep.subr.bf16.mxu0 %v2127
  %3060 = vmatpush1.bf16.msra.mxu0 %v2126
  %3061 = vmatprep.subr.bf16.mxu0 %v2125
  %3062 = vmatpush1.bf16.msra.mxu0 %v2124
  %3063 = vmatprep.subr.bf16.mxu0 %v2123
  %3064 = vmatpush1.bf16.msra.mxu0 %v2122
  %3065 = vmatprep.subr.bf16.mxu0 %v2121
  %3066 = vmatpush1.bf16.msra.mxu0 %v2120
  %3067 = vmatprep.subr.bf16.mxu0 %v2119
  %3068 = vmatpush1.bf16.msra.mxu0 %v2118
  %3069 = vmatprep.subr.bf16.mxu0 %v2117
  %3070 = vmatpush1.bf16.msra.mxu0 %v2116
  %3071 = vmatprep.subr.bf16.mxu0 %v2115
  %3072 = vmatpush1.bf16.msra.mxu0 %v2114
  %3073 = vmatprep.subr.bf16.mxu0 %v2145
  %3074 = vmatpush2.bf16.msra.mxu0 %v2144
  %3075 = vmatprep.subr.bf16.mxu0 %v2143
  %3076 = vmatpush2.bf16.msra.mxu0 %v2142
  %3077 = vmatprep.subr.bf16.mxu0 %v2141
  %3078 = vmatpush2.bf16.msra.mxu0 %v2140
  %3079 = vmatprep.subr.bf16.mxu0 %v2139
  %3080 = vmatpush2.bf16.msra.mxu0 %v2138
  %3081 = vmatprep.subr.bf16.mxu0 %v2137
  %3082 = vmatpush2.bf16.msra.mxu0 %v2136
  %3083 = vmatprep.subr.bf16.mxu0 %v2135
  %3084 = vmatpush2.bf16.msra.mxu0 %v2134
  %3085 = vmatprep.subr.bf16.mxu0 %v2133
  %3086 = vmatpush2.bf16.msra.mxu0 %v2132
  %3087 = vmatprep.subr.bf16.mxu0 %v2131
  %3088 = vmatpush2.bf16.msra.mxu0 %v2130
  %3089 = vmatprep.mubr.bf16.mxu0 %v1197
  %3090 = vmatmul.mubr.bf16.gmra.mxu0 %v1196
  %v3091 = vpop.f32.mrf.mxu0
  %v3092 = vadd.f32 %v2919, %v3091
  %v3093 = vpop.f32.mrf.mxu0
  %v3094 = vadd.f32 %v2921, %v3093
  %v3095 = vpop.f32.mrf.mxu0
  %v3096 = vadd.f32 %v2923, %v3095
  %v3097 = vpop.f32.mrf.mxu0
  %v3098 = vadd.f32 %v2925, %v3097
  %3099 = vmatprep.mubr.bf16.mxu0 %v1208
  %3100 = vmatmul.mubr.bf16.gmra.mxu0 %v1207
  %v3101 = vpop.f32.mrf.mxu0
  %v3102 = vadd.f32 %v2929, %v3101
  %v3103 = vpop.f32.mrf.mxu0
  %v3104 = vadd.f32 %v2931, %v3103
  %v3105 = vpop.f32.mrf.mxu0
  %v3106 = vadd.f32 %v2933, %v3105
  %v3107 = vpop.f32.mrf.mxu0
  %v3108 = vadd.f32 %v2935, %v3107
  %3109 = vmatprep.mubr.bf16.mxu0 %v1219
  %3110 = vmatmul.mubr.bf16.gmra.mxu0 %v1218
  %v3111 = vpop.f32.mrf.mxu0
  %v3112 = vadd.f32 %v2939, %v3111
  %v3113 = vpop.f32.mrf.mxu0
  %v3114 = vadd.f32 %v2941, %v3113
  %v3115 = vpop.f32.mrf.mxu0
  %v3116 = vadd.f32 %v2943, %v3115
  %v3117 = vpop.f32.mrf.mxu0
  %v3118 = vadd.f32 %v2945, %v3117
  %3119 = vmatprep.mubr.bf16.mxu0 %v1230
  %3120 = vmatmul.mubr.bf16.gmra.mxu0 %v1229
  %v3121 = vpop.f32.mrf.mxu0
  %v3122 = vadd.f32 %v2949, %v3121
  %v3123 = vpop.f32.mrf.mxu0
  %v3124 = vadd.f32 %v2951, %v3123
  %v3125 = vpop.f32.mrf.mxu0
  %v3126 = vadd.f32 %v2953, %v3125
  %v3127 = vpop.f32.mrf.mxu0
  %v3128 = vadd.f32 %v2955, %v3127
  %3129 = vmatprep.mubr.bf16.mxu0 %v1241
  %3130 = vmatmul.mubr.bf16.gmra.mxu0 %v1240
  %v3131 = vpop.f32.mrf.mxu0
  %v3132 = vadd.f32 %v2959, %v3131
  %v3133 = vpop.f32.mrf.mxu0
  %v3134 = vadd.f32 %v2961, %v3133
  %v3135 = vpop.f32.mrf.mxu0
  %v3136 = vadd.f32 %v2963, %v3135
  %v3137 = vpop.f32.mrf.mxu0
  %v3138 = vadd.f32 %v2965, %v3137
  %3139 = vmatprep.mubr.bf16.mxu0 %v1252
  %3140 = vmatmul.mubr.bf16.gmra.mxu0 %v1251
  %v3141 = vpop.f32.mrf.mxu0
  %v3142 = vadd.f32 %v2969, %v3141
  %v3143 = vpop.f32.mrf.mxu0
  %v3144 = vadd.f32 %v2971, %v3143
  %v3145 = vpop.f32.mrf.mxu0
  %v3146 = vadd.f32 %v2973, %v3145
  %v3147 = vpop.f32.mrf.mxu0
  %v3148 = vadd.f32 %v2975, %v3147
  %3149 = vmatprep.mubr.bf16.mxu0 %v1263
  %3150 = vmatmul.mubr.bf16.gmra.mxu0 %v1262
  %v3151 = vpop.f32.mrf.mxu0
  %v3152 = vadd.f32 %v2979, %v3151
  %v3153 = vpop.f32.mrf.mxu0
  %v3154 = vadd.f32 %v2981, %v3153
  %v3155 = vpop.f32.mrf.mxu0
  %v3156 = vadd.f32 %v2983, %v3155
  %v3157 = vpop.f32.mrf.mxu0
  %v3158 = vadd.f32 %v2985, %v3157
  %3159 = vmatprep.mubr.bf16.mxu0 %v1274
  %3160 = vmatmul.mubr.bf16.gmra.mxu0 %v1273
  %v3161 = vpop.f32.mrf.mxu0
  %v3162 = vadd.f32 %v2989, %v3161
  %v3163 = vpop.f32.mrf.mxu0
  %v3164 = vadd.f32 %v2991, %v3163
  %v3165 = vpop.f32.mrf.mxu0
  %v3166 = vadd.f32 %v2993, %v3165
  %v3167 = vpop.f32.mrf.mxu0
  %v3168 = vadd.f32 %v2995, %v3167
  %3169 = vmatprep.mubr.bf16.mxu0 %v1285
  %3170 = vmatmul.mubr.bf16.gmra.mxu0 %v1284
  %v3171 = vpop.f32.mrf.mxu0
  %v3172 = vadd.f32 %v2999, %v3171
  %v3173 = vpop.f32.mrf.mxu0
  %v3174 = vadd.f32 %v3001, %v3173
  %v3175 = vpop.f32.mrf.mxu0
  %v3176 = vadd.f32 %v3003, %v3175
  %v3177 = vpop.f32.mrf.mxu0
  %v3178 = vadd.f32 %v3005, %v3177
  %3179 = vmatprep.mubr.bf16.mxu0 %v1296
  %3180 = vmatmul.mubr.bf16.gmra.mxu0 %v1295
  %v3181 = vpop.f32.mrf.mxu0
  %v3182 = vadd.f32 %v3009, %v3181
  %v3183 = vpop.f32.mrf.mxu0
  %v3184 = vadd.f32 %v3011, %v3183
  %v3185 = vpop.f32.mrf.mxu0
  %v3186 = vadd.f32 %v3013, %v3185
  %v3187 = vpop.f32.mrf.mxu0
  %v3188 = vadd.f32 %v3015, %v3187
  %3189 = vmatprep.mubr.bf16.mxu0 %v1307
  %3190 = vmatmul.mubr.bf16.gmra.mxu0 %v1306
  %v3191 = vpop.f32.mrf.mxu0
  %v3192 = vadd.f32 %v3019, %v3191
  %v3193 = vpop.f32.mrf.mxu0
  %v3194 = vadd.f32 %v3021, %v3193
  %v3195 = vpop.f32.mrf.mxu0
  %v3196 = vadd.f32 %v3023, %v3195
  %v3197 = vpop.f32.mrf.mxu0
  %v3198 = vadd.f32 %v3025, %v3197
  %3199 = vmatprep.mubr.bf16.mxu0 %v1318
  %3200 = vmatmul.mubr.bf16.gmra.mxu0 %v1317
  %v3201 = vpop.f32.mrf.mxu0
  %v3202 = vadd.f32 %v3029, %v3201
  %v3203 = vpop.f32.mrf.mxu0
  %v3204 = vadd.f32 %v3031, %v3203
  %v3205 = vpop.f32.mrf.mxu0
  %v3206 = vadd.f32 %v3033, %v3205
  %v3207 = vpop.f32.mrf.mxu0
  %v3208 = vadd.f32 %v3035, %v3207
  %3209 = vmatprep.mubr.bf16.mxu0 %v1329
  %3210 = vmatmul.mubr.bf16.gmra.mxu0 %v1328
  %v3211 = vpop.f32.mrf.mxu0
  %v3212 = vadd.f32 %v3039, %v3211
  %v3213 = vpop.f32.mrf.mxu0
  %v3214 = vadd.f32 %v3041, %v3213
  %v3215 = vpop.f32.mrf.mxu0
  %v3216 = vadd.f32 %v3043, %v3215
  %v3217 = vpop.f32.mrf.mxu0
  %v3218 = vadd.f32 %v3045, %v3217
  %3219 = vmatprep.mubr.bf16.mxu0 %v1340
  %3220 = vmatmul.mubr.bf16.gmra.mxu0 %v1339
  %v3221 = vpop.f32.mrf.mxu0
  %v3222 = vadd.f32 %v3049, %v3221
  %v3223 = vpop.f32.mrf.mxu0
  %v3224 = vadd.f32 %v3051, %v3223
  %v3225 = vpop.f32.mrf.mxu0
  %v3226 = vadd.f32 %v3053, %v3225
  %v3227 = vpop.f32.mrf.mxu0
  %v3228 = vadd.f32 %v3055, %v3227
  %3229 = vdwg.mxu0
  %3230 = vmatprep.subr.bf16.mxu0 0
  %3231 = vmatpush1.bf16.msra.mxu0 0
  %3232 = vmatprep.subr.bf16.mxu0 0
  %3233 = vmatpush1.bf16.msra.mxu0 0
  %3234 = vmatprep.subr.bf16.mxu0 0
  %3235 = vmatpush1.bf16.msra.mxu0 0
  %3236 = vmatprep.subr.bf16.mxu0 0
  %3237 = vmatpush1.bf16.msra.mxu0 0
  %3238 = vmatprep.subr.bf16.mxu0 %v2153
  %3239 = vmatpush1.bf16.msra.mxu0 %v2152
  %3240 = vmatprep.subr.bf16.mxu0 %v2151
  %3241 = vmatpush1.bf16.msra.mxu0 %v2150
  %3242 = vmatprep.subr.bf16.mxu0 %v2149
  %3243 = vmatpush1.bf16.msra.mxu0 %v2148
  %3244 = vmatprep.subr.bf16.mxu0 %v2147
  %3245 = vmatpush1.bf16.msra.mxu0 %v2146
  %3246 = vmatprep.subr.bf16.mxu0 0
  %3247 = vmatpush2.bf16.msra.mxu0 0
  %3248 = vmatprep.subr.bf16.mxu0 0
  %3249 = vmatpush2.bf16.msra.mxu0 0
  %3250 = vmatprep.subr.bf16.mxu0 0
  %3251 = vmatpush2.bf16.msra.mxu0 0
  %3252 = vmatprep.subr.bf16.mxu0 0
  %3253 = vmatpush2.bf16.msra.mxu0 0
  %3254 = vmatprep.subr.bf16.mxu0 0
  %3255 = vmatpush2.bf16.msra.mxu0 0
  %3256 = vmatprep.subr.bf16.mxu0 0
  %3257 = vmatpush2.bf16.msra.mxu0 0
  %3258 = vmatprep.subr.bf16.mxu0 0
  %3259 = vmatpush2.bf16.msra.mxu0 0
  %3260 = vmatprep.subr.bf16.mxu0 0
  %3261 = vmatpush2.bf16.msra.mxu0 0
  %3262 = vmatprep.mubr.bf16.mxu0 0
  %3263 = vmatmul.mubr.bf16.gmra.mxu0 %v2324
  %v3264 = vpop.f32.mrf.mxu0
  %v3265 = vadd.f32 %v3092, %v3264
  %v3266 = vpop.f32.mrf.mxu0
  %v3267 = vadd.f32 %v3094, %v3266
  %v3268 = vpop.f32.mrf.mxu0
  %v3269 = vadd.f32 %v3096, %v3268
  %v3270 = vpop.f32.mrf.mxu0
  %v3271 = vadd.f32 %v3098, %v3270
  %3272 = vmatprep.mubr.bf16.mxu0 0
  %3273 = vmatmul.mubr.bf16.gmra.mxu0 %v2327
  %v3274 = vpop.f32.mrf.mxu0
  %v3275 = vadd.f32 %v3102, %v3274
  %v3276 = vpop.f32.mrf.mxu0
  %v3277 = vadd.f32 %v3104, %v3276
  %v3278 = vpop.f32.mrf.mxu0
  %v3279 = vadd.f32 %v3106, %v3278
  %v3280 = vpop.f32.mrf.mxu0
  %v3281 = vadd.f32 %v3108, %v3280
  %3282 = vmatprep.mubr.bf16.mxu0 0
  %3283 = vmatmul.mubr.bf16.gmra.mxu0 %v2330
  %v3284 = vpop.f32.mrf.mxu0
  %v3285 = vadd.f32 %v3112, %v3284
  %v3286 = vpop.f32.mrf.mxu0
  %v3287 = vadd.f32 %v3114, %v3286
  %v3288 = vpop.f32.mrf.mxu0
  %v3289 = vadd.f32 %v3116, %v3288
  %v3290 = vpop.f32.mrf.mxu0
  %v3291 = vadd.f32 %v3118, %v3290
  %3292 = vmatprep.mubr.bf16.mxu0 0
  %3293 = vmatmul.mubr.bf16.gmra.mxu0 %v2333
  %v3294 = vpop.f32.mrf.mxu0
  %v3295 = vadd.f32 %v3122, %v3294
  %v3296 = vpop.f32.mrf.mxu0
  %v3297 = vadd.f32 %v3124, %v3296
  %v3298 = vpop.f32.mrf.mxu0
  %v3299 = vadd.f32 %v3126, %v3298
  %v3300 = vpop.f32.mrf.mxu0
  %v3301 = vadd.f32 %v3128, %v3300
  %3302 = vmatprep.mubr.bf16.mxu0 0
  %3303 = vmatmul.mubr.bf16.gmra.mxu0 %v2336
  %v3304 = vpop.f32.mrf.mxu0
  %v3305 = vadd.f32 %v3132, %v3304
  %v3306 = vpop.f32.mrf.mxu0
  %v3307 = vadd.f32 %v3134, %v3306
  %v3308 = vpop.f32.mrf.mxu0
  %v3309 = vadd.f32 %v3136, %v3308
  %v3310 = vpop.f32.mrf.mxu0
  %v3311 = vadd.f32 %v3138, %v3310
  %3312 = vmatprep.mubr.bf16.mxu0 0
  %3313 = vmatmul.mubr.bf16.gmra.mxu0 %v2339
  %v3314 = vpop.f32.mrf.mxu0
  %v3315 = vadd.f32 %v3142, %v3314
  %v3316 = vpop.f32.mrf.mxu0
  %v3317 = vadd.f32 %v3144, %v3316
  %v3318 = vpop.f32.mrf.mxu0
  %v3319 = vadd.f32 %v3146, %v3318
  %v3320 = vpop.f32.mrf.mxu0
  %v3321 = vadd.f32 %v3148, %v3320
  %3322 = vmatprep.mubr.bf16.mxu0 0
  %3323 = vmatmul.mubr.bf16.gmra.mxu0 %v2342
  %v3324 = vpop.f32.mrf.mxu0
  %v3325 = vadd.f32 %v3152, %v3324
  %v3326 = vpop.f32.mrf.mxu0
  %v3327 = vadd.f32 %v3154, %v3326
  %v3328 = vpop.f32.mrf.mxu0
  %v3329 = vadd.f32 %v3156, %v3328
  %v3330 = vpop.f32.mrf.mxu0
  %v3331 = vadd.f32 %v3158, %v3330
  %3332 = vmatprep.mubr.bf16.mxu0 0
  %3333 = vmatmul.mubr.bf16.gmra.mxu0 %v2345
  %v3334 = vpop.f32.mrf.mxu0
  %v3335 = vadd.f32 %v3162, %v3334
  %v3336 = vpop.f32.mrf.mxu0
  %v3337 = vadd.f32 %v3164, %v3336
  %v3338 = vpop.f32.mrf.mxu0
  %v3339 = vadd.f32 %v3166, %v3338
  %v3340 = vpop.f32.mrf.mxu0
  %v3341 = vadd.f32 %v3168, %v3340
  %3342 = vmatprep.mubr.bf16.mxu0 0
  %3343 = vmatmul.mubr.bf16.gmra.mxu0 %v2348
  %v3344 = vpop.f32.mrf.mxu0
  %v3345 = vadd.f32 %v3172, %v3344
  %v3346 = vpop.f32.mrf.mxu0
  %v3347 = vadd.f32 %v3174, %v3346
  %v3348 = vpop.f32.mrf.mxu0
  %v3349 = vadd.f32 %v3176, %v3348
  %v3350 = vpop.f32.mrf.mxu0
  %v3351 = vadd.f32 %v3178, %v3350
  %3352 = vmatprep.mubr.bf16.mxu0 0
  %3353 = vmatmul.mubr.bf16.gmra.mxu0 %v2351
  %v3354 = vpop.f32.mrf.mxu0
  %v3355 = vadd.f32 %v3182, %v3354
  %v3356 = vpop.f32.mrf.mxu0
  %v3357 = vadd.f32 %v3184, %v3356
  %v3358 = vpop.f32.mrf.mxu0
  %v3359 = vadd.f32 %v3186, %v3358
  %v3360 = vpop.f32.mrf.mxu0
  %v3361 = vadd.f32 %v3188, %v3360
  %3362 = vmatprep.mubr.bf16.mxu0 0
  %3363 = vmatmul.mubr.bf16.gmra.mxu0 %v2354
  %v3364 = vpop.f32.mrf.mxu0
  %v3365 = vadd.f32 %v3192, %v3364
  %v3366 = vpop.f32.mrf.mxu0
  %v3367 = vadd.f32 %v3194, %v3366
  %v3368 = vpop.f32.mrf.mxu0
  %v3369 = vadd.f32 %v3196, %v3368
  %v3370 = vpop.f32.mrf.mxu0
  %v3371 = vadd.f32 %v3198, %v3370
  %3372 = vmatprep.mubr.bf16.mxu0 0
  %3373 = vmatmul.mubr.bf16.gmra.mxu0 %v2357
  %v3374 = vpop.f32.mrf.mxu0
  %v3375 = vadd.f32 %v3202, %v3374
  %v3376 = vpop.f32.mrf.mxu0
  %v3377 = vadd.f32 %v3204, %v3376
  %v3378 = vpop.f32.mrf.mxu0
  %v3379 = vadd.f32 %v3206, %v3378
  %v3380 = vpop.f32.mrf.mxu0
  %v3381 = vadd.f32 %v3208, %v3380
  %3382 = vmatprep.mubr.bf16.mxu0 0
  %3383 = vmatmul.mubr.bf16.gmra.mxu0 %v2360
  %v3384 = vpop.f32.mrf.mxu0
  %v3385 = vadd.f32 %v3212, %v3384
  %v3386 = vpop.f32.mrf.mxu0
  %v3387 = vadd.f32 %v3214, %v3386
  %v3388 = vpop.f32.mrf.mxu0
  %v3389 = vadd.f32 %v3216, %v3388
  %v3390 = vpop.f32.mrf.mxu0
  %v3391 = vadd.f32 %v3218, %v3390
  %3392 = vmatprep.mubr.bf16.mxu0 0
  %3393 = vmatmul.mubr.bf16.gmra.mxu0 %v2363
  %v3394 = vpop.f32.mrf.mxu0
  %v3395 = vadd.f32 %v3222, %v3394
  %v3396 = vpop.f32.mrf.mxu0
  %v3397 = vadd.f32 %v3224, %v3396
  %v3398 = vpop.f32.mrf.mxu0
  %v3399 = vadd.f32 %v3226, %v3398
  %v3400 = vpop.f32.mrf.mxu0
  %v3401 = vadd.f32 %v3228, %v3400
  %3402 = vdwg.mxu0
  %vm3403 = vcmask 556032
  %v3404 = vsel %vm3403, %v3267, 0.0
  %v3405 = vadd.f32 %v3265, %v3404
  %3406 = vadd.xlane.f32.xlu0 %v3405
  %v3407 = vpop.xlane.xlu0 %3406
  %v3408 = vsel %vm3403, %v3271, 0.0
  %v3409 = vadd.f32 %v3269, %v3408
  %3410 = vadd.xlane.f32.xlu0 %v3409
  %v3411 = vpop.xlane.xlu0 %3410
  %v3412 = vsel %vm3403, %v3277, 0.0
  %v3413 = vadd.f32 %v3275, %v3412
  %3414 = vadd.xlane.f32.xlu0 %v3413
  %v3415 = vpop.xlane.xlu0 %3414
  %v3416 = vsel %vm3403, %v3281, 0.0
  %v3417 = vadd.f32 %v3279, %v3416
  %3418 = vadd.xlane.f32.xlu0 %v3417
  %v3419 = vpop.xlane.xlu0 %3418
  %v3420 = vsel %vm3403, %v3287, 0.0
  %v3421 = vadd.f32 %v3285, %v3420
  %3422 = vadd.xlane.f32.xlu0 %v3421
  %v3423 = vpop.xlane.xlu0 %3422
  %v3424 = vsel %vm3403, %v3291, 0.0
  %v3425 = vadd.f32 %v3289, %v3424
  %3426 = vadd.xlane.f32.xlu0 %v3425
  %v3427 = vpop.xlane.xlu0 %3426
  %v3428 = vsel %vm3403, %v3297, 0.0
  %v3429 = vadd.f32 %v3295, %v3428
  %3430 = vadd.xlane.f32.xlu0 %v3429
  %v3431 = vpop.xlane.xlu0 %3430
  %v3432 = vsel %vm3403, %v3301, 0.0
  %v3433 = vadd.f32 %v3299, %v3432
  %3434 = vadd.xlane.f32.xlu0 %v3433
  %v3435 = vpop.xlane.xlu0 %3434
  %v3436 = vsel %vm3403, %v3307, 0.0
  %v3437 = vadd.f32 %v3305, %v3436
  %3438 = vadd.xlane.f32.xlu0 %v3437
  %v3439 = vpop.xlane.xlu0 %3438
  %v3440 = vsel %vm3403, %v3311, 0.0
  %v3441 = vadd.f32 %v3309, %v3440
  %3442 = vadd.xlane.f32.xlu0 %v3441
  %v3443 = vpop.xlane.xlu0 %3442
  %v3444 = vsel %vm3403, %v3317, 0.0
  %v3445 = vadd.f32 %v3315, %v3444
  %3446 = vadd.xlane.f32.xlu0 %v3445
  %v3447 = vpop.xlane.xlu0 %3446
  %v3448 = vsel %vm3403, %v3321, 0.0
  %v3449 = vadd.f32 %v3319, %v3448
  %3450 = vadd.xlane.f32.xlu0 %v3449
  %v3451 = vpop.xlane.xlu0 %3450
  %v3452 = vsel %vm3403, %v3327, 0.0
  %v3453 = vadd.f32 %v3325, %v3452
  %3454 = vadd.xlane.f32.xlu0 %v3453
  %v3455 = vpop.xlane.xlu0 %3454
  %v3456 = vsel %vm3403, %v3331, 0.0
  %v3457 = vadd.f32 %v3329, %v3456
  %3458 = vadd.xlane.f32.xlu0 %v3457
  %v3459 = vpop.xlane.xlu0 %3458
  %v3460 = vsel %vm3403, %v3337, 0.0
  %v3461 = vadd.f32 %v3335, %v3460
  %3462 = vadd.xlane.f32.xlu0 %v3461
  %v3463 = vpop.xlane.xlu0 %3462
  %v3464 = vsel %vm3403, %v3341, 0.0
  %v3465 = vadd.f32 %v3339, %v3464
  %3466 = vadd.xlane.f32.xlu0 %v3465
  %v3467 = vpop.xlane.xlu0 %3466
  %v3468 = vsel %vm3403, %v3347, 0.0
  %v3469 = vadd.f32 %v3345, %v3468
  %3470 = vadd.xlane.f32.xlu0 %v3469
  %v3471 = vpop.xlane.xlu0 %3470
  %v3472 = vsel %vm3403, %v3351, 0.0
  %v3473 = vadd.f32 %v3349, %v3472
  %3474 = vadd.xlane.f32.xlu0 %v3473
  %v3475 = vpop.xlane.xlu0 %3474
  %v3476 = vsel %vm3403, %v3357, 0.0
  %v3477 = vadd.f32 %v3355, %v3476
  %3478 = vadd.xlane.f32.xlu0 %v3477
  %v3479 = vpop.xlane.xlu0 %3478
  %v3480 = vsel %vm3403, %v3361, 0.0
  %v3481 = vadd.f32 %v3359, %v3480
  %3482 = vadd.xlane.f32.xlu0 %v3481
  %v3483 = vpop.xlane.xlu0 %3482
  %v3484 = vsel %vm3403, %v3367, 0.0
  %v3485 = vadd.f32 %v3365, %v3484
  %3486 = vadd.xlane.f32.xlu0 %v3485
  %v3487 = vpop.xlane.xlu0 %3486
  %v3488 = vsel %vm3403, %v3371, 0.0
  %v3489 = vadd.f32 %v3369, %v3488
  %3490 = vadd.xlane.f32.xlu0 %v3489
  %v3491 = vpop.xlane.xlu0 %3490
  %v3492 = vsel %vm3403, %v3377, 0.0
  %v3493 = vadd.f32 %v3375, %v3492
  %3494 = vadd.xlane.f32.xlu0 %v3493
  %v3495 = vpop.xlane.xlu0 %3494
  %v3496 = vsel %vm3403, %v3381, 0.0
  %v3497 = vadd.f32 %v3379, %v3496
  %3498 = vadd.xlane.f32.xlu0 %v3497
  %v3499 = vpop.xlane.xlu0 %3498
  %v3500 = vsel %vm3403, %v3387, 0.0
  %v3501 = vadd.f32 %v3385, %v3500
  %3502 = vadd.xlane.f32.xlu0 %v3501
  %v3503 = vpop.xlane.xlu0 %3502
  %v3504 = vsel %vm3403, %v3391, 0.0
  %v3505 = vadd.f32 %v3389, %v3504
  %3506 = vadd.xlane.f32.xlu0 %v3505
  %v3507 = vpop.xlane.xlu0 %3506
  %v3508 = vsel %vm3403, %v3397, 0.0
  %v3509 = vadd.f32 %v3395, %v3508
  %3510 = vadd.xlane.f32.xlu0 %v3509
  %v3511 = vpop.xlane.xlu0 %3510
  %v3512 = vsel %vm3403, %v3401, 0.0
  %v3513 = vadd.f32 %v3399, %v3512
  %3514 = vadd.xlane.f32.xlu0 %v3513
  %v3515 = vpop.xlane.xlu0 %3514
  %v3516 = vmul.f32 %v3265, %v3265
  %v3517 = vmul.f32 %v3267, %v3267
  %v3518 = vmul.f32 %v3269, %v3269
  %v3519 = vmul.f32 %v3271, %v3271
  %v3520 = vmul.f32 %v3275, %v3275
  %v3521 = vmul.f32 %v3277, %v3277
  %v3522 = vmul.f32 %v3279, %v3279
  %v3523 = vmul.f32 %v3281, %v3281
  %v3524 = vmul.f32 %v3285, %v3285
  %v3525 = vmul.f32 %v3287, %v3287
  %v3526 = vmul.f32 %v3289, %v3289
  %v3527 = vmul.f32 %v3291, %v3291
  %v3528 = vmul.f32 %v3295, %v3295
  %v3529 = vmul.f32 %v3297, %v3297
  %v3530 = vmul.f32 %v3299, %v3299
  %v3531 = vmul.f32 %v3301, %v3301
  %v3532 = vmul.f32 %v3305, %v3305
  %v3533 = vmul.f32 %v3307, %v3307
  %v3534 = vmul.f32 %v3309, %v3309
  %v3535 = vmul.f32 %v3311, %v3311
  %v3536 = vmul.f32 %v3315, %v3315
  %v3537 = vmul.f32 %v3317, %v3317
  %v3538 = vmul.f32 %v3319, %v3319
  %v3539 = vmul.f32 %v3321, %v3321
  %v3540 = vmul.f32 %v3325, %v3325
  %v3541 = vmul.f32 %v3327, %v3327
  %v3542 = vmul.f32 %v3329, %v3329
  %v3543 = vmul.f32 %v3331, %v3331
  %v3544 = vmul.f32 %v3335, %v3335
  %v3545 = vmul.f32 %v3337, %v3337
  %v3546 = vmul.f32 %v3339, %v3339
  %v3547 = vmul.f32 %v3341, %v3341
  %v3548 = vmul.f32 %v3345, %v3345
  %v3549 = vmul.f32 %v3347, %v3347
  %v3550 = vmul.f32 %v3349, %v3349
  %v3551 = vmul.f32 %v3351, %v3351
  %v3552 = vmul.f32 %v3355, %v3355
  %v3553 = vmul.f32 %v3357, %v3357
  %v3554 = vmul.f32 %v3359, %v3359
  %v3555 = vmul.f32 %v3361, %v3361
  %v3556 = vmul.f32 %v3365, %v3365
  %v3557 = vmul.f32 %v3367, %v3367
  %v3558 = vmul.f32 %v3369, %v3369
  %v3559 = vmul.f32 %v3371, %v3371
  %v3560 = vmul.f32 %v3375, %v3375
  %v3561 = vmul.f32 %v3377, %v3377
  %v3562 = vmul.f32 %v3379, %v3379
  %v3563 = vmul.f32 %v3381, %v3381
  %v3564 = vmul.f32 %v3385, %v3385
  %v3565 = vmul.f32 %v3387, %v3387
  %v3566 = vmul.f32 %v3389, %v3389
  %v3567 = vmul.f32 %v3391, %v3391
  %v3568 = vmul.f32 %v3395, %v3395
  %v3569 = vmul.f32 %v3397, %v3397
  %v3570 = vmul.f32 %v3399, %v3399
  %v3571 = vmul.f32 %v3401, %v3401
  %v3572 = vsel %vm3403, %v3517, 0.0
  %v3573 = vadd.f32 %v3516, %v3572
  %3574 = vadd.xlane.f32.xlu0 %v3573
  %v3575 = vpop.xlane.xlu0 %3574
  %v3576 = vsel %vm3403, %v3519, 0.0
  %v3577 = vadd.f32 %v3518, %v3576
  %3578 = vadd.xlane.f32.xlu0 %v3577
  %v3579 = vpop.xlane.xlu0 %3578
  %v3580 = vsel %vm3403, %v3521, 0.0
  %v3581 = vadd.f32 %v3520, %v3580
  %3582 = vadd.xlane.f32.xlu0 %v3581
  %v3583 = vpop.xlane.xlu0 %3582
  %v3584 = vsel %vm3403, %v3523, 0.0
  %v3585 = vadd.f32 %v3522, %v3584
  %3586 = vadd.xlane.f32.xlu0 %v3585
  %v3587 = vpop.xlane.xlu0 %3586
  %v3588 = vsel %vm3403, %v3525, 0.0
  %v3589 = vadd.f32 %v3524, %v3588
  %3590 = vadd.xlane.f32.xlu0 %v3589
  %v3591 = vpop.xlane.xlu0 %3590
  %v3592 = vsel %vm3403, %v3527, 0.0
  %v3593 = vadd.f32 %v3526, %v3592
  %3594 = vadd.xlane.f32.xlu0 %v3593
  %v3595 = vpop.xlane.xlu0 %3594
  %v3596 = vsel %vm3403, %v3529, 0.0
  %v3597 = vadd.f32 %v3528, %v3596
  %3598 = vadd.xlane.f32.xlu0 %v3597
  %v3599 = vpop.xlane.xlu0 %3598
  %v3600 = vsel %vm3403, %v3531, 0.0
  %v3601 = vadd.f32 %v3530, %v3600
  %3602 = vadd.xlane.f32.xlu0 %v3601
  %v3603 = vpop.xlane.xlu0 %3602
  %v3604 = vsel %vm3403, %v3533, 0.0
  %v3605 = vadd.f32 %v3532, %v3604
  %3606 = vadd.xlane.f32.xlu0 %v3605
  %v3607 = vpop.xlane.xlu0 %3606
  %v3608 = vsel %vm3403, %v3535, 0.0
  %v3609 = vadd.f32 %v3534, %v3608
  %3610 = vadd.xlane.f32.xlu0 %v3609
  %v3611 = vpop.xlane.xlu0 %3610
  %v3612 = vsel %vm3403, %v3537, 0.0
  %v3613 = vadd.f32 %v3536, %v3612
  %3614 = vadd.xlane.f32.xlu0 %v3613
  %v3615 = vpop.xlane.xlu0 %3614
  %v3616 = vsel %vm3403, %v3539, 0.0
  %v3617 = vadd.f32 %v3538, %v3616
  %3618 = vadd.xlane.f32.xlu0 %v3617
  %v3619 = vpop.xlane.xlu0 %3618
  %v3620 = vsel %vm3403, %v3541, 0.0
  %v3621 = vadd.f32 %v3540, %v3620
  %3622 = vadd.xlane.f32.xlu0 %v3621
  %v3623 = vpop.xlane.xlu0 %3622
  %v3624 = vsel %vm3403, %v3543, 0.0
  %v3625 = vadd.f32 %v3542, %v3624
  %3626 = vadd.xlane.f32.xlu0 %v3625
  %v3627 = vpop.xlane.xlu0 %3626
  %v3628 = vsel %vm3403, %v3545, 0.0
  %v3629 = vadd.f32 %v3544, %v3628
  %3630 = vadd.xlane.f32.xlu0 %v3629
  %v3631 = vpop.xlane.xlu0 %3630
  %v3632 = vsel %vm3403, %v3547, 0.0
  %v3633 = vadd.f32 %v3546, %v3632
  %3634 = vadd.xlane.f32.xlu0 %v3633
  %v3635 = vpop.xlane.xlu0 %3634
  %v3636 = vsel %vm3403, %v3549, 0.0
  %v3637 = vadd.f32 %v3548, %v3636
  %3638 = vadd.xlane.f32.xlu0 %v3637
  %v3639 = vpop.xlane.xlu0 %3638
  %v3640 = vsel %vm3403, %v3551, 0.0
  %v3641 = vadd.f32 %v3550, %v3640
  %3642 = vadd.xlane.f32.xlu0 %v3641
  %v3643 = vpop.xlane.xlu0 %3642
  %v3644 = vsel %vm3403, %v3553, 0.0
  %v3645 = vadd.f32 %v3552, %v3644
  %3646 = vadd.xlane.f32.xlu0 %v3645
  %v3647 = vpop.xlane.xlu0 %3646
  %v3648 = vsel %vm3403, %v3555, 0.0
  %v3649 = vadd.f32 %v3554, %v3648
  %3650 = vadd.xlane.f32.xlu0 %v3649
  %v3651 = vpop.xlane.xlu0 %3650
  %v3652 = vsel %vm3403, %v3557, 0.0
  %v3653 = vadd.f32 %v3556, %v3652
  %3654 = vadd.xlane.f32.xlu0 %v3653
  %v3655 = vpop.xlane.xlu0 %3654
  %v3656 = vsel %vm3403, %v3559, 0.0
  %v3657 = vadd.f32 %v3558, %v3656
  %3658 = vadd.xlane.f32.xlu0 %v3657
  %v3659 = vpop.xlane.xlu0 %3658
  %v3660 = vsel %vm3403, %v3561, 0.0
  %v3661 = vadd.f32 %v3560, %v3660
  %3662 = vadd.xlane.f32.xlu0 %v3661
  %v3663 = vpop.xlane.xlu0 %3662
  %v3664 = vsel %vm3403, %v3563, 0.0
  %v3665 = vadd.f32 %v3562, %v3664
  %3666 = vadd.xlane.f32.xlu0 %v3665
  %v3667 = vpop.xlane.xlu0 %3666
  %v3668 = vsel %vm3403, %v3565, 0.0
  %v3669 = vadd.f32 %v3564, %v3668
  %3670 = vadd.xlane.f32.xlu0 %v3669
  %v3671 = vpop.xlane.xlu0 %3670
  %v3672 = vsel %vm3403, %v3567, 0.0
  %v3673 = vadd.f32 %v3566, %v3672
  %3674 = vadd.xlane.f32.xlu0 %v3673
  %v3675 = vpop.xlane.xlu0 %3674
  %v3676 = vsel %vm3403, %v3569, 0.0
  %v3677 = vadd.f32 %v3568, %v3676
  %3678 = vadd.xlane.f32.xlu0 %v3677
  %v3679 = vpop.xlane.xlu0 %3678
  %v3680 = vsel %vm3403, %v3571, 0.0
  %v3681 = vadd.f32 %v3570, %v3680
  %3682 = vadd.xlane.f32.xlu0 %v3681
  %v3683 = vpop.xlane.xlu0 %3682
  %v3684 = vmul.f32 %v3407, 0.0051020407
  %v3685 = vmul.f32 %v3411, 0.0051020407
  %v3686 = vmul.f32 %v3415, 0.0051020407
  %v3687 = vmul.f32 %v3419, 0.0051020407
  %v3688 = vmul.f32 %v3423, 0.0051020407
  %v3689 = vmul.f32 %v3427, 0.0051020407
  %v3690 = vmul.f32 %v3431, 0.0051020407
  %v3691 = vmul.f32 %v3435, 0.0051020407
  %v3692 = vmul.f32 %v3439, 0.0051020407
  %v3693 = vmul.f32 %v3443, 0.0051020407
  %v3694 = vmul.f32 %v3447, 0.0051020407
  %v3695 = vmul.f32 %v3451, 0.0051020407
  %v3696 = vmul.f32 %v3455, 0.0051020407
  %v3697 = vmul.f32 %v3459, 0.0051020407
  %v3698 = vmul.f32 %v3463, 0.0051020407
  %v3699 = vmul.f32 %v3467, 0.0051020407
  %v3700 = vmul.f32 %v3471, 0.0051020407
  %v3701 = vmul.f32 %v3475, 0.0051020407
  %v3702 = vmul.f32 %v3479, 0.0051020407
  %v3703 = vmul.f32 %v3483, 0.0051020407
  %v3704 = vmul.f32 %v3487, 0.0051020407
  %v3705 = vmul.f32 %v3491, 0.0051020407
  %v3706 = vmul.f32 %v3495, 0.0051020407
  %v3707 = vmul.f32 %v3499, 0.0051020407
  %v3708 = vmul.f32 %v3503, 0.0051020407
  %v3709 = vmul.f32 %v3507, 0.0051020407
  %v3710 = vmul.f32 %v3511, 0.0051020407
  %v3711 = vmul.f32 %v3515, 0.0051020407
  %v3712 = vmul.f32 %v3575, 0.0051020407
  %v3713 = vmul.f32 %v3579, 0.0051020407
  %v3714 = vmul.f32 %v3583, 0.0051020407
  %v3715 = vmul.f32 %v3587, 0.0051020407
  %v3716 = vmul.f32 %v3591, 0.0051020407
  %v3717 = vmul.f32 %v3595, 0.0051020407
  %v3718 = vmul.f32 %v3599, 0.0051020407
  %v3719 = vmul.f32 %v3603, 0.0051020407
  %v3720 = vmul.f32 %v3607, 0.0051020407
  %v3721 = vmul.f32 %v3611, 0.0051020407
  %v3722 = vmul.f32 %v3615, 0.0051020407
  %v3723 = vmul.f32 %v3619, 0.0051020407
  %v3724 = vmul.f32 %v3623, 0.0051020407
  %v3725 = vmul.f32 %v3627, 0.0051020407
  %v3726 = vmul.f32 %v3631, 0.0051020407
  %v3727 = vmul.f32 %v3635, 0.0051020407
  %v3728 = vmul.f32 %v3639, 0.0051020407
  %v3729 = vmul.f32 %v3643, 0.0051020407
  %v3730 = vmul.f32 %v3647, 0.0051020407
  %v3731 = vmul.f32 %v3651, 0.0051020407
  %v3732 = vmul.f32 %v3655, 0.0051020407
  %v3733 = vmul.f32 %v3659, 0.0051020407
  %v3734 = vmul.f32 %v3663, 0.0051020407
  %v3735 = vmul.f32 %v3667, 0.0051020407
  %v3736 = vmul.f32 %v3671, 0.0051020407
  %v3737 = vmul.f32 %v3675, 0.0051020407
  %v3738 = vmul.f32 %v3679, 0.0051020407
  %v3739 = vmul.f32 %v3683, 0.0051020407
  %v3740 = vmul.f32 %v3684, %v3684
  %v3741 = vmul.f32 %v3685, %v3685
  %v3742 = vmul.f32 %v3686, %v3686
  %v3743 = vmul.f32 %v3687, %v3687
  %v3744 = vmul.f32 %v3688, %v3688
  %v3745 = vmul.f32 %v3689, %v3689
  %v3746 = vmul.f32 %v3690, %v3690
  %v3747 = vmul.f32 %v3691, %v3691
  %v3748 = vmul.f32 %v3692, %v3692
  %v3749 = vmul.f32 %v3693, %v3693
  %v3750 = vmul.f32 %v3694, %v3694
  %v3751 = vmul.f32 %v3695, %v3695
  %v3752 = vmul.f32 %v3696, %v3696
  %v3753 = vmul.f32 %v3697, %v3697
  %v3754 = vmul.f32 %v3698, %v3698
  %v3755 = vmul.f32 %v3699, %v3699
  %v3756 = vmul.f32 %v3700, %v3700
  %v3757 = vmul.f32 %v3701, %v3701
  %v3758 = vmul.f32 %v3702, %v3702
  %v3759 = vmul.f32 %v3703, %v3703
  %v3760 = vmul.f32 %v3704, %v3704
  %v3761 = vmul.f32 %v3705, %v3705
  %v3762 = vmul.f32 %v3706, %v3706
  %v3763 = vmul.f32 %v3707, %v3707
  %v3764 = vmul.f32 %v3708, %v3708
  %v3765 = vmul.f32 %v3709, %v3709
  %v3766 = vmul.f32 %v3710, %v3710
  %v3767 = vmul.f32 %v3711, %v3711
  %v3768 = vsub.f32 %v3712, %v3740
  %v3769 = vsub.f32 %v3713, %v3741
  %v3770 = vsub.f32 %v3714, %v3742
  %v3771 = vsub.f32 %v3715, %v3743
  %v3772 = vsub.f32 %v3716, %v3744
  %v3773 = vsub.f32 %v3717, %v3745
  %v3774 = vsub.f32 %v3718, %v3746
  %v3775 = vsub.f32 %v3719, %v3747
  %v3776 = vsub.f32 %v3720, %v3748
  %v3777 = vsub.f32 %v3721, %v3749
  %v3778 = vsub.f32 %v3722, %v3750
  %v3779 = vsub.f32 %v3723, %v3751
  %v3780 = vsub.f32 %v3724, %v3752
  %v3781 = vsub.f32 %v3725, %v3753
  %v3782 = vsub.f32 %v3726, %v3754
  %v3783 = vsub.f32 %v3727, %v3755
  %v3784 = vsub.f32 %v3728, %v3756
  %v3785 = vsub.f32 %v3729, %v3757
  %v3786 = vsub.f32 %v3730, %v3758
  %v3787 = vsub.f32 %v3731, %v3759
  %v3788 = vsub.f32 %v3732, %v3760
  %v3789 = vsub.f32 %v3733, %v3761
  %v3790 = vsub.f32 %v3734, %v3762
  %v3791 = vsub.f32 %v3735, %v3763
  %v3792 = vsub.f32 %v3736, %v3764
  %v3793 = vsub.f32 %v3737, %v3765
  %v3794 = vsub.f32 %v3738, %v3766
  %v3795 = vsub.f32 %v3739, %v3767
  %v3796 = vmax.f32 %v3768, 0.0
  %v3797 = vmax.f32 %v3769, 0.0
  %v3798 = vmax.f32 %v3770, 0.0
  %v3799 = vmax.f32 %v3771, 0.0
  %v3800 = vmax.f32 %v3772, 0.0
  %v3801 = vmax.f32 %v3773, 0.0
  %v3802 = vmax.f32 %v3774, 0.0
  %v3803 = vmax.f32 %v3775, 0.0
  %v3804 = vmax.f32 %v3776, 0.0
  %v3805 = vmax.f32 %v3777, 0.0
  %v3806 = vmax.f32 %v3778, 0.0
  %v3807 = vmax.f32 %v3779, 0.0
  %v3808 = vmax.f32 %v3780, 0.0
  %v3809 = vmax.f32 %v3781, 0.0
  %v3810 = vmax.f32 %v3782, 0.0
  %v3811 = vmax.f32 %v3783, 0.0
  %v3812 = vmax.f32 %v3784, 0.0
  %v3813 = vmax.f32 %v3785, 0.0
  %v3814 = vmax.f32 %v3786, 0.0
  %v3815 = vmax.f32 %v3787, 0.0
  %v3816 = vmax.f32 %v3788, 0.0
  %v3817 = vmax.f32 %v3789, 0.0
  %v3818 = vmax.f32 %v3790, 0.0
  %v3819 = vmax.f32 %v3791, 0.0
  %v3820 = vmax.f32 %v3792, 0.0
  %v3821 = vmax.f32 %v3793, 0.0
  %v3822 = vmax.f32 %v3794, 0.0
  %v3823 = vmax.f32 %v3795, 0.0
  %v3824 = vld [vmem:[%s3] sm:$0xff]
  %v3825 = vld [vmem:[%s3 + $0x8] sm:$0xff]
  %v3826 = vld [vmem:[%s3 + $0x10] sm:$0xff]
  %v3827 = vld [vmem:[%s3 + $0x18] sm:$0xff]
  %v3828 = vld [vmem:[%s3 + $0x20] sm:$0xff]
  %v3829 = vld [vmem:[%s3 + $0x28] sm:$0xff]
  %v3830 = vld [vmem:[%s3 + $0x30] sm:$0xff]
  %v3831 = vld [vmem:[%s3 + $0x38] sm:$0xff]
  %v3832 = vld [vmem:[%s3 + $0x40] sm:$0xff]
  %v3833 = vld [vmem:[%s3 + $0x48] sm:$0xff]
  %v3834 = vld [vmem:[%s3 + $0x50] sm:$0xff]
  %v3835 = vld [vmem:[%s3 + $0x58] sm:$0xff]
  %v3836 = vld [vmem:[%s3 + $0x60] sm:$0xff]
  %v3837 = vld [vmem:[%s3 + $0x68] sm:$0xff]
  %v3838 = vld [vmem:[%s3 + $0x70] sm:$0xff]
  %v3839 = vld [vmem:[%s3 + $0x78] sm:$0xff]
  %v3840 = vld [vmem:[%s3 + $0x80] sm:$0xff]
  %v3841 = vld [vmem:[%s3 + $0x88] sm:$0xff]
  %v3842 = vld [vmem:[%s3 + $0x90] sm:$0xff]
  %v3843 = vld [vmem:[%s3 + $0x98] sm:$0xff]
  %v3844 = vld [vmem:[%s3 + $0xa0] sm:$0xff]
  %v3845 = vld [vmem:[%s3 + $0xa8] sm:$0xff]
  %v3846 = vld [vmem:[%s3 + $0xb0] sm:$0xff]
  %v3847 = vld [vmem:[%s3 + $0xb8] sm:$0xff]
  %v3848 = vld [vmem:[%s3 + $0xc0] sm:$0xff]
  %v3849 = vld [vmem:[%s3 + $0xc8] sm:$0xff]
  %v3850 = vld [vmem:[%s3 + $0xd0] sm:$0xff]
  %v3851 = vld [vmem:[%s3 + $0xd8] sm:$0xff]
  %v3852 = vadd.f32 %v3796, 1e-05
  %v3853 = vadd.f32 %v3797, 1e-05
  %v3854 = vadd.f32 %v3798, 1e-05
  %v3855 = vadd.f32 %v3799, 1e-05
  %v3856 = vadd.f32 %v3800, 1e-05
  %v3857 = vadd.f32 %v3801, 1e-05
  %v3858 = vadd.f32 %v3802, 1e-05
  %v3859 = vadd.f32 %v3803, 1e-05
  %v3860 = vadd.f32 %v3804, 1e-05
  %v3861 = vadd.f32 %v3805, 1e-05
  %v3862 = vadd.f32 %v3806, 1e-05
  %v3863 = vadd.f32 %v3807, 1e-05
  %v3864 = vadd.f32 %v3808, 1e-05
  %v3865 = vadd.f32 %v3809, 1e-05
  %v3866 = vadd.f32 %v3810, 1e-05
  %v3867 = vadd.f32 %v3811, 1e-05
  %v3868 = vadd.f32 %v3812, 1e-05
  %v3869 = vadd.f32 %v3813, 1e-05
  %v3870 = vadd.f32 %v3814, 1e-05
  %v3871 = vadd.f32 %v3815, 1e-05
  %v3872 = vadd.f32 %v3816, 1e-05
  %v3873 = vadd.f32 %v3817, 1e-05
  %v3874 = vadd.f32 %v3818, 1e-05
  %v3875 = vadd.f32 %v3819, 1e-05
  %v3876 = vadd.f32 %v3820, 1e-05
  %v3877 = vadd.f32 %v3821, 1e-05
  %v3878 = vadd.f32 %v3822, 1e-05
  %v3879 = vadd.f32 %v3823, 1e-05
  %v3880 = vrsqrt.pop %v3852
  %v3881 = vrsqrt.pop %v3853
  %v3882 = vrsqrt.pop %v3854
  %v3883 = vrsqrt.pop %v3855
  %v3884 = vrsqrt.pop %v3856
  %v3885 = vrsqrt.pop %v3857
  %v3886 = vrsqrt.pop %v3858
  %v3887 = vrsqrt.pop %v3859
  %v3888 = vrsqrt.pop %v3860
  %v3889 = vrsqrt.pop %v3861
  %v3890 = vrsqrt.pop %v3862
  %v3891 = vrsqrt.pop %v3863
  %v3892 = vrsqrt.pop %v3864
  %v3893 = vrsqrt.pop %v3865
  %v3894 = vrsqrt.pop %v3866
  %v3895 = vrsqrt.pop %v3867
  %v3896 = vrsqrt.pop %v3868
  %v3897 = vrsqrt.pop %v3869
  %v3898 = vrsqrt.pop %v3870
  %v3899 = vrsqrt.pop %v3871
  %v3900 = vrsqrt.pop %v3872
  %v3901 = vrsqrt.pop %v3873
  %v3902 = vrsqrt.pop %v3874
  %v3903 = vrsqrt.pop %v3875
  %v3904 = vrsqrt.pop %v3876
  %v3905 = vrsqrt.pop %v3877
  %v3906 = vrsqrt.pop %v3878
  %v3907 = vrsqrt.pop %v3879
  %v3908 = vmul.f32 %v3824, %v3880
  %v3909 = vmul.f32 %v3825, %v3881
  %v3910 = vmul.f32 %v3826, %v3882
  %v3911 = vmul.f32 %v3827, %v3883
  %v3912 = vmul.f32 %v3828, %v3884
  %v3913 = vmul.f32 %v3829, %v3885
  %v3914 = vmul.f32 %v3830, %v3886
  %v3915 = vmul.f32 %v3831, %v3887
  %v3916 = vmul.f32 %v3832, %v3888
  %v3917 = vmul.f32 %v3833, %v3889
  %v3918 = vmul.f32 %v3834, %v3890
  %v3919 = vmul.f32 %v3835, %v3891
  %v3920 = vmul.f32 %v3836, %v3892
  %v3921 = vmul.f32 %v3837, %v3893
  %v3922 = vmul.f32 %v3838, %v3894
  %v3923 = vmul.f32 %v3839, %v3895
  %v3924 = vmul.f32 %v3840, %v3896
  %v3925 = vmul.f32 %v3841, %v3897
  %v3926 = vmul.f32 %v3842, %v3898
  %v3927 = vmul.f32 %v3843, %v3899
  %v3928 = vmul.f32 %v3844, %v3900
  %v3929 = vmul.f32 %v3845, %v3901
  %v3930 = vmul.f32 %v3846, %v3902
  %v3931 = vmul.f32 %v3847, %v3903
  %v3932 = vmul.f32 %v3848, %v3904
  %v3933 = vmul.f32 %v3849, %v3905
  %v3934 = vmul.f32 %v3850, %v3906
  %v3935 = vmul.f32 %v3851, %v3907
  %v3936 = vld [vmem:[%s4] sm:$0xff]
  %v3937 = vld [vmem:[%s4 + $0x8] sm:$0xff]
  %v3938 = vld [vmem:[%s4 + $0x10] sm:$0xff]
  %v3939 = vld [vmem:[%s4 + $0x18] sm:$0xff]
  %v3940 = vld [vmem:[%s4 + $0x20] sm:$0xff]
  %v3941 = vld [vmem:[%s4 + $0x28] sm:$0xff]
  %v3942 = vld [vmem:[%s4 + $0x30] sm:$0xff]
  %v3943 = vld [vmem:[%s4 + $0x38] sm:$0xff]
  %v3944 = vld [vmem:[%s4 + $0x40] sm:$0xff]
  %v3945 = vld [vmem:[%s4 + $0x48] sm:$0xff]
  %v3946 = vld [vmem:[%s4 + $0x50] sm:$0xff]
  %v3947 = vld [vmem:[%s4 + $0x58] sm:$0xff]
  %v3948 = vld [vmem:[%s4 + $0x60] sm:$0xff]
  %v3949 = vld [vmem:[%s4 + $0x68] sm:$0xff]
  %v3950 = vld [vmem:[%s4 + $0x70] sm:$0xff]
  %v3951 = vld [vmem:[%s4 + $0x78] sm:$0xff]
  %v3952 = vld [vmem:[%s4 + $0x80] sm:$0xff]
  %v3953 = vld [vmem:[%s4 + $0x88] sm:$0xff]
  %v3954 = vld [vmem:[%s4 + $0x90] sm:$0xff]
  %v3955 = vld [vmem:[%s4 + $0x98] sm:$0xff]
  %v3956 = vld [vmem:[%s4 + $0xa0] sm:$0xff]
  %v3957 = vld [vmem:[%s4 + $0xa8] sm:$0xff]
  %v3958 = vld [vmem:[%s4 + $0xb0] sm:$0xff]
  %v3959 = vld [vmem:[%s4 + $0xb8] sm:$0xff]
  %v3960 = vld [vmem:[%s4 + $0xc0] sm:$0xff]
  %v3961 = vld [vmem:[%s4 + $0xc8] sm:$0xff]
  %v3962 = vld [vmem:[%s4 + $0xd0] sm:$0xff]
  %v3963 = vld [vmem:[%s4 + $0xd8] sm:$0xff]
  %v3964 = vmul.f32 %v3684, %v3908
  %v3965 = vmul.f32 %v3685, %v3909
  %v3966 = vmul.f32 %v3686, %v3910
  %v3967 = vmul.f32 %v3687, %v3911
  %v3968 = vmul.f32 %v3688, %v3912
  %v3969 = vmul.f32 %v3689, %v3913
  %v3970 = vmul.f32 %v3690, %v3914
  %v3971 = vmul.f32 %v3691, %v3915
  %v3972 = vmul.f32 %v3692, %v3916
  %v3973 = vmul.f32 %v3693, %v3917
  %v3974 = vmul.f32 %v3694, %v3918
  %v3975 = vmul.f32 %v3695, %v3919
  %v3976 = vmul.f32 %v3696, %v3920
  %v3977 = vmul.f32 %v3697, %v3921
  %v3978 = vmul.f32 %v3698, %v3922
  %v3979 = vmul.f32 %v3699, %v3923
  %v3980 = vmul.f32 %v3700, %v3924
  %v3981 = vmul.f32 %v3701, %v3925
  %v3982 = vmul.f32 %v3702, %v3926
  %v3983 = vmul.f32 %v3703, %v3927
  %v3984 = vmul.f32 %v3704, %v3928
  %v3985 = vmul.f32 %v3705, %v3929
  %v3986 = vmul.f32 %v3706, %v3930
  %v3987 = vmul.f32 %v3707, %v3931
  %v3988 = vmul.f32 %v3708, %v3932
  %v3989 = vmul.f32 %v3709, %v3933
  %v3990 = vmul.f32 %v3710, %v3934
  %v3991 = vmul.f32 %v3711, %v3935
  %v3992 = vsub.f32 %v3936, %v3964
  %v3993 = vsub.f32 %v3937, %v3965
  %v3994 = vsub.f32 %v3938, %v3966
  %v3995 = vsub.f32 %v3939, %v3967
  %v3996 = vsub.f32 %v3940, %v3968
  %v3997 = vsub.f32 %v3941, %v3969
  %v3998 = vsub.f32 %v3942, %v3970
  %v3999 = vsub.f32 %v3943, %v3971
  %v4000 = vsub.f32 %v3944, %v3972
  %v4001 = vsub.f32 %v3945, %v3973
  %v4002 = vsub.f32 %v3946, %v3974
  %v4003 = vsub.f32 %v3947, %v3975
  %v4004 = vsub.f32 %v3948, %v3976
  %v4005 = vsub.f32 %v3949, %v3977
  %v4006 = vsub.f32 %v3950, %v3978
  %v4007 = vsub.f32 %v3951, %v3979
  %v4008 = vsub.f32 %v3952, %v3980
  %v4009 = vsub.f32 %v3953, %v3981
  %v4010 = vsub.f32 %v3954, %v3982
  %v4011 = vsub.f32 %v3955, %v3983
  %v4012 = vsub.f32 %v3956, %v3984
  %v4013 = vsub.f32 %v3957, %v3985
  %v4014 = vsub.f32 %v3958, %v3986
  %v4015 = vsub.f32 %v3959, %v3987
  %v4016 = vsub.f32 %v3960, %v3988
  %v4017 = vsub.f32 %v3961, %v3989
  %v4018 = vsub.f32 %v3962, %v3990
  %v4019 = vsub.f32 %v3963, %v3991
  %4021 = vset.pattern.permute.xlu0 0
  %4022 = vperm.xlu0 %4021, %v3908
  %v4023 = vpop.permute.xlu0 %4022
  %4026 = vset.pattern.permute.xlu0 0
  %4027 = vperm.xlu0 %4026, %v3909
  %v4028 = vpop.permute.xlu0 %4027
  %4031 = vset.pattern.permute.xlu0 0
  %4032 = vperm.xlu0 %4031, %v3910
  %v4033 = vpop.permute.xlu0 %4032
  %4036 = vset.pattern.permute.xlu0 0
  %4037 = vperm.xlu0 %4036, %v3911
  %v4038 = vpop.permute.xlu0 %4037
  %4041 = vset.pattern.permute.xlu0 0
  %4042 = vperm.xlu0 %4041, %v3912
  %v4043 = vpop.permute.xlu0 %4042
  %4046 = vset.pattern.permute.xlu0 0
  %4047 = vperm.xlu0 %4046, %v3913
  %v4048 = vpop.permute.xlu0 %4047
  %4051 = vset.pattern.permute.xlu0 0
  %4052 = vperm.xlu0 %4051, %v3914
  %v4053 = vpop.permute.xlu0 %4052
  %4056 = vset.pattern.permute.xlu0 0
  %4057 = vperm.xlu0 %4056, %v3915
  %v4058 = vpop.permute.xlu0 %4057
  %4061 = vset.pattern.permute.xlu0 0
  %4062 = vperm.xlu0 %4061, %v3916
  %v4063 = vpop.permute.xlu0 %4062
  %4066 = vset.pattern.permute.xlu0 0
  %4067 = vperm.xlu0 %4066, %v3917
  %v4068 = vpop.permute.xlu0 %4067
  %4071 = vset.pattern.permute.xlu0 0
  %4072 = vperm.xlu0 %4071, %v3918
  %v4073 = vpop.permute.xlu0 %4072
  %4076 = vset.pattern.permute.xlu0 0
  %4077 = vperm.xlu0 %4076, %v3919
  %v4078 = vpop.permute.xlu0 %4077
  %4081 = vset.pattern.permute.xlu0 0
  %4082 = vperm.xlu0 %4081, %v3920
  %v4083 = vpop.permute.xlu0 %4082
  %4086 = vset.pattern.permute.xlu0 0
  %4087 = vperm.xlu0 %4086, %v3921
  %v4088 = vpop.permute.xlu0 %4087
  %4091 = vset.pattern.permute.xlu0 0
  %4092 = vperm.xlu0 %4091, %v3922
  %v4093 = vpop.permute.xlu0 %4092
  %4096 = vset.pattern.permute.xlu0 0
  %4097 = vperm.xlu0 %4096, %v3923
  %v4098 = vpop.permute.xlu0 %4097
  %4101 = vset.pattern.permute.xlu0 0
  %4102 = vperm.xlu0 %4101, %v3924
  %v4103 = vpop.permute.xlu0 %4102
  %4106 = vset.pattern.permute.xlu0 0
  %4107 = vperm.xlu0 %4106, %v3925
  %v4108 = vpop.permute.xlu0 %4107
  %4111 = vset.pattern.permute.xlu0 0
  %4112 = vperm.xlu0 %4111, %v3926
  %v4113 = vpop.permute.xlu0 %4112
  %4116 = vset.pattern.permute.xlu0 0
  %4117 = vperm.xlu0 %4116, %v3927
  %v4118 = vpop.permute.xlu0 %4117
  %4121 = vset.pattern.permute.xlu0 0
  %4122 = vperm.xlu0 %4121, %v3928
  %v4123 = vpop.permute.xlu0 %4122
  %4126 = vset.pattern.permute.xlu0 0
  %4127 = vperm.xlu0 %4126, %v3929
  %v4128 = vpop.permute.xlu0 %4127
  %4131 = vset.pattern.permute.xlu0 0
  %4132 = vperm.xlu0 %4131, %v3930
  %v4133 = vpop.permute.xlu0 %4132
  %4136 = vset.pattern.permute.xlu0 0
  %4137 = vperm.xlu0 %4136, %v3931
  %v4138 = vpop.permute.xlu0 %4137
  %4141 = vset.pattern.permute.xlu0 0
  %4142 = vperm.xlu0 %4141, %v3932
  %v4143 = vpop.permute.xlu0 %4142
  %4146 = vset.pattern.permute.xlu0 0
  %4147 = vperm.xlu0 %4146, %v3933
  %v4148 = vpop.permute.xlu0 %4147
  %4151 = vset.pattern.permute.xlu0 0
  %4152 = vperm.xlu0 %4151, %v3934
  %v4153 = vpop.permute.xlu0 %4152
  %4156 = vset.pattern.permute.xlu0 0
  %4157 = vperm.xlu0 %4156, %v3935
  %v4158 = vpop.permute.xlu0 %4157
  %v4160 = vmul.f32 %v3265, %v4023
  %v4161 = vmul.f32 %v3267, %v4023
  %v4162 = vmul.f32 %v3269, %v4028
  %v4163 = vmul.f32 %v3271, %v4028
  %v4164 = vmul.f32 %v3275, %v4033
  %v4165 = vmul.f32 %v3277, %v4033
  %v4166 = vmul.f32 %v3279, %v4038
  %v4167 = vmul.f32 %v3281, %v4038
  %v4168 = vmul.f32 %v3285, %v4043
  %v4169 = vmul.f32 %v3287, %v4043
  %v4170 = vmul.f32 %v3289, %v4048
  %v4171 = vmul.f32 %v3291, %v4048
  %v4172 = vmul.f32 %v3295, %v4053
  %v4173 = vmul.f32 %v3297, %v4053
  %v4174 = vmul.f32 %v3299, %v4058
  %v4175 = vmul.f32 %v3301, %v4058
  %v4176 = vmul.f32 %v3305, %v4063
  %v4177 = vmul.f32 %v3307, %v4063
  %v4178 = vmul.f32 %v3309, %v4068
  %v4179 = vmul.f32 %v3311, %v4068
  %v4180 = vmul.f32 %v3315, %v4073
  %v4181 = vmul.f32 %v3317, %v4073
  %v4182 = vmul.f32 %v3319, %v4078
  %v4183 = vmul.f32 %v3321, %v4078
  %v4184 = vmul.f32 %v3325, %v4083
  %v4185 = vmul.f32 %v3327, %v4083
  %v4186 = vmul.f32 %v3329, %v4088
  %v4187 = vmul.f32 %v3331, %v4088
  %v4188 = vmul.f32 %v3335, %v4093
  %v4189 = vmul.f32 %v3337, %v4093
  %v4190 = vmul.f32 %v3339, %v4098
  %v4191 = vmul.f32 %v3341, %v4098
  %v4192 = vmul.f32 %v3345, %v4103
  %v4193 = vmul.f32 %v3347, %v4103
  %v4194 = vmul.f32 %v3349, %v4108
  %v4195 = vmul.f32 %v3351, %v4108
  %v4196 = vmul.f32 %v3355, %v4113
  %v4197 = vmul.f32 %v3357, %v4113
  %v4198 = vmul.f32 %v3359, %v4118
  %v4199 = vmul.f32 %v3361, %v4118
  %v4200 = vmul.f32 %v3365, %v4123
  %v4201 = vmul.f32 %v3367, %v4123
  %v4202 = vmul.f32 %v3369, %v4128
  %v4203 = vmul.f32 %v3371, %v4128
  %v4204 = vmul.f32 %v3375, %v4133
  %v4205 = vmul.f32 %v3377, %v4133
  %v4206 = vmul.f32 %v3379, %v4138
  %v4207 = vmul.f32 %v3381, %v4138
  %v4208 = vmul.f32 %v3385, %v4143
  %v4209 = vmul.f32 %v3387, %v4143
  %v4210 = vmul.f32 %v3389, %v4148
  %v4211 = vmul.f32 %v3391, %v4148
  %v4212 = vmul.f32 %v3395, %v4153
  %v4213 = vmul.f32 %v3397, %v4153
  %v4214 = vmul.f32 %v3399, %v4158
  %v4215 = vmul.f32 %v3401, %v4158
  %4217 = vset.pattern.permute.xlu0 0
  %4218 = vperm.xlu0 %4217, %v3992
  %v4219 = vpop.permute.xlu0 %4218
  %4222 = vset.pattern.permute.xlu0 0
  %4223 = vperm.xlu0 %4222, %v3993
  %v4224 = vpop.permute.xlu0 %4223
  %4227 = vset.pattern.permute.xlu0 0
  %4228 = vperm.xlu0 %4227, %v3994
  %v4229 = vpop.permute.xlu0 %4228
  %4232 = vset.pattern.permute.xlu0 0
  %4233 = vperm.xlu0 %4232, %v3995
  %v4234 = vpop.permute.xlu0 %4233
  %4237 = vset.pattern.permute.xlu0 0
  %4238 = vperm.xlu0 %4237, %v3996
  %v4239 = vpop.permute.xlu0 %4238
  %4242 = vset.pattern.permute.xlu0 0
  %4243 = vperm.xlu0 %4242, %v3997
  %v4244 = vpop.permute.xlu0 %4243
  %4247 = vset.pattern.permute.xlu0 0
  %4248 = vperm.xlu0 %4247, %v3998
  %v4249 = vpop.permute.xlu0 %4248
  %4252 = vset.pattern.permute.xlu0 0
  %4253 = vperm.xlu0 %4252, %v3999
  %v4254 = vpop.permute.xlu0 %4253
  %4257 = vset.pattern.permute.xlu0 0
  %4258 = vperm.xlu0 %4257, %v4000
  %v4259 = vpop.permute.xlu0 %4258
  %4262 = vset.pattern.permute.xlu0 0
  %4263 = vperm.xlu0 %4262, %v4001
  %v4264 = vpop.permute.xlu0 %4263
  %4267 = vset.pattern.permute.xlu0 0
  %4268 = vperm.xlu0 %4267, %v4002
  %v4269 = vpop.permute.xlu0 %4268
  %4272 = vset.pattern.permute.xlu0 0
  %4273 = vperm.xlu0 %4272, %v4003
  %v4274 = vpop.permute.xlu0 %4273
  %4277 = vset.pattern.permute.xlu0 0
  %4278 = vperm.xlu0 %4277, %v4004
  %v4279 = vpop.permute.xlu0 %4278
  %4282 = vset.pattern.permute.xlu0 0
  %4283 = vperm.xlu0 %4282, %v4005
  %v4284 = vpop.permute.xlu0 %4283
  %4287 = vset.pattern.permute.xlu0 0
  %4288 = vperm.xlu0 %4287, %v4006
  %v4289 = vpop.permute.xlu0 %4288
  %4292 = vset.pattern.permute.xlu0 0
  %4293 = vperm.xlu0 %4292, %v4007
  %v4294 = vpop.permute.xlu0 %4293
  %4297 = vset.pattern.permute.xlu0 0
  %4298 = vperm.xlu0 %4297, %v4008
  %v4299 = vpop.permute.xlu0 %4298
  %4302 = vset.pattern.permute.xlu0 0
  %4303 = vperm.xlu0 %4302, %v4009
  %v4304 = vpop.permute.xlu0 %4303
  %4307 = vset.pattern.permute.xlu0 0
  %4308 = vperm.xlu0 %4307, %v4010
  %v4309 = vpop.permute.xlu0 %4308
  %4312 = vset.pattern.permute.xlu0 0
  %4313 = vperm.xlu0 %4312, %v4011
  %v4314 = vpop.permute.xlu0 %4313
  %4317 = vset.pattern.permute.xlu0 0
  %4318 = vperm.xlu0 %4317, %v4012
  %v4319 = vpop.permute.xlu0 %4318
  %4322 = vset.pattern.permute.xlu0 0
  %4323 = vperm.xlu0 %4322, %v4013
  %v4324 = vpop.permute.xlu0 %4323
  %4327 = vset.pattern.permute.xlu0 0
  %4328 = vperm.xlu0 %4327, %v4014
  %v4329 = vpop.permute.xlu0 %4328
  %4332 = vset.pattern.permute.xlu0 0
  %4333 = vperm.xlu0 %4332, %v4015
  %v4334 = vpop.permute.xlu0 %4333
  %4337 = vset.pattern.permute.xlu0 0
  %4338 = vperm.xlu0 %4337, %v4016
  %v4339 = vpop.permute.xlu0 %4338
  %4342 = vset.pattern.permute.xlu0 0
  %4343 = vperm.xlu0 %4342, %v4017
  %v4344 = vpop.permute.xlu0 %4343
  %4347 = vset.pattern.permute.xlu0 0
  %4348 = vperm.xlu0 %4347, %v4018
  %v4349 = vpop.permute.xlu0 %4348
  %4352 = vset.pattern.permute.xlu0 0
  %4353 = vperm.xlu0 %4352, %v4019
  %v4354 = vpop.permute.xlu0 %4353
  %v4356 = vadd.f32 %v4160, %v4219
  %v4357 = vadd.f32 %v4161, %v4219
  %v4358 = vadd.f32 %v4162, %v4224
  %v4359 = vadd.f32 %v4163, %v4224
  %v4360 = vadd.f32 %v4164, %v4229
  %v4361 = vadd.f32 %v4165, %v4229
  %v4362 = vadd.f32 %v4166, %v4234
  %v4363 = vadd.f32 %v4167, %v4234
  %v4364 = vadd.f32 %v4168, %v4239
  %v4365 = vadd.f32 %v4169, %v4239
  %v4366 = vadd.f32 %v4170, %v4244
  %v4367 = vadd.f32 %v4171, %v4244
  %v4368 = vadd.f32 %v4172, %v4249
  %v4369 = vadd.f32 %v4173, %v4249
  %v4370 = vadd.f32 %v4174, %v4254
  %v4371 = vadd.f32 %v4175, %v4254
  %v4372 = vadd.f32 %v4176, %v4259
  %v4373 = vadd.f32 %v4177, %v4259
  %v4374 = vadd.f32 %v4178, %v4264
  %v4375 = vadd.f32 %v4179, %v4264
  %v4376 = vadd.f32 %v4180, %v4269
  %v4377 = vadd.f32 %v4181, %v4269
  %v4378 = vadd.f32 %v4182, %v4274
  %v4379 = vadd.f32 %v4183, %v4274
  %v4380 = vadd.f32 %v4184, %v4279
  %v4381 = vadd.f32 %v4185, %v4279
  %v4382 = vadd.f32 %v4186, %v4284
  %v4383 = vadd.f32 %v4187, %v4284
  %v4384 = vadd.f32 %v4188, %v4289
  %v4385 = vadd.f32 %v4189, %v4289
  %v4386 = vadd.f32 %v4190, %v4294
  %v4387 = vadd.f32 %v4191, %v4294
  %v4388 = vadd.f32 %v4192, %v4299
  %v4389 = vadd.f32 %v4193, %v4299
  %v4390 = vadd.f32 %v4194, %v4304
  %v4391 = vadd.f32 %v4195, %v4304
  %v4392 = vadd.f32 %v4196, %v4309
  %v4393 = vadd.f32 %v4197, %v4309
  %v4394 = vadd.f32 %v4198, %v4314
  %v4395 = vadd.f32 %v4199, %v4314
  %v4396 = vadd.f32 %v4200, %v4319
  %v4397 = vadd.f32 %v4201, %v4319
  %v4398 = vadd.f32 %v4202, %v4324
  %v4399 = vadd.f32 %v4203, %v4324
  %v4400 = vadd.f32 %v4204, %v4329
  %v4401 = vadd.f32 %v4205, %v4329
  %v4402 = vadd.f32 %v4206, %v4334
  %v4403 = vadd.f32 %v4207, %v4334
  %v4404 = vadd.f32 %v4208, %v4339
  %v4405 = vadd.f32 %v4209, %v4339
  %v4406 = vadd.f32 %v4210, %v4344
  %v4407 = vadd.f32 %v4211, %v4344
  %v4408 = vadd.f32 %v4212, %v4349
  %v4409 = vadd.f32 %v4213, %v4349
  %v4410 = vadd.f32 %v4214, %v4354
  %v4411 = vadd.f32 %v4215, %v4354
  %4412 = vst [vmem:[%s5] sm:$0xff] %v4356
  %4413 = vst.msk [vmem:[%s5 + $0x8] sm:$0xff] %vm3403, %v4357
  %4414 = vst [vmem:[%s5 + $0x10] sm:$0xff] %v4358
  %4415 = vst.msk [vmem:[%s5 + $0x18] sm:$0xff] %vm3403, %v4359
  %4416 = vst [vmem:[%s5 + $0x20] sm:$0xff] %v4360
  %4417 = vst.msk [vmem:[%s5 + $0x28] sm:$0xff] %vm3403, %v4361
  %4418 = vst [vmem:[%s5 + $0x30] sm:$0xff] %v4362
  %4419 = vst.msk [vmem:[%s5 + $0x38] sm:$0xff] %vm3403, %v4363
  %4420 = vst [vmem:[%s5 + $0x40] sm:$0xff] %v4364
  %4421 = vst.msk [vmem:[%s5 + $0x48] sm:$0xff] %vm3403, %v4365
  %4422 = vst [vmem:[%s5 + $0x50] sm:$0xff] %v4366
  %4423 = vst.msk [vmem:[%s5 + $0x58] sm:$0xff] %vm3403, %v4367
  %4424 = vst [vmem:[%s5 + $0x60] sm:$0xff] %v4368
  %4425 = vst.msk [vmem:[%s5 + $0x68] sm:$0xff] %vm3403, %v4369
  %4426 = vst [vmem:[%s5 + $0x70] sm:$0xff] %v4370
  %4427 = vst.msk [vmem:[%s5 + $0x78] sm:$0xff] %vm3403, %v4371
  %4428 = vst [vmem:[%s5 + $0x80] sm:$0xff] %v4372
  %4429 = vst.msk [vmem:[%s5 + $0x88] sm:$0xff] %vm3403, %v4373
  %4430 = vst [vmem:[%s5 + $0x90] sm:$0xff] %v4374
  %4431 = vst.msk [vmem:[%s5 + $0x98] sm:$0xff] %vm3403, %v4375
  %4432 = vst [vmem:[%s5 + $0xa0] sm:$0xff] %v4376
  %4433 = vst.msk [vmem:[%s5 + $0xa8] sm:$0xff] %vm3403, %v4377
  %4434 = vst [vmem:[%s5 + $0xb0] sm:$0xff] %v4378
  %4435 = vst.msk [vmem:[%s5 + $0xb8] sm:$0xff] %vm3403, %v4379
  %4436 = vst [vmem:[%s5 + $0xc0] sm:$0xff] %v4380
  %4437 = vst.msk [vmem:[%s5 + $0xc8] sm:$0xff] %vm3403, %v4381
  %4438 = vst [vmem:[%s5 + $0xd0] sm:$0xff] %v4382
  %4439 = vst.msk [vmem:[%s5 + $0xd8] sm:$0xff] %vm3403, %v4383
  %4440 = vst [vmem:[%s5 + $0xe0] sm:$0xff] %v4384
  %4441 = vst.msk [vmem:[%s5 + $0xe8] sm:$0xff] %vm3403, %v4385
  %4442 = vst [vmem:[%s5 + $0xf0] sm:$0xff] %v4386
  %4443 = vst.msk [vmem:[%s5 + $0xf8] sm:$0xff] %vm3403, %v4387
  %4444 = vst [vmem:[%s5 + $0x100] sm:$0xff] %v4388
  %4445 = vst.msk [vmem:[%s5 + $0x108] sm:$0xff] %vm3403, %v4389
  %4446 = vst [vmem:[%s5 + $0x110] sm:$0xff] %v4390
  %4447 = vst.msk [vmem:[%s5 + $0x118] sm:$0xff] %vm3403, %v4391
  %4448 = vst [vmem:[%s5 + $0x120] sm:$0xff] %v4392
  %4449 = vst.msk [vmem:[%s5 + $0x128] sm:$0xff] %vm3403, %v4393
  %4450 = vst [vmem:[%s5 + $0x130] sm:$0xff] %v4394
  %4451 = vst.msk [vmem:[%s5 + $0x138] sm:$0xff] %vm3403, %v4395
  %4452 = vst [vmem:[%s5 + $0x140] sm:$0xff] %v4396
  %4453 = vst.msk [vmem:[%s5 + $0x148] sm:$0xff] %vm3403, %v4397
  %4454 = vst [vmem:[%s5 + $0x150] sm:$0xff] %v4398
  %4455 = vst.msk [vmem:[%s5 + $0x158] sm:$0xff] %vm3403, %v4399
  %4456 = vst [vmem:[%s5 + $0x160] sm:$0xff] %v4400
  %4457 = vst.msk [vmem:[%s5 + $0x168] sm:$0xff] %vm3403, %v4401
  %4458 = vst [vmem:[%s5 + $0x170] sm:$0xff] %v4402
  %4459 = vst.msk [vmem:[%s5 + $0x178] sm:$0xff] %vm3403, %v4403
  %4460 = vst [vmem:[%s5 + $0x180] sm:$0xff] %v4404
  %4461 = vst.msk [vmem:[%s5 + $0x188] sm:$0xff] %vm3403, %v4405
  %4462 = vst [vmem:[%s5 + $0x190] sm:$0xff] %v4406
  %4463 = vst.msk [vmem:[%s5 + $0x198] sm:$0xff] %vm3403, %v4407
  %4464 = vst [vmem:[%s5 + $0x1a0] sm:$0xff] %v4408
  %4465 = vst.msk [vmem:[%s5 + $0x1a8] sm:$0xff] %vm3403, %v4409
  %4466 = vst [vmem:[%s5 + $0x1b0] sm:$0xff] %v4410
  %4467 = vst.msk [vmem:[%s5 + $0x1b8] sm:$0xff] %vm3403, %v4411
  // Predicated region
  $region22: #{fused_mul_conv1x1_bn.1} parent=0 // pred_check
    _
  $region23: #{fused_mul_conv1x1_bn.1} parent=0 // pred_check_branch
    %4469 = sbr.rel (0) target = $region25
  $region24: #{fused_mul_conv1x1_bn.1} parent=0 // pred_region
    _
  $region25: #{fused_mul_conv1x1_bn.1} parent=0 // pred_fallthru
    _
  // Predicated region
  $region26: #{fused_mul_conv1x1_bn.1} parent=0 // pred_check
    _
  $region27: #{fused_mul_conv1x1_bn.1} parent=0 // pred_check_branch
    %4471 = sbr.rel (0) target = $region29
  $region28: #{fused_mul_conv1x1_bn.1} parent=0 // pred_region
    _
  $region29: #{fused_mul_conv1x1_bn.1} parent=0 // pred_fallthru
    _

</llo_original>
